<compile_context>
chip_gen: v6e
topology: v6e:2x2x1
jax: 0.10.0
libtpu: 0.0.40
codegen_flags: <defaults>
</compile_context>

<pallas_src>
import jax
import jax.numpy as jnp
import numpy as np
from jax.experimental import pallas as pl
from jax.experimental.pallas import tpu as pltpu


# Lane-aligned (padded) layer widths.
D_IN = 768      # already a multiple of 128
H1 = 1664       # 1600 -> 13 * 128
H2 = 896        # 800  ->  7 * 128
H3 = 256        # 200  ->  2 * 128
N_OUT = 128     # 2    ->  1 * 128 (lane-dense output, sliced to 2 outside)


# ---------------------------------------------------------------------------
# Kernel
# ---------------------------------------------------------------------------

def _mlp_head_kernel(x_ref,
                     w1_ref, s1_ref, b1_ref,
                     w2_ref, s2_ref, b2_ref,
                     w3_ref, s3_ref, b3_ref,
                     w4_ref, b4_ref,
                     o_ref):
    # x: [tb, 768] bf16.  w1..w3: int8 (per-out-channel scales s*, f32 [1,N]),
    # w4: bf16.  Biases b*: f32 [1,N].  Accumulation is f32 on the MXU; the
    # int8 -> bf16 convert is lossless (|q| <= 127 is exact in bf16).
    x = x_ref[...]

    # fc1 (+folded BN) -> ReLU
    h = jnp.dot(x, w1_ref[...].astype(jnp.bfloat16),
                preferred_element_type=jnp.float32)
    h = jnp.maximum(h * s1_ref[...] + b1_ref[...], 0.0)

    # fc2
    h = jnp.dot(h.astype(jnp.bfloat16), w2_ref[...].astype(jnp.bfloat16),
                preferred_element_type=jnp.float32)
    h = jnp.maximum(h * s2_ref[...] + b2_ref[...], 0.0)

    # fc3
    h = jnp.dot(h.astype(jnp.bfloat16), w3_ref[...].astype(jnp.bfloat16),
                preferred_element_type=jnp.float32)
    h = jnp.maximum(h * s3_ref[...] + b3_ref[...], 0.0)

    # fc4 + softmax(dim=1), f32.  Padded logit lanes carry a -1e30 bias, so
    # they contribute exp(-huge) == 0 to the denominator -> softmax is exact.
    logits = jnp.dot(h.astype(jnp.bfloat16), w4_ref[...],
                     preferred_element_type=jnp.float32) + b4_ref[...]
    m = jnp.max(logits, axis=1, keepdims=True)
    e = jnp.exp(logits - m)
    o_ref[...] = e / jnp.sum(e, axis=1, keepdims=True)


def mlp_head(x, params, *, batch_block=256):
    """x: [B, 768] CLS embedding (f32 or bf16); returns [B, 2] f32 softmax.

    params = (w1q, s1, b1, w2q, s2, b2, w3q, s3, b3, w4_bf16, b4) with BN
    folded in, lane-padded shapes, int8 weights for fc1..fc3.
    batch_block=256 fills the MXU M dim for large B; small B runs one step.
    """
    B, D = x.shape
    x = x.astype(jnp.bfloat16)          # halve x DMA; MXU-native input dtype
    tb = min(B, batch_block)
    grid = (pl.cdiv(B, tb),)

    consts = list(params)

    # x / output tiled over batch; weights/scales/biases use a constant
    # index_map so they stay VMEM-resident across batch tiles.
    in_specs = [pl.BlockSpec((tb, D), lambda i: (i, 0))]
    in_specs += [pl.BlockSpec(p.shape, lambda i: (0, 0)) for p in consts]
    out_spec = pl.BlockSpec((tb, N_OUT), lambda i: (i, 0))

    flops = 2 * B * (D_IN * H1 + H1 * H2 + H2 * H3 + H3 * N_OUT)
    bytes_accessed = (
        sum(int(np.prod(p.shape)) * p.dtype.itemsize for p in consts)
        + B * D * 2            # bf16 x
        + B * N_OUT * 4)       # f32 padded output
    cost = pl.CostEstimate(flops=flops, transcendentals=B * N_OUT,
                           bytes_accessed=bytes_accessed)

    out = pl.pallas_call(
        _mlp_head_kernel,
        out_shape=jax.ShapeDtypeStruct((B, N_OUT), jnp.float32),
        grid=grid,
        in_specs=in_specs,
        out_specs=out_spec,
        compiler_params=pltpu.CompilerParams(
            dimension_semantics=("parallel",),
            vmem_limit_bytes=32 << 20,   # fits v7x's 64 MiB physical VMEM
        ),
        cost_estimate=cost,
    )(x, *consts)

    return out[:, :2]   # drop the padded logit lanes


# ---------------------------------------------------------------------------
# Host-side parameter construction (mimics torch defaults), BN folding,
# lane padding and int8 per-channel quantization.
# ---------------------------------------------------------------------------

def _init_linear(key, fan_in, fan_out):
    """Deterministic init mimicking torch.nn.Linear (U[-1/sqrt(fan_in), +])."""
    kw, kb = jax.random.split(key)
    bound = 1.0 / np.sqrt(fan_in)
    w = jax.random.uniform(kw, (fan_in, fan_out), jnp.float32, -bound, bound)
    b = jax.random.uniform(kb, (1, fan_out), jnp.float32, -bound, bound)
    return w, b


def _fold_bn(w, b, eps=1e-5):
    """Fold eval-mode BatchNorm1d (fresh torch defaults: gamma=1, beta=0,
    running_mean=0, running_var=1) into the preceding Linear.  With trained
    stats the same per-channel scale/shift fold applies."""
    scale = 1.0 / np.sqrt(1.0 + eps)
    return w * scale, b * scale


def _pad2(w, rows, cols):
    r, c = w.shape
    return jnp.pad(w, ((0, rows - r), (0, cols - c)))


def _pad_bias(b, cols, fill):
    return jnp.pad(b, ((0, 0), (0, cols - b.shape[1])),
                   constant_values=fill).astype(jnp.float32)


def _quantize_per_channel(w):
    """Symmetric int8 quantization with a per-output-channel scale.
    The scale is applied after the f32 accumulation inside the kernel."""
    amax = jnp.max(jnp.abs(w), axis=0)                       # [N]
    scale = jnp.where(amax > 0, amax / 127.0, 1.0)           # avoid /0 on pad
    wq = jnp.round(w / scale[None, :]).astype(jnp.int8)
    return wq, scale.reshape(1, -1).astype(jnp.float32)


def build_folded_params(raw_params):
    (w1, b1, w2, b2, w3, b3, w4, b4) = raw_params
    w1f, b1f = _fold_bn(w1, b1)
    w2f, b2f = _fold_bn(w2, b2)
    w3f, b3f = _fold_bn(w3, b3)

    # Lane-align: zero weight cols/rows + zero bias keep ReLU'd pad lanes at 0.
    w1p, b1p = _pad2(w1f, D_IN, H1), _pad_bias(b1f, H1, 0.0)
    w2p, b2p = _pad2(w2f, H1, H2), _pad_bias(b2f, H2, 0.0)
    w3p, b3p = _pad2(w3f, H2, H3), _pad_bias(b3f, H3, 0.0)
    # fc4: pad to 128 output lanes; padded lanes get bias -1e30 so softmax
    # over the padded width is exact.
    w4p, b4p = _pad2(w4, H3, N_OUT), _pad_bias(b4, N_OUT, -1e30)

    w1q, s1 = _quantize_per_channel(w1p)
    w2q, s2 = _quantize_per_channel(w2p)
    w3q, s3 = _quantize_per_channel(w3p)

    return (w1q, s1, b1p,
            w2q, s2, b2p,
            w3q, s3, b3p,
            w4p.astype(jnp.bfloat16), b4p)


def _reference(x, raw_params, eps=1e-5):
    """Pure-JAX f32 reference matching the PyTorch eval-mode forward."""
    (w1, b1, w2, b2, w3, b3, w4, b4) = raw_params
    s = 1.0 / np.sqrt(1.0 + eps)   # fresh BN in eval mode: scale; shift=0
    h = jnp.maximum((x @ w1 + b1) * s, 0.0)
    h = jnp.maximum((h @ w2 + b2) * s, 0.0)
    h = jnp.maximum((h @ w3 + b3) * s, 0.0)
    logits = h @ w4 + b4
    return jax.nn.softmax(logits, axis=1)


if __name__ == "__main__":
    key = jax.random.PRNGKey(0)
    k_x, k1, k2, k3, k4 = jax.random.split(key, 5)

    B = 8
    # Stand-in for BERT's last_hidden_state[:, 0] (CLS embedding), [B, 768]
    x = jax.random.normal(k_x, (B, 768), jnp.float32)

    # Raw f32 parameters (as torch would initialize them)
    w1, b1 = _init_linear(k1, 768, 1600)
    w2, b2 = _init_linear(k2, 1600, 800)
    w3, b3 = _init_linear(k3, 800, 200)
    w4, b4 = _init_linear(k4, 200, 2)
    raw_params = (w1, b1, w2, b2, w3, b3, w4, b4)

    params = build_folded_params(raw_params)

    out = jax.block_until_ready(mlp_head(x, params))
    ref = jax.block_until_ready(_reference(x, raw_params))

    # int8 weights + bf16 activations -> relaxed tolerance vs. pure-f32 ref
    np.testing.assert_allclose(np.asarray(out), np.asarray(ref),
                               rtol=2e-2, atol=2e-2)
    # rows of the softmax output must sum to 1 (computed in f32 in-kernel)
    np.testing.assert_allclose(np.asarray(out).sum(axis=1), np.ones(B),
                               rtol=1e-5, atol=1e-5)

    print("KERNEL_OK")
</pallas_src>

<mosaic_0001>
module attributes {stable_mosaic.version = 11 : i64} {
  func.func @_mlp_head_kernel(%arg0: i32, %arg1: memref<8x768xbf16, #tpu.memory_space<vmem>>, %arg2: memref<768x1664xi8, #tpu.memory_space<vmem>>, %arg3: memref<1x1664xf32, #tpu.memory_space<vmem>>, %arg4: memref<1x1664xf32, #tpu.memory_space<vmem>>, %arg5: memref<1664x896xi8, #tpu.memory_space<vmem>>, %arg6: memref<1x896xf32, #tpu.memory_space<vmem>>, %arg7: memref<1x896xf32, #tpu.memory_space<vmem>>, %arg8: memref<896x256xi8, #tpu.memory_space<vmem>>, %arg9: memref<1x256xf32, #tpu.memory_space<vmem>>, %arg10: memref<1x256xf32, #tpu.memory_space<vmem>>, %arg11: memref<256x128xbf16, #tpu.memory_space<vmem>>, %arg12: memref<1x128xf32, #tpu.memory_space<vmem>>, %arg13: memref<8x128xf32, #tpu.memory_space<vmem>>) attributes {dimension_semantics = [#tpu.dimension_semantics<parallel>], iteration_bounds = array<i64: 1>, scalar_prefetch = 0 : i64, scratch_operands = 0 : i64, tpu.core_type = #tpu.core_type<tc>, window_params = [{transform_indices = @transform_0, window_bounds = array<i64: 8, 768>}, {pipeline_mode = #tpu.pipeline_mode<synchronous>, transform_indices = @transform_1, window_bounds = array<i64: 768, 1664>}, {pipeline_mode = #tpu.pipeline_mode<synchronous>, transform_indices = @transform_2, window_bounds = array<i64: 1, 1664>}, {pipeline_mode = #tpu.pipeline_mode<synchronous>, transform_indices = @transform_3, window_bounds = array<i64: 1, 1664>}, {pipeline_mode = #tpu.pipeline_mode<synchronous>, transform_indices = @transform_4, window_bounds = array<i64: 1664, 896>}, {pipeline_mode = #tpu.pipeline_mode<synchronous>, transform_indices = @transform_5, window_bounds = array<i64: 1, 896>}, {pipeline_mode = #tpu.pipeline_mode<synchronous>, transform_indices = @transform_6, window_bounds = array<i64: 1, 896>}, {pipeline_mode = #tpu.pipeline_mode<synchronous>, transform_indices = @transform_7, window_bounds = array<i64: 896, 256>}, {pipeline_mode = #tpu.pipeline_mode<synchronous>, transform_indices = @transform_8, window_bounds = array<i64: 1, 256>}, {pipeline_mode = #tpu.pipeline_mode<synchronous>, transform_indices = @transform_9, window_bounds = array<i64: 1, 256>}, {pipeline_mode = #tpu.pipeline_mode<synchronous>, transform_indices = @transform_10, window_bounds = array<i64: 256, 128>}, {pipeline_mode = #tpu.pipeline_mode<synchronous>, transform_indices = @transform_11, window_bounds = array<i64: 1, 128>}, {transform_indices = @transform_12, window_bounds = array<i64: 8, 128>}]} {
    %c0 = arith.constant 0 : index
    %c0_0 = arith.constant 0 : index
    %0 = vector.load %arg1[%c0, %c0_0] : memref<8x768xbf16, #tpu.memory_space<vmem>>, vector<8x768xbf16>
    %c0_1 = arith.constant 0 : index
    %c0_2 = arith.constant 0 : index
    %1 = vector.load %arg2[%c0_1, %c0_2] : memref<768x1664xi8, #tpu.memory_space<vmem>>, vector<768x1664xi8>
    %2 = arith.sitofp %1 : vector<768x1664xi8> to vector<768x1664xbf16>
    %cst = arith.constant dense<0.000000e+00> : vector<8x1664xf32>
    %3 = tpu.matmul %0, %2, %cst {dimension_numbers = #tpu.dot_dimension_numbers<[1], [0], [0], [1], [0, 0, 1, 1], [], []>} : vector<8x768xbf16>, vector<768x1664xbf16>, vector<8x1664xf32> -> vector<8x1664xf32>
    %c0_3 = arith.constant 0 : index
    %c0_4 = arith.constant 0 : index
    %4 = vector.load %arg3[%c0_3, %c0_4] : memref<1x1664xf32, #tpu.memory_space<vmem>>, vector<1x1664xf32>
    %5 = vector.broadcast %4 : vector<1x1664xf32> to vector<8x1664xf32>
    %6 = arith.mulf %3, %5 : vector<8x1664xf32>
    %c0_5 = arith.constant 0 : index
    %c0_6 = arith.constant 0 : index
    %7 = vector.load %arg4[%c0_5, %c0_6] : memref<1x1664xf32, #tpu.memory_space<vmem>>, vector<1x1664xf32>
    %8 = vector.broadcast %7 : vector<1x1664xf32> to vector<8x1664xf32>
    %9 = arith.addf %6, %8 : vector<8x1664xf32>
    %cst_7 = arith.constant 0.000000e+00 : f32
    %10 = vector.broadcast %cst_7 : f32 to vector<8x1664xf32>
    %11 = arith.maximumf %9, %10 : vector<8x1664xf32>
    %12 = arith.truncf %11 : vector<8x1664xf32> to vector<8x1664xbf16>
    %c0_8 = arith.constant 0 : index
    %c0_9 = arith.constant 0 : index
    %13 = vector.load %arg5[%c0_8, %c0_9] : memref<1664x896xi8, #tpu.memory_space<vmem>>, vector<1664x896xi8>
    %14 = arith.sitofp %13 : vector<1664x896xi8> to vector<1664x896xbf16>
    %cst_10 = arith.constant dense<0.000000e+00> : vector<8x896xf32>
    %15 = tpu.matmul %12, %14, %cst_10 {dimension_numbers = #tpu.dot_dimension_numbers<[1], [0], [0], [1], [0, 0, 1, 1], [], []>} : vector<8x1664xbf16>, vector<1664x896xbf16>, vector<8x896xf32> -> vector<8x896xf32>
    %c0_11 = arith.constant 0 : index
    %c0_12 = arith.constant 0 : index
    %16 = vector.load %arg6[%c0_11, %c0_12] : memref<1x896xf32, #tpu.memory_space<vmem>>, vector<1x896xf32>
    %17 = vector.broadcast %16 : vector<1x896xf32> to vector<8x896xf32>
    %18 = arith.mulf %15, %17 : vector<8x896xf32>
    %c0_13 = arith.constant 0 : index
    %c0_14 = arith.constant 0 : index
    %19 = vector.load %arg7[%c0_13, %c0_14] : memref<1x896xf32, #tpu.memory_space<vmem>>, vector<1x896xf32>
    %20 = vector.broadcast %19 : vector<1x896xf32> to vector<8x896xf32>
    %21 = arith.addf %18, %20 : vector<8x896xf32>
    %cst_15 = arith.constant 0.000000e+00 : f32
    %22 = vector.broadcast %cst_15 : f32 to vector<8x896xf32>
    %23 = arith.maximumf %21, %22 : vector<8x896xf32>
    %24 = arith.truncf %23 : vector<8x896xf32> to vector<8x896xbf16>
    %c0_16 = arith.constant 0 : index
    %c0_17 = arith.constant 0 : index
    %25 = vector.load %arg8[%c0_16, %c0_17] : memref<896x256xi8, #tpu.memory_space<vmem>>, vector<896x256xi8>
    %26 = arith.sitofp %25 : vector<896x256xi8> to vector<896x256xbf16>
    %cst_18 = arith.constant dense<0.000000e+00> : vector<8x256xf32>
    %27 = tpu.matmul %24, %26, %cst_18 {dimension_numbers = #tpu.dot_dimension_numbers<[1], [0], [0], [1], [0, 0, 1, 1], [], []>} : vector<8x896xbf16>, vector<896x256xbf16>, vector<8x256xf32> -> vector<8x256xf32>
    %c0_19 = arith.constant 0 : index
    %c0_20 = arith.constant 0 : index
    %28 = vector.load %arg9[%c0_19, %c0_20] : memref<1x256xf32, #tpu.memory_space<vmem>>, vector<1x256xf32>
    %29 = vector.broadcast %28 : vector<1x256xf32> to vector<8x256xf32>
    %30 = arith.mulf %27, %29 : vector<8x256xf32>
    %c0_21 = arith.constant 0 : index
    %c0_22 = arith.constant 0 : index
    %31 = vector.load %arg10[%c0_21, %c0_22] : memref<1x256xf32, #tpu.memory_space<vmem>>, vector<1x256xf32>
    %32 = vector.broadcast %31 : vector<1x256xf32> to vector<8x256xf32>
    %33 = arith.addf %30, %32 : vector<8x256xf32>
    %cst_23 = arith.constant 0.000000e+00 : f32
    %34 = vector.broadcast %cst_23 : f32 to vector<8x256xf32>
    %35 = arith.maximumf %33, %34 : vector<8x256xf32>
    %36 = arith.truncf %35 : vector<8x256xf32> to vector<8x256xbf16>
    %c0_24 = arith.constant 0 : index
    %c0_25 = arith.constant 0 : index
    %37 = vector.load %arg11[%c0_24, %c0_25] : memref<256x128xbf16, #tpu.memory_space<vmem>>, vector<256x128xbf16>
    %cst_26 = arith.constant dense<0.000000e+00> : vector<8x128xf32>
    %38 = tpu.matmul %36, %37, %cst_26 {dimension_numbers = #tpu.dot_dimension_numbers<[1], [0], [0], [1], [0, 0, 1, 1], [], []>} : vector<8x256xbf16>, vector<256x128xbf16>, vector<8x128xf32> -> vector<8x128xf32>
    %c0_27 = arith.constant 0 : index
    %c0_28 = arith.constant 0 : index
    %39 = vector.load %arg12[%c0_27, %c0_28] : memref<1x128xf32, #tpu.memory_space<vmem>>, vector<1x128xf32>
    %40 = vector.broadcast %39 : vector<1x128xf32> to vector<8x128xf32>
    %41 = arith.addf %38, %40 : vector<8x128xf32>
    %cst_29 = arith.constant dense<0xFF800000> : vector<8xf32>
    %42 = vector.multi_reduction <maximumf>, %41, %cst_29 [1] : vector<8x128xf32> to vector<8xf32>
    %43 = vector.shape_cast %42 : vector<8xf32> to vector<8x1xf32>
    %44 = vector.broadcast %43 : vector<8x1xf32> to vector<8x128xf32>
    %45 = arith.subf %41, %44 : vector<8x128xf32>
    %46 = math.exp %45 : vector<8x128xf32>
    %cst_30 = arith.constant dense<0.000000e+00> : vector<8xf32>
    %47 = vector.multi_reduction <add>, %46, %cst_30 [1] : vector<8x128xf32> to vector<8xf32>
    %48 = vector.shape_cast %47 : vector<8xf32> to vector<8x1xf32>
    %49 = vector.broadcast %48 : vector<8x1xf32> to vector<8x128xf32>
    %50 = arith.divf %46, %49 : vector<8x128xf32>
    %c0_31 = arith.constant 0 : index
    %c0_32 = arith.constant 0 : index
    %51 = vector.load %arg13[%c0_31, %c0_32] : memref<8x128xf32, #tpu.memory_space<vmem>>, vector<8x128xf32>
    tpu.vector_store %arg13[%c0_31, %c0_32], %50 {strides = array<i32>} : memref<8x128xf32, #tpu.memory_space<vmem>>, vector<8x128xf32>,
    return
  }
  func.func @transform_0(%arg0: i32) -> (i32, i32) {
    %c0_i32 = arith.constant 0 : i32
    %c0_i32_0 = arith.constant 0 : i32
    return %arg0, %c0_i32 : i32, i32
  }
  func.func @transform_1(%arg0: i32) -> (i32, i32) {
    %c0_i32 = arith.constant 0 : i32
    %c0_i32_0 = arith.constant 0 : i32
    %c0_i32_1 = arith.constant 0 : i32
    return %c0_i32, %c0_i32_0 : i32, i32
  }
  func.func @transform_2(%arg0: i32) -> (i32, i32) {
    %c0_i32 = arith.constant 0 : i32
    %c0_i32_0 = arith.constant 0 : i32
    %c0_i32_1 = arith.constant 0 : i32
    return %c0_i32, %c0_i32_0 : i32, i32
  }
  func.func @transform_3(%arg0: i32) -> (i32, i32) {
    %c0_i32 = arith.constant 0 : i32
    %c0_i32_0 = arith.constant 0 : i32
    %c0_i32_1 = arith.constant 0 : i32
    return %c0_i32, %c0_i32_0 : i32, i32
  }
  func.func @transform_4(%arg0: i32) -> (i32, i32) {
    %c0_i32 = arith.constant 0 : i32
    %c0_i32_0 = arith.constant 0 : i32
    %c0_i32_1 = arith.constant 0 : i32
    return %c0_i32, %c0_i32_0 : i32, i32
  }
  func.func @transform_5(%arg0: i32) -> (i32, i32) {
    %c0_i32 = arith.constant 0 : i32
    %c0_i32_0 = arith.constant 0 : i32
    %c0_i32_1 = arith.constant 0 : i32
    return %c0_i32, %c0_i32_0 : i32, i32
  }
  func.func @transform_6(%arg0: i32) -> (i32, i32) {
    %c0_i32 = arith.constant 0 : i32
    %c0_i32_0 = arith.constant 0 : i32
    %c0_i32_1 = arith.constant 0 : i32
    return %c0_i32, %c0_i32_0 : i32, i32
  }
  func.func @transform_7(%arg0: i32) -> (i32, i32) {
    %c0_i32 = arith.constant 0 : i32
    %c0_i32_0 = arith.constant 0 : i32
    %c0_i32_1 = arith.constant 0 : i32
    return %c0_i32, %c0_i32_0 : i32, i32
  }
  func.func @transform_8(%arg0: i32) -> (i32, i32) {
    %c0_i32 = arith.constant 0 : i32
    %c0_i32_0 = arith.constant 0 : i32
    %c0_i32_1 = arith.constant 0 : i32
    return %c0_i32, %c0_i32_0 : i32, i32
  }
  func.func @transform_9(%arg0: i32) -> (i32, i32) {
    %c0_i32 = arith.constant 0 : i32
    %c0_i32_0 = arith.constant 0 : i32
    %c0_i32_1 = arith.constant 0 : i32
    return %c0_i32, %c0_i32_0 : i32, i32
  }
  func.func @transform_10(%arg0: i32) -> (i32, i32) {
    %c0_i32 = arith.constant 0 : i32
    %c0_i32_0 = arith.constant 0 : i32
    %c0_i32_1 = arith.constant 0 : i32
    return %c0_i32, %c0_i32_0 : i32, i32
  }
  func.func @transform_11(%arg0: i32) -> (i32, i32) {
    %c0_i32 = arith.constant 0 : i32
    %c0_i32_0 = arith.constant 0 : i32
    %c0_i32_1 = arith.constant 0 : i32
    return %c0_i32, %c0_i32_0 : i32, i32
  }
  func.func @transform_12(%arg0: i32) -> (i32, i32) {
    %c0_i32 = arith.constant 0 : i32
    %c0_i32_0 = arith.constant 0 : i32
    return %arg0, %c0_i32 : i32, i32
  }
}

</mosaic_0001>

<llo_original>
// kernel: tpu_custom_call.1
$region0: #{tpu_custom_call.1}
  #allocation0 [shape = 'u32[]', space=smem, size = 0x4, offset = 0x4, fixed_abs, tag = 'smem constant byte address 0x4 - core index']
  #allocation1 [shape = 'u32[144,128]{1,0:T(1,128)}', space=vmem, size = 0x12000, scoped, tag = 'internal scratch']
  %s0 = inlined_call_operand.hbm [shape: bf16[8,768], index: 0, kind: input, shape index: {}]
  %s1 = inlined_call_operand.hbm [shape: s8[768,1664], index: 1, kind: input, shape index: {}]
  %s2 = inlined_call_operand.hbm [shape: f32[1,1664], index: 2, kind: input, shape index: {}]
  %s3 = inlined_call_operand.hbm [shape: f32[1,1664], index: 3, kind: input, shape index: {}]
  %s4 = inlined_call_operand.hbm [shape: s8[1664,896], index: 4, kind: input, shape index: {}]
  %s5 = inlined_call_operand.hbm [shape: f32[1,896], index: 5, kind: input, shape index: {}]
  %s6 = inlined_call_operand.hbm [shape: f32[1,896], index: 6, kind: input, shape index: {}]
  %s7 = inlined_call_operand.hbm [shape: s8[896,256], index: 7, kind: input, shape index: {}]
  %s8 = inlined_call_operand.hbm [shape: f32[1,256], index: 8, kind: input, shape index: {}]
  %s9 = inlined_call_operand.hbm [shape: f32[1,256], index: 9, kind: input, shape index: {}]
  %s10 = inlined_call_operand.hbm [shape: bf16[256,128], index: 10, kind: input, shape index: {}]
  %s11 = inlined_call_operand.hbm [shape: f32[1,128], index: 11, kind: input, shape index: {}]
  %s12 = inlined_call_operand.hbm [shape: f32[8,128], index: 12, kind: output, shape index: {}]
  %s13 = sld [smem:[#allocation0]]
  $region106: #{tpu_custom_call.1} parent=0
    _
  %s15 = ssub.s32 1, %s13
  %s16 = scalar_select 0, %s15, %s13
  $region1: #{tpu_custom_call.1} parent=0
    #allocation2 [shape = 'u8[12288]{0}', space=vmem, size = 0x3000, scoped, tag = 'input window, operand 0, single buffered']
    #allocation3 [shape = 's32[1]{0}', space=sflag, size = 0x4, scoped, tag = 'scoped memory for tpu_custom_call.1']
    #allocation4 [shape = 's32[1]{0}', space=sflag, size = 0x4, scoped, tag = 'scoped memory for tpu_custom_call.1']
    #allocation5 [shape = 'u8[1277952]{0}', space=vmem, size = 0x138000, scoped, tag = 'input window, operand 1, single buffered']
    #allocation6 [shape = 's32[1]{0}', space=sflag, size = 0x4, scoped, tag = 'scoped memory for tpu_custom_call.1']
    #allocation7 [shape = 'u8[6656]{0}', space=vmem, size = 0x1c00, scoped, tag = 'input window, operand 2, single buffered']
    #allocation8 [shape = 'u8[6656]{0}', space=vmem, size = 0x1c00, scoped, tag = 'input window, operand 3, single buffered']
    #allocation9 [shape = 's32[1]{0}', space=sflag, size = 0x4, scoped, tag = 'scoped memory for tpu_custom_call.1']
    #allocation10 [shape = 'u8[1490944]{0}', space=vmem, size = 0x16c000, scoped, tag = 'input window, operand 4, single buffered']
    #allocation11 [shape = 'u8[3584]{0}', space=vmem, size = 0x1000, scoped, tag = 'input window, operand 5, single buffered']
    #allocation12 [shape = 's32[1]{0}', space=sflag, size = 0x4, scoped, tag = 'scoped memory for tpu_custom_call.1']
    #allocation13 [shape = 'u8[3584]{0}', space=vmem, size = 0x1000, scoped, tag = 'input window, operand 6, single buffered']
    #allocation14 [shape = 'u8[229376]{0}', space=vmem, size = 0x38000, scoped, tag = 'input window, operand 7, single buffered']
    #allocation15 [shape = 's32[1]{0}', space=sflag, size = 0x4, scoped, tag = 'scoped memory for tpu_custom_call.1']
    #allocation16 [shape = 'u8[1024]{0}', space=vmem, size = 0x400, scoped, tag = 'input window, operand 8, single buffered']
    #allocation17 [shape = 'u8[1024]{0}', space=vmem, size = 0x400, scoped, tag = 'input window, operand 9, single buffered']
    #allocation18 [shape = 's32[1]{0}', space=sflag, size = 0x4, scoped, tag = 'scoped memory for tpu_custom_call.1']
    #allocation19 [shape = 'u8[65536]{0}', space=vmem, size = 0x10000, scoped, tag = 'input window, operand 10, single buffered']
    #allocation20 [shape = 'u8[512]{0}', space=vmem, size = 0x400, scoped, tag = 'input window, operand 11, single buffered']
    #allocation21 [shape = 's32[1]{0}', space=sflag, size = 0x4, scoped, tag = 'scoped memory for tpu_custom_call.1']
    #allocation22 [shape = 'u8[4096]{0}', space=vmem, size = 0x1000, scoped, tag = 'output window, operand 0, single buffered']
    %17 = vsyncpa [#allocation3], 0
    %18 = vsyncpa [#allocation6], 0
    %19 = vsyncpa [#allocation9], 0
    %20 = vsyncpa [#allocation12], 0
    %21 = vsyncpa [#allocation15], 0
    %22 = vsyncpa [#allocation18], 0
    %23 = vsyncpa [#allocation21], 0
    %24 = vsyncpa [#allocation4], 0
    // Predicated region
    $region2: #{tpu_custom_call.1} parent=1 // pred_check
      _
    $region3: #{tpu_custom_call.1} parent=1 // pred_check_branch
      %26 = sbr.rel (0) target = $region5
    $region4: #{tpu_custom_call.1} parent=1 // pred_region
      %s28 = ssub.s32 384, 384
      %29 = vsyncadd [#allocation3], %s28
      %s31 = sshll.u32 [#allocation2], 4
      %s32 = int_to_ptr.vmem [resolvable:$true] %s31
      %34 = dma.hbm_to_vmem [thread:$0]  %s0, 384, %s32, [#allocation3]
    $region5: #{tpu_custom_call.1} parent=1 // pred_fallthru
      _
    // Predicated region
    $region6: #{tpu_custom_call.1} parent=1 // pred_check
      _
    $region7: #{tpu_custom_call.1} parent=1 // pred_check_branch
      %36 = sbr.rel (0) target = $region9
    $region8: #{tpu_custom_call.1} parent=1 // pred_region
      %s38 = ssub.s32 39936, 39936
      %39 = vsyncadd [#allocation6], %s38
      %s40 = sshll.u32 [#allocation5], 4
      %s41 = int_to_ptr.vmem [resolvable:$true] %s40
      %46 = dma.hbm_to_vmem [thread:$0]  %s1, 39936, %s41, [#allocation6], 1664, 1664, 104
    $region9: #{tpu_custom_call.1} parent=1 // pred_fallthru
      _
    // Predicated region
    $region10: #{tpu_custom_call.1} parent=1 // pred_check
      _
    $region11: #{tpu_custom_call.1} parent=1 // pred_check_branch
      %48 = sbr.rel (0) target = $region13
    $region12: #{tpu_custom_call.1} parent=1 // pred_region
      %s50 = ssub.s32 208, 208
      %51 = vsyncadd [#allocation6], %s50
      %s53 = sshll.u32 [#allocation7], 4
      %s54 = int_to_ptr.vmem [resolvable:$true] %s53
      %56 = dma.hbm_to_vmem [thread:$0]  %s2, 208, %s54, [#allocation6]
    $region13: #{tpu_custom_call.1} parent=1 // pred_fallthru
      _
    // Predicated region
    $region14: #{tpu_custom_call.1} parent=1 // pred_check
      _
    $region15: #{tpu_custom_call.1} parent=1 // pred_check_branch
      %58 = sbr.rel (0) target = $region17
    $region16: #{tpu_custom_call.1} parent=1 // pred_region
      %s60 = ssub.s32 208, 208
      %61 = vsyncadd [#allocation9], %s60
      %s63 = sshll.u32 [#allocation8], 4
      %s64 = int_to_ptr.vmem [resolvable:$true] %s63
      %66 = dma.hbm_to_vmem [thread:$0]  %s3, 208, %s64, [#allocation9]
    $region17: #{tpu_custom_call.1} parent=1 // pred_fallthru
      _
    // Predicated region
    $region18: #{tpu_custom_call.1} parent=1 // pred_check
      _
    $region19: #{tpu_custom_call.1} parent=1 // pred_check_branch
      %68 = sbr.rel (0) target = $region21
    $region20: #{tpu_custom_call.1} parent=1 // pred_region
      %s70 = ssub.s32 46592, 46592
      %71 = vsyncadd [#allocation9], %s70
      %s72 = sshll.u32 [#allocation10], 4
      %s73 = int_to_ptr.vmem [resolvable:$true] %s72
      %78 = dma.hbm_to_vmem [thread:$0]  %s4, 46592, %s73, [#allocation9], 896, 896, 56
    $region21: #{tpu_custom_call.1} parent=1 // pred_fallthru
      _
    // Predicated region
    $region22: #{tpu_custom_call.1} parent=1 // pred_check
      _
    $region23: #{tpu_custom_call.1} parent=1 // pred_check_branch
      %80 = sbr.rel (0) target = $region25
    $region24: #{tpu_custom_call.1} parent=1 // pred_region
      %s82 = ssub.s32 112, 112
      %83 = vsyncadd [#allocation12], %s82
      %s85 = sshll.u32 [#allocation11], 4
      %s86 = int_to_ptr.vmem [resolvable:$true] %s85
      %88 = dma.hbm_to_vmem [thread:$0]  %s5, 112, %s86, [#allocation12]
    $region25: #{tpu_custom_call.1} parent=1 // pred_fallthru
      _
    // Predicated region
    $region26: #{tpu_custom_call.1} parent=1 // pred_check
      _
    $region27: #{tpu_custom_call.1} parent=1 // pred_check_branch
      %90 = sbr.rel (0) target = $region29
    $region28: #{tpu_custom_call.1} parent=1 // pred_region
      %s92 = ssub.s32 112, 112
      %93 = vsyncadd [#allocation12], %s92
      %s95 = sshll.u32 [#allocation13], 4
      %s96 = int_to_ptr.vmem [resolvable:$true] %s95
      %98 = dma.hbm_to_vmem [thread:$0]  %s6, 112, %s96, [#allocation12]
    $region29: #{tpu_custom_call.1} parent=1 // pred_fallthru
      _
    // Predicated region
    $region30: #{tpu_custom_call.1} parent=1 // pred_check
      _
    $region31: #{tpu_custom_call.1} parent=1 // pred_check_branch
      %100 = sbr.rel (0) target = $region33
    $region32: #{tpu_custom_call.1} parent=1 // pred_region
      %s102 = ssub.s32 7168, 7168
      %103 = vsyncadd [#allocation15], %s102
      %s104 = sshll.u32 [#allocation14], 4
      %s105 = int_to_ptr.vmem [resolvable:$true] %s104
      %110 = dma.hbm_to_vmem [thread:$0]  %s7, 7168, %s105, [#allocation15], 256, 256, 16
    $region33: #{tpu_custom_call.1} parent=1 // pred_fallthru
      _
    // Predicated region
    $region34: #{tpu_custom_call.1} parent=1 // pred_check
      _
    $region35: #{tpu_custom_call.1} parent=1 // pred_check_branch
      %112 = sbr.rel (0) target = $region37
    $region36: #{tpu_custom_call.1} parent=1 // pred_region
      %s114 = ssub.s32 32, 32
      %115 = vsyncadd [#allocation15], %s114
      %s117 = sshll.u32 [#allocation16], 4
      %s118 = int_to_ptr.vmem [resolvable:$true] %s117
      %120 = dma.hbm_to_vmem [thread:$0]  %s8, 32, %s118, [#allocation15]
    $region37: #{tpu_custom_call.1} parent=1 // pred_fallthru
      _
    // Predicated region
    $region38: #{tpu_custom_call.1} parent=1 // pred_check
      _
    $region39: #{tpu_custom_call.1} parent=1 // pred_check_branch
      %122 = sbr.rel (0) target = $region41
    $region40: #{tpu_custom_call.1} parent=1 // pred_region
      %s124 = ssub.s32 32, 32
      %125 = vsyncadd [#allocation18], %s124
      %s127 = sshll.u32 [#allocation17], 4
      %s128 = int_to_ptr.vmem [resolvable:$true] %s127
      %130 = dma.hbm_to_vmem [thread:$0]  %s9, 32, %s128, [#allocation18]
    $region41: #{tpu_custom_call.1} parent=1 // pred_fallthru
      _
    // Predicated region
    $region42: #{tpu_custom_call.1} parent=1 // pred_check
      _
    $region43: #{tpu_custom_call.1} parent=1 // pred_check_branch
      %132 = sbr.rel (0) target = $region45
    $region44: #{tpu_custom_call.1} parent=1 // pred_region
      %s134 = ssub.s32 2048, 2048
      %135 = vsyncadd [#allocation18], %s134
      %s136 = sshll.u32 [#allocation19], 4
      %s137 = int_to_ptr.vmem [resolvable:$true] %s136
      %142 = dma.hbm_to_vmem [thread:$0]  %s10, 2048, %s137, [#allocation18], 64, 64, 4
    $region45: #{tpu_custom_call.1} parent=1 // pred_fallthru
      _
    // Predicated region
    $region46: #{tpu_custom_call.1} parent=1 // pred_check
      _
    $region47: #{tpu_custom_call.1} parent=1 // pred_check_branch
      %144 = sbr.rel (0) target = $region49
    $region48: #{tpu_custom_call.1} parent=1 // pred_region
      %s146 = ssub.s32 16, 16
      %147 = vsyncadd [#allocation21], %s146
      %s149 = sshll.u32 [#allocation20], 4
      %s150 = int_to_ptr.vmem [resolvable:$true] %s149
      %152 = dma.hbm_to_vmem [thread:$0]  %s11, 16, %s150, [#allocation21]
    $region49: #{tpu_custom_call.1} parent=1 // pred_fallthru
      _
    // Predicated region
    $region50: #{tpu_custom_call.1} parent=1 // pred_check
      _
    $region51: #{tpu_custom_call.1} parent=1 // pred_check_branch
      %154 = sbr.rel (0) target = $region53
    $region52: #{tpu_custom_call.1} parent=1 // pred_region
      %155 = dma.done [#allocation3], 384
    $region53: #{tpu_custom_call.1} parent=1 // pred_fallthru
      _
    // Predicated region
    $region54: #{tpu_custom_call.1} parent=1 // pred_check
      _
    $region55: #{tpu_custom_call.1} parent=1 // pred_check_branch
      %157 = sbr.rel (0) target = $region57
    $region56: #{tpu_custom_call.1} parent=1 // pred_region
      %158 = dma.done [#allocation6], 39936
    $region57: #{tpu_custom_call.1} parent=1 // pred_fallthru
      _
    // Predicated region
    $region58: #{tpu_custom_call.1} parent=1 // pred_check
      _
    $region59: #{tpu_custom_call.1} parent=1 // pred_check_branch
      %160 = sbr.rel (0) target = $region61
    $region60: #{tpu_custom_call.1} parent=1 // pred_region
      %161 = dma.done [#allocation6], 208
    $region61: #{tpu_custom_call.1} parent=1 // pred_fallthru
      _
    // Predicated region
    $region62: #{tpu_custom_call.1} parent=1 // pred_check
      _
    $region63: #{tpu_custom_call.1} parent=1 // pred_check_branch
      %163 = sbr.rel (0) target = $region65
    $region64: #{tpu_custom_call.1} parent=1 // pred_region
      %164 = dma.done [#allocation9], 208
    $region65: #{tpu_custom_call.1} parent=1 // pred_fallthru
      _
    // Predicated region
    $region66: #{tpu_custom_call.1} parent=1 // pred_check
      _
    $region67: #{tpu_custom_call.1} parent=1 // pred_check_branch
      %166 = sbr.rel (0) target = $region69
    $region68: #{tpu_custom_call.1} parent=1 // pred_region
      %167 = dma.done [#allocation9], 46592
    $region69: #{tpu_custom_call.1} parent=1 // pred_fallthru
      _
    // Predicated region
    $region70: #{tpu_custom_call.1} parent=1 // pred_check
      _
    $region71: #{tpu_custom_call.1} parent=1 // pred_check_branch
      %169 = sbr.rel (0) target = $region73
    $region72: #{tpu_custom_call.1} parent=1 // pred_region
      %170 = dma.done [#allocation12], 112
    $region73: #{tpu_custom_call.1} parent=1 // pred_fallthru
      _
    // Predicated region
    $region74: #{tpu_custom_call.1} parent=1 // pred_check
      _
    $region75: #{tpu_custom_call.1} parent=1 // pred_check_branch
      %172 = sbr.rel (0) target = $region77
    $region76: #{tpu_custom_call.1} parent=1 // pred_region
      %173 = dma.done [#allocation12], 112
    $region77: #{tpu_custom_call.1} parent=1 // pred_fallthru
      _
    // Predicated region
    $region78: #{tpu_custom_call.1} parent=1 // pred_check
      _
    $region79: #{tpu_custom_call.1} parent=1 // pred_check_branch
      %175 = sbr.rel (0) target = $region81
    $region80: #{tpu_custom_call.1} parent=1 // pred_region
      %176 = dma.done [#allocation15], 7168
    $region81: #{tpu_custom_call.1} parent=1 // pred_fallthru
      _
    // Predicated region
    $region82: #{tpu_custom_call.1} parent=1 // pred_check
      _
    $region83: #{tpu_custom_call.1} parent=1 // pred_check_branch
      %178 = sbr.rel (0) target = $region85
    $region84: #{tpu_custom_call.1} parent=1 // pred_region
      %179 = dma.done [#allocation15], 32
    $region85: #{tpu_custom_call.1} parent=1 // pred_fallthru
      _
    // Predicated region
    $region86: #{tpu_custom_call.1} parent=1 // pred_check
      _
    $region87: #{tpu_custom_call.1} parent=1 // pred_check_branch
      %181 = sbr.rel (0) target = $region89
    $region88: #{tpu_custom_call.1} parent=1 // pred_region
      %182 = dma.done [#allocation18], 32
    $region89: #{tpu_custom_call.1} parent=1 // pred_fallthru
      _
    // Predicated region
    $region90: #{tpu_custom_call.1} parent=1 // pred_check
      _
    $region91: #{tpu_custom_call.1} parent=1 // pred_check_branch
      %184 = sbr.rel (0) target = $region93
    $region92: #{tpu_custom_call.1} parent=1 // pred_region
      %185 = dma.done [#allocation18], 2048
    $region93: #{tpu_custom_call.1} parent=1 // pred_fallthru
      _
    // Predicated region
    $region94: #{tpu_custom_call.1} parent=1 // pred_check
      _
    $region95: #{tpu_custom_call.1} parent=1 // pred_check_branch
      %187 = sbr.rel (0) target = $region97
    $region96: #{tpu_custom_call.1} parent=1 // pred_region
      %188 = dma.done [#allocation21], 16
    $region97: #{tpu_custom_call.1} parent=1 // pred_fallthru
      _
    %v190 = vld [vmem:[#allocation2] sm:$0xff]
    %v191 = vld [vmem:[#allocation2 + $0x8] sm:$0xff]
    %v192 = vld [vmem:[#allocation2 + $0x10] sm:$0xff]
    %v193 = vld [vmem:[#allocation5] sm:$0xff]
    %v194 = vld [vmem:[#allocation5 + $0x8] sm:$0xff]
    %v195 = vld [vmem:[#allocation5 + $0x10] sm:$0xff]
    %v196 = vld [vmem:[#allocation5 + $0x18] sm:$0xff]
    %v197 = vld [vmem:[#allocation5 + $0x20] sm:$0xff]
    %v198 = vld [vmem:[#allocation5 + $0x28] sm:$0xff]
    %v199 = vld [vmem:[#allocation5 + $0x30] sm:$0xff]
    %v200 = vld [vmem:[#allocation5 + $0x38] sm:$0xff]
    %v201 = vld [vmem:[#allocation5 + $0x40] sm:$0xff]
    %v202 = vld [vmem:[#allocation5 + $0x48] sm:$0xff]
    %v203 = vld [vmem:[#allocation5 + $0x50] sm:$0xff]
    %v204 = vld [vmem:[#allocation5 + $0x58] sm:$0xff]
    %v205 = vld [vmem:[#allocation5 + $0x60] sm:$0xff]
    %v206 = vld [vmem:[#allocation5 + $0x68] sm:$0xff]
    %v207 = vld [vmem:[#allocation5 + $0x70] sm:$0xff]
    %v208 = vld [vmem:[#allocation5 + $0x78] sm:$0xff]
    %v209 = vld [vmem:[#allocation5 + $0x80] sm:$0xff]
    %v210 = vld [vmem:[#allocation5 + $0x88] sm:$0xff]
    %v211 = vld [vmem:[#allocation5 + $0x90] sm:$0xff]
    %v212 = vld [vmem:[#allocation5 + $0x98] sm:$0xff]
    %v213 = vld [vmem:[#allocation5 + $0xa0] sm:$0xff]
    %v214 = vld [vmem:[#allocation5 + $0xa8] sm:$0xff]
    %v215 = vld [vmem:[#allocation5 + $0xb0] sm:$0xff]
    %v216 = vld [vmem:[#allocation5 + $0xb8] sm:$0xff]
    %v217 = vld [vmem:[#allocation5 + $0xc0] sm:$0xff]
    %v218 = vld [vmem:[#allocation5 + $0xc8] sm:$0xff]
    %v219 = vld [vmem:[#allocation5 + $0xd0] sm:$0xff]
    %v220 = vld [vmem:[#allocation5 + $0xd8] sm:$0xff]
    %v221 = vld [vmem:[#allocation5 + $0xe0] sm:$0xff]
    %v222 = vld [vmem:[#allocation5 + $0xe8] sm:$0xff]
    %v223 = vld [vmem:[#allocation5 + $0xf0] sm:$0xff]
    %v224 = vld [vmem:[#allocation5 + $0xf8] sm:$0xff]
    %v225 = vld [vmem:[#allocation5 + $0x100] sm:$0xff]
    %v226 = vld [vmem:[#allocation5 + $0x108] sm:$0xff]
    %v227 = vld [vmem:[#allocation5 + $0x110] sm:$0xff]
    %v228 = vld [vmem:[#allocation5 + $0x118] sm:$0xff]
    %v229 = vld [vmem:[#allocation5 + $0x120] sm:$0xff]
    %v230 = vld [vmem:[#allocation5 + $0x128] sm:$0xff]
    %v231 = vld [vmem:[#allocation5 + $0x130] sm:$0xff]
    %v232 = vld [vmem:[#allocation5 + $0x138] sm:$0xff]
    %v233 = vld [vmem:[#allocation5 + $0x140] sm:$0xff]
    %v234 = vld [vmem:[#allocation5 + $0x148] sm:$0xff]
    %v235 = vld [vmem:[#allocation5 + $0x150] sm:$0xff]
    %v236 = vld [vmem:[#allocation5 + $0x158] sm:$0xff]
    %v237 = vld [vmem:[#allocation5 + $0x160] sm:$0xff]
    %v238 = vld [vmem:[#allocation5 + $0x168] sm:$0xff]
    %v239 = vld [vmem:[#allocation5 + $0x170] sm:$0xff]
    %v240 = vld [vmem:[#allocation5 + $0x178] sm:$0xff]
    %v241 = vld [vmem:[#allocation5 + $0x180] sm:$0xff]
    %v242 = vld [vmem:[#allocation5 + $0x188] sm:$0xff]
    %v243 = vld [vmem:[#allocation5 + $0x190] sm:$0xff]
    %v244 = vld [vmem:[#allocation5 + $0x198] sm:$0xff]
    %v245 = vld [vmem:[#allocation5 + $0x1a0] sm:$0xff]
    %v246 = vld [vmem:[#allocation5 + $0x1a8] sm:$0xff]
    %v247 = vld [vmem:[#allocation5 + $0x1b0] sm:$0xff]
    %v248 = vld [vmem:[#allocation5 + $0x1b8] sm:$0xff]
    %v249 = vld [vmem:[#allocation5 + $0x1c0] sm:$0xff]
    %v250 = vld [vmem:[#allocation5 + $0x1c8] sm:$0xff]
    %v251 = vld [vmem:[#allocation5 + $0x1d0] sm:$0xff]
    %v252 = vld [vmem:[#allocation5 + $0x1d8] sm:$0xff]
    %v253 = vld [vmem:[#allocation5 + $0x1e0] sm:$0xff]
    %v254 = vld [vmem:[#allocation5 + $0x1e8] sm:$0xff]
    %v255 = vld [vmem:[#allocation5 + $0x1f0] sm:$0xff]
    %v256 = vld [vmem:[#allocation5 + $0x1f8] sm:$0xff]
    %v257 = vld [vmem:[#allocation5 + $0x200] sm:$0xff]
    %v258 = vld [vmem:[#allocation5 + $0x208] sm:$0xff]
    %v259 = vld [vmem:[#allocation5 + $0x210] sm:$0xff]
    %v260 = vld [vmem:[#allocation5 + $0x218] sm:$0xff]
    %v261 = vld [vmem:[#allocation5 + $0x220] sm:$0xff]
    %v262 = vld [vmem:[#allocation5 + $0x228] sm:$0xff]
    %v263 = vld [vmem:[#allocation5 + $0x230] sm:$0xff]
    %v264 = vld [vmem:[#allocation5 + $0x238] sm:$0xff]
    %v265 = vld [vmem:[#allocation5 + $0x240] sm:$0xff]
    %v266 = vld [vmem:[#allocation5 + $0x248] sm:$0xff]
    %v267 = vld [vmem:[#allocation5 + $0x250] sm:$0xff]
    %v268 = vld [vmem:[#allocation5 + $0x258] sm:$0xff]
    %v269 = vld [vmem:[#allocation5 + $0x260] sm:$0xff]
    %v270 = vld [vmem:[#allocation5 + $0x268] sm:$0xff]
    %v271 = vld [vmem:[#allocation5 + $0x270] sm:$0xff]
    %v272 = vld [vmem:[#allocation5 + $0x278] sm:$0xff]
    %v273 = vld [vmem:[#allocation5 + $0x280] sm:$0xff]
    %v274 = vld [vmem:[#allocation5 + $0x288] sm:$0xff]
    %v275 = vld [vmem:[#allocation5 + $0x290] sm:$0xff]
    %v276 = vld [vmem:[#allocation5 + $0x298] sm:$0xff]
    %v277 = vld [vmem:[#allocation5 + $0x2a0] sm:$0xff]
    %v278 = vld [vmem:[#allocation5 + $0x2a8] sm:$0xff]
    %v279 = vld [vmem:[#allocation5 + $0x2b0] sm:$0xff]
    %v280 = vld [vmem:[#allocation5 + $0x2b8] sm:$0xff]
    %v281 = vld [vmem:[#allocation5 + $0x2c0] sm:$0xff]
    %v282 = vld [vmem:[#allocation5 + $0x2c8] sm:$0xff]
    %v283 = vld [vmem:[#allocation5 + $0x2d0] sm:$0xff]
    %v284 = vld [vmem:[#allocation5 + $0x2d8] sm:$0xff]
    %v285 = vld [vmem:[#allocation5 + $0x2e0] sm:$0xff]
    %v286 = vld [vmem:[#allocation5 + $0x2e8] sm:$0xff]
    %v287 = vld [vmem:[#allocation5 + $0x2f0] sm:$0xff]
    %v288 = vld [vmem:[#allocation5 + $0x2f8] sm:$0xff]
    %v289 = vld [vmem:[#allocation5 + $0x300] sm:$0xff]
    %v290 = vld [vmem:[#allocation5 + $0x308] sm:$0xff]
    %v291 = vld [vmem:[#allocation5 + $0x310] sm:$0xff]
    %v292 = vld [vmem:[#allocation5 + $0x318] sm:$0xff]
    %v293 = vld [vmem:[#allocation5 + $0x320] sm:$0xff]
    %v294 = vld [vmem:[#allocation5 + $0x328] sm:$0xff]
    %v295 = vld [vmem:[#allocation5 + $0x330] sm:$0xff]
    %v296 = vld [vmem:[#allocation5 + $0x338] sm:$0xff]
    %v297 = vld [vmem:[#allocation5 + $0x340] sm:$0xff]
    %v298 = vld [vmem:[#allocation5 + $0x348] sm:$0xff]
    %v299 = vld [vmem:[#allocation5 + $0x350] sm:$0xff]
    %v300 = vld [vmem:[#allocation5 + $0x358] sm:$0xff]
    %v301 = vld [vmem:[#allocation5 + $0x360] sm:$0xff]
    %v302 = vld [vmem:[#allocation5 + $0x368] sm:$0xff]
    %v303 = vld [vmem:[#allocation5 + $0x370] sm:$0xff]
    %v304 = vld [vmem:[#allocation5 + $0x378] sm:$0xff]
    %v305 = vld [vmem:[#allocation5 + $0x380] sm:$0xff]
    %v306 = vld [vmem:[#allocation5 + $0x388] sm:$0xff]
    %v307 = vld [vmem:[#allocation5 + $0x390] sm:$0xff]
    %v308 = vld [vmem:[#allocation5 + $0x398] sm:$0xff]
    %v309 = vld [vmem:[#allocation5 + $0x3a0] sm:$0xff]
    %v310 = vld [vmem:[#allocation5 + $0x3a8] sm:$0xff]
    %v311 = vld [vmem:[#allocation5 + $0x3b0] sm:$0xff]
    %v312 = vld [vmem:[#allocation5 + $0x3b8] sm:$0xff]
    %v313 = vld [vmem:[#allocation5 + $0x3c0] sm:$0xff]
    %v314 = vld [vmem:[#allocation5 + $0x3c8] sm:$0xff]
    %v315 = vld [vmem:[#allocation5 + $0x3d0] sm:$0xff]
    %v316 = vld [vmem:[#allocation5 + $0x3d8] sm:$0xff]
    %v317 = vld [vmem:[#allocation5 + $0x3e0] sm:$0xff]
    %v318 = vld [vmem:[#allocation5 + $0x3e8] sm:$0xff]
    %v319 = vld [vmem:[#allocation5 + $0x3f0] sm:$0xff]
    %v320 = vld [vmem:[#allocation5 + $0x3f8] sm:$0xff]
    %v321 = vld [vmem:[#allocation5 + $0x400] sm:$0xff]
    %v322 = vld [vmem:[#allocation5 + $0x408] sm:$0xff]
    %v323 = vld [vmem:[#allocation5 + $0x410] sm:$0xff]
    %v324 = vld [vmem:[#allocation5 + $0x418] sm:$0xff]
    %v325 = vld [vmem:[#allocation5 + $0x420] sm:$0xff]
    %v326 = vld [vmem:[#allocation5 + $0x428] sm:$0xff]
    %v327 = vld [vmem:[#allocation5 + $0x430] sm:$0xff]
    %v328 = vld [vmem:[#allocation5 + $0x438] sm:$0xff]
    %v329 = vld [vmem:[#allocation5 + $0x440] sm:$0xff]
    %v330 = vld [vmem:[#allocation5 + $0x448] sm:$0xff]
    %v331 = vld [vmem:[#allocation5 + $0x450] sm:$0xff]
    %v332 = vld [vmem:[#allocation5 + $0x458] sm:$0xff]
    %v333 = vld [vmem:[#allocation5 + $0x460] sm:$0xff]
    %v334 = vld [vmem:[#allocation5 + $0x468] sm:$0xff]
    %v335 = vld [vmem:[#allocation5 + $0x470] sm:$0xff]
    %v336 = vld [vmem:[#allocation5 + $0x478] sm:$0xff]
    %v337 = vld [vmem:[#allocation5 + $0x480] sm:$0xff]
    %v338 = vld [vmem:[#allocation5 + $0x488] sm:$0xff]
    %v339 = vld [vmem:[#allocation5 + $0x490] sm:$0xff]
    %v340 = vld [vmem:[#allocation5 + $0x498] sm:$0xff]
    %v341 = vld [vmem:[#allocation5 + $0x4a0] sm:$0xff]
    %v342 = vld [vmem:[#allocation5 + $0x4a8] sm:$0xff]
    %v343 = vld [vmem:[#allocation5 + $0x4b0] sm:$0xff]
    %v344 = vld [vmem:[#allocation5 + $0x4b8] sm:$0xff]
    %v345 = vld [vmem:[#allocation5 + $0x4c0] sm:$0xff]
    %v346 = vld [vmem:[#allocation5 + $0x4c8] sm:$0xff]
    %v347 = vld [vmem:[#allocation5 + $0x4d0] sm:$0xff]
    %v348 = vld [vmem:[#allocation5 + $0x4d8] sm:$0xff]
    %v349 = vld [vmem:[#allocation5 + $0x4e0] sm:$0xff]
    %v350 = vld [vmem:[#allocation5 + $0x4e8] sm:$0xff]
    %v351 = vld [vmem:[#allocation5 + $0x4f0] sm:$0xff]
    %v352 = vld [vmem:[#allocation5 + $0x4f8] sm:$0xff]
    %v353 = vld [vmem:[#allocation5 + $0x500] sm:$0xff]
    %v354 = vld [vmem:[#allocation5 + $0x508] sm:$0xff]
    %v355 = vld [vmem:[#allocation5 + $0x510] sm:$0xff]
    %v356 = vld [vmem:[#allocation5 + $0x518] sm:$0xff]
    %v357 = vld [vmem:[#allocation5 + $0x520] sm:$0xff]
    %v358 = vld [vmem:[#allocation5 + $0x528] sm:$0xff]
    %v359 = vld [vmem:[#allocation5 + $0x530] sm:$0xff]
    %v360 = vld [vmem:[#allocation5 + $0x538] sm:$0xff]
    %v361 = vld [vmem:[#allocation5 + $0x540] sm:$0xff]
    %v362 = vld [vmem:[#allocation5 + $0x548] sm:$0xff]
    %v363 = vld [vmem:[#allocation5 + $0x550] sm:$0xff]
    %v364 = vld [vmem:[#allocation5 + $0x558] sm:$0xff]
    %v365 = vld [vmem:[#allocation5 + $0x560] sm:$0xff]
    %v366 = vld [vmem:[#allocation5 + $0x568] sm:$0xff]
    %v367 = vld [vmem:[#allocation5 + $0x570] sm:$0xff]
    %v368 = vld [vmem:[#allocation5 + $0x578] sm:$0xff]
    %v369 = vld [vmem:[#allocation5 + $0x580] sm:$0xff]
    %v370 = vld [vmem:[#allocation5 + $0x588] sm:$0xff]
    %v371 = vld [vmem:[#allocation5 + $0x590] sm:$0xff]
    %v372 = vld [vmem:[#allocation5 + $0x598] sm:$0xff]
    %v373 = vld [vmem:[#allocation5 + $0x5a0] sm:$0xff]
    %v374 = vld [vmem:[#allocation5 + $0x5a8] sm:$0xff]
    %v375 = vld [vmem:[#allocation5 + $0x5b0] sm:$0xff]
    %v376 = vld [vmem:[#allocation5 + $0x5b8] sm:$0xff]
    %v377 = vld [vmem:[#allocation5 + $0x5c0] sm:$0xff]
    %v378 = vld [vmem:[#allocation5 + $0x5c8] sm:$0xff]
    %v379 = vld [vmem:[#allocation5 + $0x5d0] sm:$0xff]
    %v380 = vld [vmem:[#allocation5 + $0x5d8] sm:$0xff]
    %v381 = vld [vmem:[#allocation5 + $0x5e0] sm:$0xff]
    %v382 = vld [vmem:[#allocation5 + $0x5e8] sm:$0xff]
    %v383 = vld [vmem:[#allocation5 + $0x5f0] sm:$0xff]
    %v384 = vld [vmem:[#allocation5 + $0x5f8] sm:$0xff]
    %v385 = vld [vmem:[#allocation5 + $0x600] sm:$0xff]
    %v386 = vld [vmem:[#allocation5 + $0x608] sm:$0xff]
    %v387 = vld [vmem:[#allocation5 + $0x610] sm:$0xff]
    %v388 = vld [vmem:[#allocation5 + $0x618] sm:$0xff]
    %v389 = vld [vmem:[#allocation5 + $0x620] sm:$0xff]
    %v390 = vld [vmem:[#allocation5 + $0x628] sm:$0xff]
    %v391 = vld [vmem:[#allocation5 + $0x630] sm:$0xff]
    %v392 = vld [vmem:[#allocation5 + $0x638] sm:$0xff]
    %v393 = vld [vmem:[#allocation5 + $0x640] sm:$0xff]
    %v394 = vld [vmem:[#allocation5 + $0x648] sm:$0xff]
    %v395 = vld [vmem:[#allocation5 + $0x650] sm:$0xff]
    %v396 = vld [vmem:[#allocation5 + $0x658] sm:$0xff]
    %v397 = vld [vmem:[#allocation5 + $0x660] sm:$0xff]
    %v398 = vld [vmem:[#allocation5 + $0x668] sm:$0xff]
    %v399 = vld [vmem:[#allocation5 + $0x670] sm:$0xff]
    %v400 = vld [vmem:[#allocation5 + $0x678] sm:$0xff]
    %v401 = vld [vmem:[#allocation5 + $0x680] sm:$0xff]
    %v402 = vld [vmem:[#allocation5 + $0x688] sm:$0xff]
    %v403 = vld [vmem:[#allocation5 + $0x690] sm:$0xff]
    %v404 = vld [vmem:[#allocation5 + $0x698] sm:$0xff]
    %v405 = vld [vmem:[#allocation5 + $0x6a0] sm:$0xff]
    %v406 = vld [vmem:[#allocation5 + $0x6a8] sm:$0xff]
    %v407 = vld [vmem:[#allocation5 + $0x6b0] sm:$0xff]
    %v408 = vld [vmem:[#allocation5 + $0x6b8] sm:$0xff]
    %v409 = vld [vmem:[#allocation5 + $0x6c0] sm:$0xff]
    %v410 = vld [vmem:[#allocation5 + $0x6c8] sm:$0xff]
    %v411 = vld [vmem:[#allocation5 + $0x6d0] sm:$0xff]
    %v412 = vld [vmem:[#allocation5 + $0x6d8] sm:$0xff]
    %v413 = vld [vmem:[#allocation5 + $0x6e0] sm:$0xff]
    %v414 = vld [vmem:[#allocation5 + $0x6e8] sm:$0xff]
    %v415 = vld [vmem:[#allocation5 + $0x6f0] sm:$0xff]
    %v416 = vld [vmem:[#allocation5 + $0x6f8] sm:$0xff]
    %v417 = vld [vmem:[#allocation5 + $0x700] sm:$0xff]
    %v418 = vld [vmem:[#allocation5 + $0x708] sm:$0xff]
    %v419 = vld [vmem:[#allocation5 + $0x710] sm:$0xff]
    %v420 = vld [vmem:[#allocation5 + $0x718] sm:$0xff]
    %v421 = vld [vmem:[#allocation5 + $0x720] sm:$0xff]
    %v422 = vld [vmem:[#allocation5 + $0x728] sm:$0xff]
    %v423 = vld [vmem:[#allocation5 + $0x730] sm:$0xff]
    %v424 = vld [vmem:[#allocation5 + $0x738] sm:$0xff]
    %v425 = vld [vmem:[#allocation5 + $0x740] sm:$0xff]
    %v426 = vld [vmem:[#allocation5 + $0x748] sm:$0xff]
    %v427 = vld [vmem:[#allocation5 + $0x750] sm:$0xff]
    %v428 = vld [vmem:[#allocation5 + $0x758] sm:$0xff]
    %v429 = vld [vmem:[#allocation5 + $0x760] sm:$0xff]
    %v430 = vld [vmem:[#allocation5 + $0x768] sm:$0xff]
    %v431 = vld [vmem:[#allocation5 + $0x770] sm:$0xff]
    %v432 = vld [vmem:[#allocation5 + $0x778] sm:$0xff]
    %v433 = vld [vmem:[#allocation5 + $0x780] sm:$0xff]
    %v434 = vld [vmem:[#allocation5 + $0x788] sm:$0xff]
    %v435 = vld [vmem:[#allocation5 + $0x790] sm:$0xff]
    %v436 = vld [vmem:[#allocation5 + $0x798] sm:$0xff]
    %v437 = vld [vmem:[#allocation5 + $0x7a0] sm:$0xff]
    %v438 = vld [vmem:[#allocation5 + $0x7a8] sm:$0xff]
    %v439 = vld [vmem:[#allocation5 + $0x7b0] sm:$0xff]
    %v440 = vld [vmem:[#allocation5 + $0x7b8] sm:$0xff]
    %v441 = vld [vmem:[#allocation5 + $0x7c0] sm:$0xff]
    %v442 = vld [vmem:[#allocation5 + $0x7c8] sm:$0xff]
    %v443 = vld [vmem:[#allocation5 + $0x7d0] sm:$0xff]
    %v444 = vld [vmem:[#allocation5 + $0x7d8] sm:$0xff]
    %v445 = vld [vmem:[#allocation5 + $0x7e0] sm:$0xff]
    %v446 = vld [vmem:[#allocation5 + $0x7e8] sm:$0xff]
    %v447 = vld [vmem:[#allocation5 + $0x7f0] sm:$0xff]
    %v448 = vld [vmem:[#allocation5 + $0x7f8] sm:$0xff]
    %v449 = vld [vmem:[#allocation5 + $0x800] sm:$0xff]
    %v450 = vld [vmem:[#allocation5 + $0x808] sm:$0xff]
    %v451 = vld [vmem:[#allocation5 + $0x810] sm:$0xff]
    %v452 = vld [vmem:[#allocation5 + $0x818] sm:$0xff]
    %v453 = vld [vmem:[#allocation5 + $0x820] sm:$0xff]
    %v454 = vld [vmem:[#allocation5 + $0x828] sm:$0xff]
    %v455 = vld [vmem:[#allocation5 + $0x830] sm:$0xff]
    %v456 = vld [vmem:[#allocation5 + $0x838] sm:$0xff]
    %v457 = vld [vmem:[#allocation5 + $0x840] sm:$0xff]
    %v458 = vld [vmem:[#allocation5 + $0x848] sm:$0xff]
    %v459 = vld [vmem:[#allocation5 + $0x850] sm:$0xff]
    %v460 = vld [vmem:[#allocation5 + $0x858] sm:$0xff]
    %v461 = vld [vmem:[#allocation5 + $0x860] sm:$0xff]
    %v462 = vld [vmem:[#allocation5 + $0x868] sm:$0xff]
    %v463 = vld [vmem:[#allocation5 + $0x870] sm:$0xff]
    %v464 = vld [vmem:[#allocation5 + $0x878] sm:$0xff]
    %v465 = vld [vmem:[#allocation5 + $0x880] sm:$0xff]
    %v466 = vld [vmem:[#allocation5 + $0x888] sm:$0xff]
    %v467 = vld [vmem:[#allocation5 + $0x890] sm:$0xff]
    %v468 = vld [vmem:[#allocation5 + $0x898] sm:$0xff]
    %v469 = vld [vmem:[#allocation5 + $0x8a0] sm:$0xff]
    %v470 = vld [vmem:[#allocation5 + $0x8a8] sm:$0xff]
    %v471 = vld [vmem:[#allocation5 + $0x8b0] sm:$0xff]
    %v472 = vld [vmem:[#allocation5 + $0x8b8] sm:$0xff]
    %v473 = vld [vmem:[#allocation5 + $0x8c0] sm:$0xff]
    %v474 = vld [vmem:[#allocation5 + $0x8c8] sm:$0xff]
    %v475 = vld [vmem:[#allocation5 + $0x8d0] sm:$0xff]
    %v476 = vld [vmem:[#allocation5 + $0x8d8] sm:$0xff]
    %v477 = vld [vmem:[#allocation5 + $0x8e0] sm:$0xff]
    %v478 = vld [vmem:[#allocation5 + $0x8e8] sm:$0xff]
    %v479 = vld [vmem:[#allocation5 + $0x8f0] sm:$0xff]
    %v480 = vld [vmem:[#allocation5 + $0x8f8] sm:$0xff]
    %v481 = vld [vmem:[#allocation5 + $0x900] sm:$0xff]
    %v482 = vld [vmem:[#allocation5 + $0x908] sm:$0xff]
    %v483 = vld [vmem:[#allocation5 + $0x910] sm:$0xff]
    %v484 = vld [vmem:[#allocation5 + $0x918] sm:$0xff]
    %v485 = vld [vmem:[#allocation5 + $0x920] sm:$0xff]
    %v486 = vld [vmem:[#allocation5 + $0x928] sm:$0xff]
    %v487 = vld [vmem:[#allocation5 + $0x930] sm:$0xff]
    %v488 = vld [vmem:[#allocation5 + $0x938] sm:$0xff]
    %v489 = vld [vmem:[#allocation5 + $0x940] sm:$0xff]
    %v490 = vld [vmem:[#allocation5 + $0x948] sm:$0xff]
    %v491 = vld [vmem:[#allocation5 + $0x950] sm:$0xff]
    %v492 = vld [vmem:[#allocation5 + $0x958] sm:$0xff]
    %v493 = vld [vmem:[#allocation5 + $0x960] sm:$0xff]
    %v494 = vld [vmem:[#allocation5 + $0x968] sm:$0xff]
    %v495 = vld [vmem:[#allocation5 + $0x970] sm:$0xff]
    %v496 = vld [vmem:[#allocation5 + $0x978] sm:$0xff]
    %v497 = vld [vmem:[#allocation5 + $0x980] sm:$0xff]
    %v498 = vld [vmem:[#allocation5 + $0x988] sm:$0xff]
    %v499 = vld [vmem:[#allocation5 + $0x990] sm:$0xff]
    %v500 = vld [vmem:[#allocation5 + $0x998] sm:$0xff]
    %v501 = vld [vmem:[#allocation5 + $0x9a0] sm:$0xff]
    %v502 = vld [vmem:[#allocation5 + $0x9a8] sm:$0xff]
    %v503 = vld [vmem:[#allocation5 + $0x9b0] sm:$0xff]
    %v504 = vld [vmem:[#allocation5 + $0x9b8] sm:$0xff]
    %v505 = vunpack.c.l.s8.bf16 %v193
    %v506 = vunpack.c.l.s8.bf16 %v194
    %v507 = vunpack.c.l.s8.bf16 %v195
    %v508 = vunpack.c.l.s8.bf16 %v196
    %v509 = vunpack.c.l.s8.bf16 %v197
    %v510 = vunpack.c.l.s8.bf16 %v198
    %v511 = vunpack.c.l.s8.bf16 %v199
    %v512 = vunpack.c.l.s8.bf16 %v200
    %v513 = vunpack.c.l.s8.bf16 %v201
    %v514 = vunpack.c.l.s8.bf16 %v202
    %v515 = vunpack.c.l.s8.bf16 %v203
    %v516 = vunpack.c.l.s8.bf16 %v204
    %v517 = vunpack.c.l.s8.bf16 %v205
    %v518 = vunpack.c.h.s8.bf16 %v193
    %v519 = vunpack.c.h.s8.bf16 %v194
    %v520 = vunpack.c.h.s8.bf16 %v195
    %v521 = vunpack.c.h.s8.bf16 %v196
    %v522 = vunpack.c.h.s8.bf16 %v197
    %v523 = vunpack.c.h.s8.bf16 %v198
    %v524 = vunpack.c.h.s8.bf16 %v199
    %v525 = vunpack.c.h.s8.bf16 %v200
    %v526 = vunpack.c.h.s8.bf16 %v201
    %v527 = vunpack.c.h.s8.bf16 %v202
    %v528 = vunpack.c.h.s8.bf16 %v203
    %v529 = vunpack.c.h.s8.bf16 %v204
    %v530 = vunpack.c.h.s8.bf16 %v205
    %v531 = vunpack.c.l.s8.bf16 %v206
    %v532 = vunpack.c.l.s8.bf16 %v207
    %v533 = vunpack.c.l.s8.bf16 %v208
    %v534 = vunpack.c.l.s8.bf16 %v209
    %v535 = vunpack.c.l.s8.bf16 %v210
    %v536 = vunpack.c.l.s8.bf16 %v211
    %v537 = vunpack.c.l.s8.bf16 %v212
    %v538 = vunpack.c.l.s8.bf16 %v213
    %v539 = vunpack.c.l.s8.bf16 %v214
    %v540 = vunpack.c.l.s8.bf16 %v215
    %v541 = vunpack.c.l.s8.bf16 %v216
    %v542 = vunpack.c.l.s8.bf16 %v217
    %v543 = vunpack.c.l.s8.bf16 %v218
    %v544 = vunpack.c.h.s8.bf16 %v206
    %v545 = vunpack.c.h.s8.bf16 %v207
    %v546 = vunpack.c.h.s8.bf16 %v208
    %v547 = vunpack.c.h.s8.bf16 %v209
    %v548 = vunpack.c.h.s8.bf16 %v210
    %v549 = vunpack.c.h.s8.bf16 %v211
    %v550 = vunpack.c.h.s8.bf16 %v212
    %v551 = vunpack.c.h.s8.bf16 %v213
    %v552 = vunpack.c.h.s8.bf16 %v214
    %v553 = vunpack.c.h.s8.bf16 %v215
    %v554 = vunpack.c.h.s8.bf16 %v216
    %v555 = vunpack.c.h.s8.bf16 %v217
    %v556 = vunpack.c.h.s8.bf16 %v218
    %v557 = vunpack.c.l.s8.bf16 %v219
    %v558 = vunpack.c.l.s8.bf16 %v220
    %v559 = vunpack.c.l.s8.bf16 %v221
    %v560 = vunpack.c.l.s8.bf16 %v222
    %v561 = vunpack.c.l.s8.bf16 %v223
    %v562 = vunpack.c.l.s8.bf16 %v224
    %v563 = vunpack.c.l.s8.bf16 %v225
    %v564 = vunpack.c.l.s8.bf16 %v226
    %v565 = vunpack.c.l.s8.bf16 %v227
    %v566 = vunpack.c.l.s8.bf16 %v228
    %v567 = vunpack.c.l.s8.bf16 %v229
    %v568 = vunpack.c.l.s8.bf16 %v230
    %v569 = vunpack.c.l.s8.bf16 %v231
    %v570 = vunpack.c.h.s8.bf16 %v219
    %v571 = vunpack.c.h.s8.bf16 %v220
    %v572 = vunpack.c.h.s8.bf16 %v221
    %v573 = vunpack.c.h.s8.bf16 %v222
    %v574 = vunpack.c.h.s8.bf16 %v223
    %v575 = vunpack.c.h.s8.bf16 %v224
    %v576 = vunpack.c.h.s8.bf16 %v225
    %v577 = vunpack.c.h.s8.bf16 %v226
    %v578 = vunpack.c.h.s8.bf16 %v227
    %v579 = vunpack.c.h.s8.bf16 %v228
    %v580 = vunpack.c.h.s8.bf16 %v229
    %v581 = vunpack.c.h.s8.bf16 %v230
    %v582 = vunpack.c.h.s8.bf16 %v231
    %v583 = vunpack.c.l.s8.bf16 %v232
    %v584 = vunpack.c.l.s8.bf16 %v233
    %v585 = vunpack.c.l.s8.bf16 %v234
    %v586 = vunpack.c.l.s8.bf16 %v235
    %v587 = vunpack.c.l.s8.bf16 %v236
    %v588 = vunpack.c.l.s8.bf16 %v237
    %v589 = vunpack.c.l.s8.bf16 %v238
    %v590 = vunpack.c.l.s8.bf16 %v239
    %v591 = vunpack.c.l.s8.bf16 %v240
    %v592 = vunpack.c.l.s8.bf16 %v241
    %v593 = vunpack.c.l.s8.bf16 %v242
    %v594 = vunpack.c.l.s8.bf16 %v243
    %v595 = vunpack.c.l.s8.bf16 %v244
    %v596 = vunpack.c.h.s8.bf16 %v232
    %v597 = vunpack.c.h.s8.bf16 %v233
    %v598 = vunpack.c.h.s8.bf16 %v234
    %v599 = vunpack.c.h.s8.bf16 %v235
    %v600 = vunpack.c.h.s8.bf16 %v236
    %v601 = vunpack.c.h.s8.bf16 %v237
    %v602 = vunpack.c.h.s8.bf16 %v238
    %v603 = vunpack.c.h.s8.bf16 %v239
    %v604 = vunpack.c.h.s8.bf16 %v240
    %v605 = vunpack.c.h.s8.bf16 %v241
    %v606 = vunpack.c.h.s8.bf16 %v242
    %v607 = vunpack.c.h.s8.bf16 %v243
    %v608 = vunpack.c.h.s8.bf16 %v244
    %v609 = vunpack.c.l.s8.bf16 %v245
    %v610 = vunpack.c.l.s8.bf16 %v246
    %v611 = vunpack.c.l.s8.bf16 %v247
    %v612 = vunpack.c.l.s8.bf16 %v248
    %v613 = vunpack.c.l.s8.bf16 %v249
    %v614 = vunpack.c.l.s8.bf16 %v250
    %v615 = vunpack.c.l.s8.bf16 %v251
    %v616 = vunpack.c.l.s8.bf16 %v252
    %v617 = vunpack.c.l.s8.bf16 %v253
    %v618 = vunpack.c.l.s8.bf16 %v254
    %v619 = vunpack.c.l.s8.bf16 %v255
    %v620 = vunpack.c.l.s8.bf16 %v256
    %v621 = vunpack.c.l.s8.bf16 %v257
    %v622 = vunpack.c.h.s8.bf16 %v245
    %v623 = vunpack.c.h.s8.bf16 %v246
    %v624 = vunpack.c.h.s8.bf16 %v247
    %v625 = vunpack.c.h.s8.bf16 %v248
    %v626 = vunpack.c.h.s8.bf16 %v249
    %v627 = vunpack.c.h.s8.bf16 %v250
    %v628 = vunpack.c.h.s8.bf16 %v251
    %v629 = vunpack.c.h.s8.bf16 %v252
    %v630 = vunpack.c.h.s8.bf16 %v253
    %v631 = vunpack.c.h.s8.bf16 %v254
    %v632 = vunpack.c.h.s8.bf16 %v255
    %v633 = vunpack.c.h.s8.bf16 %v256
    %v634 = vunpack.c.h.s8.bf16 %v257
    %v635 = vunpack.c.l.s8.bf16 %v258
    %v636 = vunpack.c.l.s8.bf16 %v259
    %v637 = vunpack.c.l.s8.bf16 %v260
    %v638 = vunpack.c.l.s8.bf16 %v261
    %v639 = vunpack.c.l.s8.bf16 %v262
    %v640 = vunpack.c.l.s8.bf16 %v263
    %v641 = vunpack.c.l.s8.bf16 %v264
    %v642 = vunpack.c.l.s8.bf16 %v265
    %v643 = vunpack.c.l.s8.bf16 %v266
    %v644 = vunpack.c.l.s8.bf16 %v267
    %v645 = vunpack.c.l.s8.bf16 %v268
    %v646 = vunpack.c.l.s8.bf16 %v269
    %v647 = vunpack.c.l.s8.bf16 %v270
    %v648 = vunpack.c.h.s8.bf16 %v258
    %v649 = vunpack.c.h.s8.bf16 %v259
    %v650 = vunpack.c.h.s8.bf16 %v260
    %v651 = vunpack.c.h.s8.bf16 %v261
    %v652 = vunpack.c.h.s8.bf16 %v262
    %v653 = vunpack.c.h.s8.bf16 %v263
    %v654 = vunpack.c.h.s8.bf16 %v264
    %v655 = vunpack.c.h.s8.bf16 %v265
    %v656 = vunpack.c.h.s8.bf16 %v266
    %v657 = vunpack.c.h.s8.bf16 %v267
    %v658 = vunpack.c.h.s8.bf16 %v268
    %v659 = vunpack.c.h.s8.bf16 %v269
    %v660 = vunpack.c.h.s8.bf16 %v270
    %v661 = vunpack.c.l.s8.bf16 %v271
    %v662 = vunpack.c.l.s8.bf16 %v272
    %v663 = vunpack.c.l.s8.bf16 %v273
    %v664 = vunpack.c.l.s8.bf16 %v274
    %v665 = vunpack.c.l.s8.bf16 %v275
    %v666 = vunpack.c.l.s8.bf16 %v276
    %v667 = vunpack.c.l.s8.bf16 %v277
    %v668 = vunpack.c.l.s8.bf16 %v278
    %v669 = vunpack.c.l.s8.bf16 %v279
    %v670 = vunpack.c.l.s8.bf16 %v280
    %v671 = vunpack.c.l.s8.bf16 %v281
    %v672 = vunpack.c.l.s8.bf16 %v282
    %v673 = vunpack.c.l.s8.bf16 %v283
    %v674 = vunpack.c.h.s8.bf16 %v271
    %v675 = vunpack.c.h.s8.bf16 %v272
    %v676 = vunpack.c.h.s8.bf16 %v273
    %v677 = vunpack.c.h.s8.bf16 %v274
    %v678 = vunpack.c.h.s8.bf16 %v275
    %v679 = vunpack.c.h.s8.bf16 %v276
    %v680 = vunpack.c.h.s8.bf16 %v277
    %v681 = vunpack.c.h.s8.bf16 %v278
    %v682 = vunpack.c.h.s8.bf16 %v279
    %v683 = vunpack.c.h.s8.bf16 %v280
    %v684 = vunpack.c.h.s8.bf16 %v281
    %v685 = vunpack.c.h.s8.bf16 %v282
    %v686 = vunpack.c.h.s8.bf16 %v283
    %v687 = vunpack.c.l.s8.bf16 %v284
    %v688 = vunpack.c.l.s8.bf16 %v285
    %v689 = vunpack.c.l.s8.bf16 %v286
    %v690 = vunpack.c.l.s8.bf16 %v287
    %v691 = vunpack.c.l.s8.bf16 %v288
    %v692 = vunpack.c.l.s8.bf16 %v289
    %v693 = vunpack.c.l.s8.bf16 %v290
    %v694 = vunpack.c.l.s8.bf16 %v291
    %v695 = vunpack.c.l.s8.bf16 %v292
    %v696 = vunpack.c.l.s8.bf16 %v293
    %v697 = vunpack.c.l.s8.bf16 %v294
    %v698 = vunpack.c.l.s8.bf16 %v295
    %v699 = vunpack.c.l.s8.bf16 %v296
    %v700 = vunpack.c.h.s8.bf16 %v284
    %v701 = vunpack.c.h.s8.bf16 %v285
    %v702 = vunpack.c.h.s8.bf16 %v286
    %v703 = vunpack.c.h.s8.bf16 %v287
    %v704 = vunpack.c.h.s8.bf16 %v288
    %v705 = vunpack.c.h.s8.bf16 %v289
    %v706 = vunpack.c.h.s8.bf16 %v290
    %v707 = vunpack.c.h.s8.bf16 %v291
    %v708 = vunpack.c.h.s8.bf16 %v292
    %v709 = vunpack.c.h.s8.bf16 %v293
    %v710 = vunpack.c.h.s8.bf16 %v294
    %v711 = vunpack.c.h.s8.bf16 %v295
    %v712 = vunpack.c.h.s8.bf16 %v296
    %v713 = vunpack.c.l.s8.bf16 %v297
    %v714 = vunpack.c.l.s8.bf16 %v298
    %v715 = vunpack.c.l.s8.bf16 %v299
    %v716 = vunpack.c.l.s8.bf16 %v300
    %v717 = vunpack.c.l.s8.bf16 %v301
    %v718 = vunpack.c.l.s8.bf16 %v302
    %v719 = vunpack.c.l.s8.bf16 %v303
    %v720 = vunpack.c.l.s8.bf16 %v304
    %v721 = vunpack.c.l.s8.bf16 %v305
    %v722 = vunpack.c.l.s8.bf16 %v306
    %v723 = vunpack.c.l.s8.bf16 %v307
    %v724 = vunpack.c.l.s8.bf16 %v308
    %v725 = vunpack.c.l.s8.bf16 %v309
    %v726 = vunpack.c.h.s8.bf16 %v297
    %v727 = vunpack.c.h.s8.bf16 %v298
    %v728 = vunpack.c.h.s8.bf16 %v299
    %v729 = vunpack.c.h.s8.bf16 %v300
    %v730 = vunpack.c.h.s8.bf16 %v301
    %v731 = vunpack.c.h.s8.bf16 %v302
    %v732 = vunpack.c.h.s8.bf16 %v303
    %v733 = vunpack.c.h.s8.bf16 %v304
    %v734 = vunpack.c.h.s8.bf16 %v305
    %v735 = vunpack.c.h.s8.bf16 %v306
    %v736 = vunpack.c.h.s8.bf16 %v307
    %v737 = vunpack.c.h.s8.bf16 %v308
    %v738 = vunpack.c.h.s8.bf16 %v309
    %v739 = vunpack.c.l.s8.bf16 %v310
    %v740 = vunpack.c.l.s8.bf16 %v311
    %v741 = vunpack.c.l.s8.bf16 %v312
    %v742 = vunpack.c.l.s8.bf16 %v313
    %v743 = vunpack.c.l.s8.bf16 %v314
    %v744 = vunpack.c.l.s8.bf16 %v315
    %v745 = vunpack.c.l.s8.bf16 %v316
    %v746 = vunpack.c.l.s8.bf16 %v317
    %v747 = vunpack.c.l.s8.bf16 %v318
    %v748 = vunpack.c.l.s8.bf16 %v319
    %v749 = vunpack.c.l.s8.bf16 %v320
    %v750 = vunpack.c.l.s8.bf16 %v321
    %v751 = vunpack.c.l.s8.bf16 %v322
    %v752 = vunpack.c.h.s8.bf16 %v310
    %v753 = vunpack.c.h.s8.bf16 %v311
    %v754 = vunpack.c.h.s8.bf16 %v312
    %v755 = vunpack.c.h.s8.bf16 %v313
    %v756 = vunpack.c.h.s8.bf16 %v314
    %v757 = vunpack.c.h.s8.bf16 %v315
    %v758 = vunpack.c.h.s8.bf16 %v316
    %v759 = vunpack.c.h.s8.bf16 %v317
    %v760 = vunpack.c.h.s8.bf16 %v318
    %v761 = vunpack.c.h.s8.bf16 %v319
    %v762 = vunpack.c.h.s8.bf16 %v320
    %v763 = vunpack.c.h.s8.bf16 %v321
    %v764 = vunpack.c.h.s8.bf16 %v322
    %v765 = vunpack.c.l.s8.bf16 %v323
    %v766 = vunpack.c.l.s8.bf16 %v324
    %v767 = vunpack.c.l.s8.bf16 %v325
    %v768 = vunpack.c.l.s8.bf16 %v326
    %v769 = vunpack.c.l.s8.bf16 %v327
    %v770 = vunpack.c.l.s8.bf16 %v328
    %v771 = vunpack.c.l.s8.bf16 %v329
    %v772 = vunpack.c.l.s8.bf16 %v330
    %v773 = vunpack.c.l.s8.bf16 %v331
    %v774 = vunpack.c.l.s8.bf16 %v332
    %v775 = vunpack.c.l.s8.bf16 %v333
    %v776 = vunpack.c.l.s8.bf16 %v334
    %v777 = vunpack.c.l.s8.bf16 %v335
    %v778 = vunpack.c.h.s8.bf16 %v323
    %v779 = vunpack.c.h.s8.bf16 %v324
    %v780 = vunpack.c.h.s8.bf16 %v325
    %v781 = vunpack.c.h.s8.bf16 %v326
    %v782 = vunpack.c.h.s8.bf16 %v327
    %v783 = vunpack.c.h.s8.bf16 %v328
    %v784 = vunpack.c.h.s8.bf16 %v329
    %v785 = vunpack.c.h.s8.bf16 %v330
    %v786 = vunpack.c.h.s8.bf16 %v331
    %v787 = vunpack.c.h.s8.bf16 %v332
    %v788 = vunpack.c.h.s8.bf16 %v333
    %v789 = vunpack.c.h.s8.bf16 %v334
    %v790 = vunpack.c.h.s8.bf16 %v335
    %v791 = vunpack.c.l.s8.bf16 %v336
    %v792 = vunpack.c.l.s8.bf16 %v337
    %v793 = vunpack.c.l.s8.bf16 %v338
    %v794 = vunpack.c.l.s8.bf16 %v339
    %v795 = vunpack.c.l.s8.bf16 %v340
    %v796 = vunpack.c.l.s8.bf16 %v341
    %v797 = vunpack.c.l.s8.bf16 %v342
    %v798 = vunpack.c.l.s8.bf16 %v343
    %v799 = vunpack.c.l.s8.bf16 %v344
    %v800 = vunpack.c.l.s8.bf16 %v345
    %v801 = vunpack.c.l.s8.bf16 %v346
    %v802 = vunpack.c.l.s8.bf16 %v347
    %v803 = vunpack.c.l.s8.bf16 %v348
    %v804 = vunpack.c.h.s8.bf16 %v336
    %v805 = vunpack.c.h.s8.bf16 %v337
    %v806 = vunpack.c.h.s8.bf16 %v338
    %v807 = vunpack.c.h.s8.bf16 %v339
    %v808 = vunpack.c.h.s8.bf16 %v340
    %v809 = vunpack.c.h.s8.bf16 %v341
    %v810 = vunpack.c.h.s8.bf16 %v342
    %v811 = vunpack.c.h.s8.bf16 %v343
    %v812 = vunpack.c.h.s8.bf16 %v344
    %v813 = vunpack.c.h.s8.bf16 %v345
    %v814 = vunpack.c.h.s8.bf16 %v346
    %v815 = vunpack.c.h.s8.bf16 %v347
    %v816 = vunpack.c.h.s8.bf16 %v348
    %v817 = vunpack.c.l.s8.bf16 %v349
    %v818 = vunpack.c.l.s8.bf16 %v350
    %v819 = vunpack.c.l.s8.bf16 %v351
    %v820 = vunpack.c.l.s8.bf16 %v352
    %v821 = vunpack.c.l.s8.bf16 %v353
    %v822 = vunpack.c.l.s8.bf16 %v354
    %v823 = vunpack.c.l.s8.bf16 %v355
    %v824 = vunpack.c.l.s8.bf16 %v356
    %v825 = vunpack.c.l.s8.bf16 %v357
    %v826 = vunpack.c.l.s8.bf16 %v358
    %v827 = vunpack.c.l.s8.bf16 %v359
    %v828 = vunpack.c.l.s8.bf16 %v360
    %v829 = vunpack.c.l.s8.bf16 %v361
    %v830 = vunpack.c.h.s8.bf16 %v349
    %v831 = vunpack.c.h.s8.bf16 %v350
    %v832 = vunpack.c.h.s8.bf16 %v351
    %v833 = vunpack.c.h.s8.bf16 %v352
    %v834 = vunpack.c.h.s8.bf16 %v353
    %v835 = vunpack.c.h.s8.bf16 %v354
    %v836 = vunpack.c.h.s8.bf16 %v355
    %v837 = vunpack.c.h.s8.bf16 %v356
    %v838 = vunpack.c.h.s8.bf16 %v357
    %v839 = vunpack.c.h.s8.bf16 %v358
    %v840 = vunpack.c.h.s8.bf16 %v359
    %v841 = vunpack.c.h.s8.bf16 %v360
    %v842 = vunpack.c.h.s8.bf16 %v361
    %v843 = vunpack.c.l.s8.bf16 %v362
    %v844 = vunpack.c.l.s8.bf16 %v363
    %v845 = vunpack.c.l.s8.bf16 %v364
    %v846 = vunpack.c.l.s8.bf16 %v365
    %v847 = vunpack.c.l.s8.bf16 %v366
    %v848 = vunpack.c.l.s8.bf16 %v367
    %v849 = vunpack.c.l.s8.bf16 %v368
    %v850 = vunpack.c.l.s8.bf16 %v369
    %v851 = vunpack.c.l.s8.bf16 %v370
    %v852 = vunpack.c.l.s8.bf16 %v371
    %v853 = vunpack.c.l.s8.bf16 %v372
    %v854 = vunpack.c.l.s8.bf16 %v373
    %v855 = vunpack.c.l.s8.bf16 %v374
    %v856 = vunpack.c.h.s8.bf16 %v362
    %v857 = vunpack.c.h.s8.bf16 %v363
    %v858 = vunpack.c.h.s8.bf16 %v364
    %v859 = vunpack.c.h.s8.bf16 %v365
    %v860 = vunpack.c.h.s8.bf16 %v366
    %v861 = vunpack.c.h.s8.bf16 %v367
    %v862 = vunpack.c.h.s8.bf16 %v368
    %v863 = vunpack.c.h.s8.bf16 %v369
    %v864 = vunpack.c.h.s8.bf16 %v370
    %v865 = vunpack.c.h.s8.bf16 %v371
    %v866 = vunpack.c.h.s8.bf16 %v372
    %v867 = vunpack.c.h.s8.bf16 %v373
    %v868 = vunpack.c.h.s8.bf16 %v374
    %v869 = vunpack.c.l.s8.bf16 %v375
    %v870 = vunpack.c.l.s8.bf16 %v376
    %v871 = vunpack.c.l.s8.bf16 %v377
    %v872 = vunpack.c.l.s8.bf16 %v378
    %v873 = vunpack.c.l.s8.bf16 %v379
    %v874 = vunpack.c.l.s8.bf16 %v380
    %v875 = vunpack.c.l.s8.bf16 %v381
    %v876 = vunpack.c.l.s8.bf16 %v382
    %v877 = vunpack.c.l.s8.bf16 %v383
    %v878 = vunpack.c.l.s8.bf16 %v384
    %v879 = vunpack.c.l.s8.bf16 %v385
    %v880 = vunpack.c.l.s8.bf16 %v386
    %v881 = vunpack.c.l.s8.bf16 %v387
    %v882 = vunpack.c.h.s8.bf16 %v375
    %v883 = vunpack.c.h.s8.bf16 %v376
    %v884 = vunpack.c.h.s8.bf16 %v377
    %v885 = vunpack.c.h.s8.bf16 %v378
    %v886 = vunpack.c.h.s8.bf16 %v379
    %v887 = vunpack.c.h.s8.bf16 %v380
    %v888 = vunpack.c.h.s8.bf16 %v381
    %v889 = vunpack.c.h.s8.bf16 %v382
    %v890 = vunpack.c.h.s8.bf16 %v383
    %v891 = vunpack.c.h.s8.bf16 %v384
    %v892 = vunpack.c.h.s8.bf16 %v385
    %v893 = vunpack.c.h.s8.bf16 %v386
    %v894 = vunpack.c.h.s8.bf16 %v387
    %v895 = vunpack.c.l.s8.bf16 %v388
    %v896 = vunpack.c.l.s8.bf16 %v389
    %v897 = vunpack.c.l.s8.bf16 %v390
    %v898 = vunpack.c.l.s8.bf16 %v391
    %v899 = vunpack.c.l.s8.bf16 %v392
    %v900 = vunpack.c.l.s8.bf16 %v393
    %v901 = vunpack.c.l.s8.bf16 %v394
    %v902 = vunpack.c.l.s8.bf16 %v395
    %v903 = vunpack.c.l.s8.bf16 %v396
    %v904 = vunpack.c.l.s8.bf16 %v397
    %v905 = vunpack.c.l.s8.bf16 %v398
    %v906 = vunpack.c.l.s8.bf16 %v399
    %v907 = vunpack.c.l.s8.bf16 %v400
    %v908 = vunpack.c.h.s8.bf16 %v388
    %v909 = vunpack.c.h.s8.bf16 %v389
    %v910 = vunpack.c.h.s8.bf16 %v390
    %v911 = vunpack.c.h.s8.bf16 %v391
    %v912 = vunpack.c.h.s8.bf16 %v392
    %v913 = vunpack.c.h.s8.bf16 %v393
    %v914 = vunpack.c.h.s8.bf16 %v394
    %v915 = vunpack.c.h.s8.bf16 %v395
    %v916 = vunpack.c.h.s8.bf16 %v396
    %v917 = vunpack.c.h.s8.bf16 %v397
    %v918 = vunpack.c.h.s8.bf16 %v398
    %v919 = vunpack.c.h.s8.bf16 %v399
    %v920 = vunpack.c.h.s8.bf16 %v400
    %v921 = vunpack.c.l.s8.bf16 %v401
    %v922 = vunpack.c.l.s8.bf16 %v402
    %v923 = vunpack.c.l.s8.bf16 %v403
    %v924 = vunpack.c.l.s8.bf16 %v404
    %v925 = vunpack.c.l.s8.bf16 %v405
    %v926 = vunpack.c.l.s8.bf16 %v406
    %v927 = vunpack.c.l.s8.bf16 %v407
    %v928 = vunpack.c.l.s8.bf16 %v408
    %v929 = vunpack.c.l.s8.bf16 %v409
    %v930 = vunpack.c.l.s8.bf16 %v410
    %v931 = vunpack.c.l.s8.bf16 %v411
    %v932 = vunpack.c.l.s8.bf16 %v412
    %v933 = vunpack.c.l.s8.bf16 %v413
    %v934 = vunpack.c.h.s8.bf16 %v401
    %v935 = vunpack.c.h.s8.bf16 %v402
    %v936 = vunpack.c.h.s8.bf16 %v403
    %v937 = vunpack.c.h.s8.bf16 %v404
    %v938 = vunpack.c.h.s8.bf16 %v405
    %v939 = vunpack.c.h.s8.bf16 %v406
    %v940 = vunpack.c.h.s8.bf16 %v407
    %v941 = vunpack.c.h.s8.bf16 %v408
    %v942 = vunpack.c.h.s8.bf16 %v409
    %v943 = vunpack.c.h.s8.bf16 %v410
    %v944 = vunpack.c.h.s8.bf16 %v411
    %v945 = vunpack.c.h.s8.bf16 %v412
    %v946 = vunpack.c.h.s8.bf16 %v413
    %v947 = vunpack.c.l.s8.bf16 %v414
    %v948 = vunpack.c.l.s8.bf16 %v415
    %v949 = vunpack.c.l.s8.bf16 %v416
    %v950 = vunpack.c.l.s8.bf16 %v417
    %v951 = vunpack.c.l.s8.bf16 %v418
    %v952 = vunpack.c.l.s8.bf16 %v419
    %v953 = vunpack.c.l.s8.bf16 %v420
    %v954 = vunpack.c.l.s8.bf16 %v421
    %v955 = vunpack.c.l.s8.bf16 %v422
    %v956 = vunpack.c.l.s8.bf16 %v423
    %v957 = vunpack.c.l.s8.bf16 %v424
    %v958 = vunpack.c.l.s8.bf16 %v425
    %v959 = vunpack.c.l.s8.bf16 %v426
    %v960 = vunpack.c.h.s8.bf16 %v414
    %v961 = vunpack.c.h.s8.bf16 %v415
    %v962 = vunpack.c.h.s8.bf16 %v416
    %v963 = vunpack.c.h.s8.bf16 %v417
    %v964 = vunpack.c.h.s8.bf16 %v418
    %v965 = vunpack.c.h.s8.bf16 %v419
    %v966 = vunpack.c.h.s8.bf16 %v420
    %v967 = vunpack.c.h.s8.bf16 %v421
    %v968 = vunpack.c.h.s8.bf16 %v422
    %v969 = vunpack.c.h.s8.bf16 %v423
    %v970 = vunpack.c.h.s8.bf16 %v424
    %v971 = vunpack.c.h.s8.bf16 %v425
    %v972 = vunpack.c.h.s8.bf16 %v426
    %v973 = vunpack.c.l.s8.bf16 %v427
    %v974 = vunpack.c.l.s8.bf16 %v428
    %v975 = vunpack.c.l.s8.bf16 %v429
    %v976 = vunpack.c.l.s8.bf16 %v430
    %v977 = vunpack.c.l.s8.bf16 %v431
    %v978 = vunpack.c.l.s8.bf16 %v432
    %v979 = vunpack.c.l.s8.bf16 %v433
    %v980 = vunpack.c.l.s8.bf16 %v434
    %v981 = vunpack.c.l.s8.bf16 %v435
    %v982 = vunpack.c.l.s8.bf16 %v436
    %v983 = vunpack.c.l.s8.bf16 %v437
    %v984 = vunpack.c.l.s8.bf16 %v438
    %v985 = vunpack.c.l.s8.bf16 %v439
    %v986 = vunpack.c.h.s8.bf16 %v427
    %v987 = vunpack.c.h.s8.bf16 %v428
    %v988 = vunpack.c.h.s8.bf16 %v429
    %v989 = vunpack.c.h.s8.bf16 %v430
    %v990 = vunpack.c.h.s8.bf16 %v431
    %v991 = vunpack.c.h.s8.bf16 %v432
    %v992 = vunpack.c.h.s8.bf16 %v433
    %v993 = vunpack.c.h.s8.bf16 %v434
    %v994 = vunpack.c.h.s8.bf16 %v435
    %v995 = vunpack.c.h.s8.bf16 %v436
    %v996 = vunpack.c.h.s8.bf16 %v437
    %v997 = vunpack.c.h.s8.bf16 %v438
    %v998 = vunpack.c.h.s8.bf16 %v439
    %v999 = vunpack.c.l.s8.bf16 %v440
    %v1000 = vunpack.c.l.s8.bf16 %v441
    %v1001 = vunpack.c.l.s8.bf16 %v442
    %v1002 = vunpack.c.l.s8.bf16 %v443
    %v1003 = vunpack.c.l.s8.bf16 %v444
    %v1004 = vunpack.c.l.s8.bf16 %v445
    %v1005 = vunpack.c.l.s8.bf16 %v446
    %v1006 = vunpack.c.l.s8.bf16 %v447
    %v1007 = vunpack.c.l.s8.bf16 %v448
    %v1008 = vunpack.c.l.s8.bf16 %v449
    %v1009 = vunpack.c.l.s8.bf16 %v450
    %v1010 = vunpack.c.l.s8.bf16 %v451
    %v1011 = vunpack.c.l.s8.bf16 %v452
    %v1012 = vunpack.c.h.s8.bf16 %v440
    %v1013 = vunpack.c.h.s8.bf16 %v441
    %v1014 = vunpack.c.h.s8.bf16 %v442
    %v1015 = vunpack.c.h.s8.bf16 %v443
    %v1016 = vunpack.c.h.s8.bf16 %v444
    %v1017 = vunpack.c.h.s8.bf16 %v445
    %v1018 = vunpack.c.h.s8.bf16 %v446
    %v1019 = vunpack.c.h.s8.bf16 %v447
    %v1020 = vunpack.c.h.s8.bf16 %v448
    %v1021 = vunpack.c.h.s8.bf16 %v449
    %v1022 = vunpack.c.h.s8.bf16 %v450
    %v1023 = vunpack.c.h.s8.bf16 %v451
    %v1024 = vunpack.c.h.s8.bf16 %v452
    %v1025 = vunpack.c.l.s8.bf16 %v453
    %v1026 = vunpack.c.l.s8.bf16 %v454
    %v1027 = vunpack.c.l.s8.bf16 %v455
    %v1028 = vunpack.c.l.s8.bf16 %v456
    %v1029 = vunpack.c.l.s8.bf16 %v457
    %v1030 = vunpack.c.l.s8.bf16 %v458
    %v1031 = vunpack.c.l.s8.bf16 %v459
    %v1032 = vunpack.c.l.s8.bf16 %v460
    %v1033 = vunpack.c.l.s8.bf16 %v461
    %v1034 = vunpack.c.l.s8.bf16 %v462
    %v1035 = vunpack.c.l.s8.bf16 %v463
    %v1036 = vunpack.c.l.s8.bf16 %v464
    %v1037 = vunpack.c.l.s8.bf16 %v465
    %v1038 = vunpack.c.h.s8.bf16 %v453
    %v1039 = vunpack.c.h.s8.bf16 %v454
    %v1040 = vunpack.c.h.s8.bf16 %v455
    %v1041 = vunpack.c.h.s8.bf16 %v456
    %v1042 = vunpack.c.h.s8.bf16 %v457
    %v1043 = vunpack.c.h.s8.bf16 %v458
    %v1044 = vunpack.c.h.s8.bf16 %v459
    %v1045 = vunpack.c.h.s8.bf16 %v460
    %v1046 = vunpack.c.h.s8.bf16 %v461
    %v1047 = vunpack.c.h.s8.bf16 %v462
    %v1048 = vunpack.c.h.s8.bf16 %v463
    %v1049 = vunpack.c.h.s8.bf16 %v464
    %v1050 = vunpack.c.h.s8.bf16 %v465
    %v1051 = vunpack.c.l.s8.bf16 %v466
    %v1052 = vunpack.c.l.s8.bf16 %v467
    %v1053 = vunpack.c.l.s8.bf16 %v468
    %v1054 = vunpack.c.l.s8.bf16 %v469
    %v1055 = vunpack.c.l.s8.bf16 %v470
    %v1056 = vunpack.c.l.s8.bf16 %v471
    %v1057 = vunpack.c.l.s8.bf16 %v472
    %v1058 = vunpack.c.l.s8.bf16 %v473
    %v1059 = vunpack.c.l.s8.bf16 %v474
    %v1060 = vunpack.c.l.s8.bf16 %v475
    %v1061 = vunpack.c.l.s8.bf16 %v476
    %v1062 = vunpack.c.l.s8.bf16 %v477
    %v1063 = vunpack.c.l.s8.bf16 %v478
    %v1064 = vunpack.c.h.s8.bf16 %v466
    %v1065 = vunpack.c.h.s8.bf16 %v467
    %v1066 = vunpack.c.h.s8.bf16 %v468
    %v1067 = vunpack.c.h.s8.bf16 %v469
    %v1068 = vunpack.c.h.s8.bf16 %v470
    %v1069 = vunpack.c.h.s8.bf16 %v471
    %v1070 = vunpack.c.h.s8.bf16 %v472
    %v1071 = vunpack.c.h.s8.bf16 %v473
    %v1072 = vunpack.c.h.s8.bf16 %v474
    %v1073 = vunpack.c.h.s8.bf16 %v475
    %v1074 = vunpack.c.h.s8.bf16 %v476
    %v1075 = vunpack.c.h.s8.bf16 %v477
    %v1076 = vunpack.c.h.s8.bf16 %v478
    %v1077 = vunpack.c.l.s8.bf16 %v479
    %v1078 = vunpack.c.l.s8.bf16 %v480
    %v1079 = vunpack.c.l.s8.bf16 %v481
    %v1080 = vunpack.c.l.s8.bf16 %v482
    %v1081 = vunpack.c.l.s8.bf16 %v483
    %v1082 = vunpack.c.l.s8.bf16 %v484
    %v1083 = vunpack.c.l.s8.bf16 %v485
    %v1084 = vunpack.c.l.s8.bf16 %v486
    %v1085 = vunpack.c.l.s8.bf16 %v487
    %v1086 = vunpack.c.l.s8.bf16 %v488
    %v1087 = vunpack.c.l.s8.bf16 %v489
    %v1088 = vunpack.c.l.s8.bf16 %v490
    %v1089 = vunpack.c.l.s8.bf16 %v491
    %v1090 = vunpack.c.h.s8.bf16 %v479
    %v1091 = vunpack.c.h.s8.bf16 %v480
    %v1092 = vunpack.c.h.s8.bf16 %v481
    %v1093 = vunpack.c.h.s8.bf16 %v482
    %v1094 = vunpack.c.h.s8.bf16 %v483
    %v1095 = vunpack.c.h.s8.bf16 %v484
    %v1096 = vunpack.c.h.s8.bf16 %v485
    %v1097 = vunpack.c.h.s8.bf16 %v486
    %v1098 = vunpack.c.h.s8.bf16 %v487
    %v1099 = vunpack.c.h.s8.bf16 %v488
    %v1100 = vunpack.c.h.s8.bf16 %v489
    %v1101 = vunpack.c.h.s8.bf16 %v490
    %v1102 = vunpack.c.h.s8.bf16 %v491
    %v1103 = vunpack.c.l.s8.bf16 %v492
    %v1104 = vunpack.c.l.s8.bf16 %v493
    %v1105 = vunpack.c.l.s8.bf16 %v494
    %v1106 = vunpack.c.l.s8.bf16 %v495
    %v1107 = vunpack.c.l.s8.bf16 %v496
    %v1108 = vunpack.c.l.s8.bf16 %v497
    %v1109 = vunpack.c.l.s8.bf16 %v498
    %v1110 = vunpack.c.l.s8.bf16 %v499
    %v1111 = vunpack.c.l.s8.bf16 %v500
    %v1112 = vunpack.c.l.s8.bf16 %v501
    %v1113 = vunpack.c.l.s8.bf16 %v502
    %v1114 = vunpack.c.l.s8.bf16 %v503
    %v1115 = vunpack.c.l.s8.bf16 %v504
    %v1116 = vunpack.c.h.s8.bf16 %v492
    %v1117 = vunpack.c.h.s8.bf16 %v493
    %v1118 = vunpack.c.h.s8.bf16 %v494
    %v1119 = vunpack.c.h.s8.bf16 %v495
    %v1120 = vunpack.c.h.s8.bf16 %v496
    %v1121 = vunpack.c.h.s8.bf16 %v497
    %v1122 = vunpack.c.h.s8.bf16 %v498
    %v1123 = vunpack.c.h.s8.bf16 %v499
    %v1124 = vunpack.c.h.s8.bf16 %v500
    %v1125 = vunpack.c.h.s8.bf16 %v501
    %v1126 = vunpack.c.h.s8.bf16 %v502
    %v1127 = vunpack.c.h.s8.bf16 %v503
    %v1128 = vunpack.c.h.s8.bf16 %v504
    %v1132 = vunpack.c.l.b16 %v190
    %v1133 = vunpack.c.h.b16 %v190
    %v1134 = vunpack.c.l.b16 %v191
    %v1135 = vunpack.c.h.b16 %v191
    %v1136 = vunpack.c.l.b16 %v192
    %v1137 = vunpack.c.h.b16 %v192
    %v1138 = vpack.c.b16 %v1132, %v1132
    %v1139 = vpack.c.b16 %v1133, %v1133
    %v1140 = vpack.c.b16 %v1134, %v1134
    %v1141 = vpack.c.b16 %v1135, %v1135
    %v1142 = vpack.c.b16 %v1136, %v1136
    %v1143 = vpack.c.b16 %v1137, %v1137
    %1150 = vmatprep.subr.bf16.mxu0 %v597
    %1151 = vmatpush1.bf16.msra.mxu0 %v596
    %1152 = vmatprep.subr.bf16.mxu0 %v584
    %1153 = vmatpush1.bf16.msra.mxu0 %v583
    %1154 = vmatprep.subr.bf16.mxu0 %v571
    %1155 = vmatpush1.bf16.msra.mxu0 %v570
    %1156 = vmatprep.subr.bf16.mxu0 %v558
    %1157 = vmatpush1.bf16.msra.mxu0 %v557
    %1158 = vmatprep.subr.bf16.mxu0 %v545
    %1159 = vmatpush1.bf16.msra.mxu0 %v544
    %1160 = vmatprep.subr.bf16.mxu0 %v532
    %1161 = vmatpush1.bf16.msra.mxu0 %v531
    %1162 = vmatprep.subr.bf16.mxu0 %v519
    %1163 = vmatpush1.bf16.msra.mxu0 %v518
    %1164 = vmatprep.subr.bf16.mxu0 %v506
    %1165 = vmatpush1.bf16.msra.mxu0 %v505
    %1166 = vmatprep.subr.bf16.mxu0 %v701
    %1167 = vmatpush2.bf16.msra.mxu0 %v700
    %1168 = vmatprep.subr.bf16.mxu0 %v688
    %1169 = vmatpush2.bf16.msra.mxu0 %v687
    %1170 = vmatprep.subr.bf16.mxu0 %v675
    %1171 = vmatpush2.bf16.msra.mxu0 %v674
    %1172 = vmatprep.subr.bf16.mxu0 %v662
    %1173 = vmatpush2.bf16.msra.mxu0 %v661
    %1174 = vmatprep.subr.bf16.mxu0 %v649
    %1175 = vmatpush2.bf16.msra.mxu0 %v648
    %1176 = vmatprep.subr.bf16.mxu0 %v636
    %1177 = vmatpush2.bf16.msra.mxu0 %v635
    %1178 = vmatprep.subr.bf16.mxu0 %v623
    %1179 = vmatpush2.bf16.msra.mxu0 %v622
    %1180 = vmatprep.subr.bf16.mxu0 %v610
    %1181 = vmatpush2.bf16.msra.mxu0 %v609
    %1182 = vmatprep.mubr.bf16.mxu0 %v1139
    %1183 = vmatmul.mubr.bf16.gmra.mxu0 %v1138
    %v1184 = vpop.f32.mrf.mxu0
    %v1185 = vadd.f32 0.0, %v1184
    %v1186 = vpop.f32.mrf.mxu0
    %v1187 = vadd.f32 0.0, %v1186
    %v1188 = vpop.f32.mrf.mxu0
    %v1189 = vpop.f32.mrf.mxu0
    %1190 = vdwg.mxu0
    %1191 = vmatprep.subr.bf16.mxu0 %v805
    %1192 = vmatpush1.bf16.msra.mxu0 %v804
    %1193 = vmatprep.subr.bf16.mxu0 %v792
    %1194 = vmatpush1.bf16.msra.mxu0 %v791
    %1195 = vmatprep.subr.bf16.mxu0 %v779
    %1196 = vmatpush1.bf16.msra.mxu0 %v778
    %1197 = vmatprep.subr.bf16.mxu0 %v766
    %1198 = vmatpush1.bf16.msra.mxu0 %v765
    %1199 = vmatprep.subr.bf16.mxu0 %v753
    %1200 = vmatpush1.bf16.msra.mxu0 %v752
    %1201 = vmatprep.subr.bf16.mxu0 %v740
    %1202 = vmatpush1.bf16.msra.mxu0 %v739
    %1203 = vmatprep.subr.bf16.mxu0 %v727
    %1204 = vmatpush1.bf16.msra.mxu0 %v726
    %1205 = vmatprep.subr.bf16.mxu0 %v714
    %1206 = vmatpush1.bf16.msra.mxu0 %v713
    %1207 = vmatprep.subr.bf16.mxu0 %v909
    %1208 = vmatpush2.bf16.msra.mxu0 %v908
    %1209 = vmatprep.subr.bf16.mxu0 %v896
    %1210 = vmatpush2.bf16.msra.mxu0 %v895
    %1211 = vmatprep.subr.bf16.mxu0 %v883
    %1212 = vmatpush2.bf16.msra.mxu0 %v882
    %1213 = vmatprep.subr.bf16.mxu0 %v870
    %1214 = vmatpush2.bf16.msra.mxu0 %v869
    %1215 = vmatprep.subr.bf16.mxu0 %v857
    %1216 = vmatpush2.bf16.msra.mxu0 %v856
    %1217 = vmatprep.subr.bf16.mxu0 %v844
    %1218 = vmatpush2.bf16.msra.mxu0 %v843
    %1219 = vmatprep.subr.bf16.mxu0 %v831
    %1220 = vmatpush2.bf16.msra.mxu0 %v830
    %1221 = vmatprep.subr.bf16.mxu0 %v818
    %1222 = vmatpush2.bf16.msra.mxu0 %v817
    %1223 = vmatprep.mubr.bf16.mxu0 %v1141
    %1224 = vmatmul.mubr.bf16.gmra.mxu0 %v1140
    %v1225 = vpop.f32.mrf.mxu0
    %v1226 = vadd.f32 %v1185, %v1225
    %v1227 = vpop.f32.mrf.mxu0
    %v1228 = vadd.f32 %v1187, %v1227
    %v1229 = vpop.f32.mrf.mxu0
    %v1230 = vpop.f32.mrf.mxu0
    %1231 = vdwg.mxu0
    %1232 = vmatprep.subr.bf16.mxu0 %v1013
    %1233 = vmatpush1.bf16.msra.mxu0 %v1012
    %1234 = vmatprep.subr.bf16.mxu0 %v1000
    %1235 = vmatpush1.bf16.msra.mxu0 %v999
    %1236 = vmatprep.subr.bf16.mxu0 %v987
    %1237 = vmatpush1.bf16.msra.mxu0 %v986
    %1238 = vmatprep.subr.bf16.mxu0 %v974
    %1239 = vmatpush1.bf16.msra.mxu0 %v973
    %1240 = vmatprep.subr.bf16.mxu0 %v961
    %1241 = vmatpush1.bf16.msra.mxu0 %v960
    %1242 = vmatprep.subr.bf16.mxu0 %v948
    %1243 = vmatpush1.bf16.msra.mxu0 %v947
    %1244 = vmatprep.subr.bf16.mxu0 %v935
    %1245 = vmatpush1.bf16.msra.mxu0 %v934
    %1246 = vmatprep.subr.bf16.mxu0 %v922
    %1247 = vmatpush1.bf16.msra.mxu0 %v921
    %1248 = vmatprep.subr.bf16.mxu0 %v1117
    %1249 = vmatpush2.bf16.msra.mxu0 %v1116
    %1250 = vmatprep.subr.bf16.mxu0 %v1104
    %1251 = vmatpush2.bf16.msra.mxu0 %v1103
    %1252 = vmatprep.subr.bf16.mxu0 %v1091
    %1253 = vmatpush2.bf16.msra.mxu0 %v1090
    %1254 = vmatprep.subr.bf16.mxu0 %v1078
    %1255 = vmatpush2.bf16.msra.mxu0 %v1077
    %1256 = vmatprep.subr.bf16.mxu0 %v1065
    %1257 = vmatpush2.bf16.msra.mxu0 %v1064
    %1258 = vmatprep.subr.bf16.mxu0 %v1052
    %1259 = vmatpush2.bf16.msra.mxu0 %v1051
    %1260 = vmatprep.subr.bf16.mxu0 %v1039
    %1261 = vmatpush2.bf16.msra.mxu0 %v1038
    %1262 = vmatprep.subr.bf16.mxu0 %v1026
    %1263 = vmatpush2.bf16.msra.mxu0 %v1025
    %1264 = vmatprep.mubr.bf16.mxu0 %v1143
    %1265 = vmatmul.mubr.bf16.gmra.mxu0 %v1142
    %v1266 = vpop.f32.mrf.mxu0
    %v1267 = vadd.f32 %v1226, %v1266
    %v1268 = vpop.f32.mrf.mxu0
    %v1269 = vadd.f32 %v1228, %v1268
    %v1270 = vpop.f32.mrf.mxu0
    %v1271 = vpop.f32.mrf.mxu0
    %1272 = vdwg.mxu0
    %1273 = vmatprep.subr.bf16.mxu0 %v599
    %1274 = vmatpush1.bf16.msra.mxu0 %v598
    %1275 = vmatprep.subr.bf16.mxu0 %v586
    %1276 = vmatpush1.bf16.msra.mxu0 %v585
    %1277 = vmatprep.subr.bf16.mxu0 %v573
    %1278 = vmatpush1.bf16.msra.mxu0 %v572
    %1279 = vmatprep.subr.bf16.mxu0 %v560
    %1280 = vmatpush1.bf16.msra.mxu0 %v559
    %1281 = vmatprep.subr.bf16.mxu0 %v547
    %1282 = vmatpush1.bf16.msra.mxu0 %v546
    %1283 = vmatprep.subr.bf16.mxu0 %v534
    %1284 = vmatpush1.bf16.msra.mxu0 %v533
    %1285 = vmatprep.subr.bf16.mxu0 %v521
    %1286 = vmatpush1.bf16.msra.mxu0 %v520
    %1287 = vmatprep.subr.bf16.mxu0 %v508
    %1288 = vmatpush1.bf16.msra.mxu0 %v507
    %1289 = vmatprep.subr.bf16.mxu0 %v703
    %1290 = vmatpush2.bf16.msra.mxu0 %v702
    %1291 = vmatprep.subr.bf16.mxu0 %v690
    %1292 = vmatpush2.bf16.msra.mxu0 %v689
    %1293 = vmatprep.subr.bf16.mxu0 %v677
    %1294 = vmatpush2.bf16.msra.mxu0 %v676
    %1295 = vmatprep.subr.bf16.mxu0 %v664
    %1296 = vmatpush2.bf16.msra.mxu0 %v663
    %1297 = vmatprep.subr.bf16.mxu0 %v651
    %1298 = vmatpush2.bf16.msra.mxu0 %v650
    %1299 = vmatprep.subr.bf16.mxu0 %v638
    %1300 = vmatpush2.bf16.msra.mxu0 %v637
    %1301 = vmatprep.subr.bf16.mxu0 %v625
    %1302 = vmatpush2.bf16.msra.mxu0 %v624
    %1303 = vmatprep.subr.bf16.mxu0 %v612
    %1304 = vmatpush2.bf16.msra.mxu0 %v611
    %1305 = vmatprep.mubr.bf16.mxu0 %v1139
    %1306 = vmatmul.mubr.bf16.gmra.mxu0 %v1138
    %v1307 = vpop.f32.mrf.mxu0
    %v1308 = vadd.f32 0.0, %v1307
    %v1309 = vpop.f32.mrf.mxu0
    %v1310 = vadd.f32 0.0, %v1309
    %v1311 = vpop.f32.mrf.mxu0
    %v1312 = vpop.f32.mrf.mxu0
    %1313 = vdwg.mxu0
    %1314 = vmatprep.subr.bf16.mxu0 %v807
    %1315 = vmatpush1.bf16.msra.mxu0 %v806
    %1316 = vmatprep.subr.bf16.mxu0 %v794
    %1317 = vmatpush1.bf16.msra.mxu0 %v793
    %1318 = vmatprep.subr.bf16.mxu0 %v781
    %1319 = vmatpush1.bf16.msra.mxu0 %v780
    %1320 = vmatprep.subr.bf16.mxu0 %v768
    %1321 = vmatpush1.bf16.msra.mxu0 %v767
    %1322 = vmatprep.subr.bf16.mxu0 %v755
    %1323 = vmatpush1.bf16.msra.mxu0 %v754
    %1324 = vmatprep.subr.bf16.mxu0 %v742
    %1325 = vmatpush1.bf16.msra.mxu0 %v741
    %1326 = vmatprep.subr.bf16.mxu0 %v729
    %1327 = vmatpush1.bf16.msra.mxu0 %v728
    %1328 = vmatprep.subr.bf16.mxu0 %v716
    %1329 = vmatpush1.bf16.msra.mxu0 %v715
    %1330 = vmatprep.subr.bf16.mxu0 %v911
    %1331 = vmatpush2.bf16.msra.mxu0 %v910
    %1332 = vmatprep.subr.bf16.mxu0 %v898
    %1333 = vmatpush2.bf16.msra.mxu0 %v897
    %1334 = vmatprep.subr.bf16.mxu0 %v885
    %1335 = vmatpush2.bf16.msra.mxu0 %v884
    %1336 = vmatprep.subr.bf16.mxu0 %v872
    %1337 = vmatpush2.bf16.msra.mxu0 %v871
    %1338 = vmatprep.subr.bf16.mxu0 %v859
    %1339 = vmatpush2.bf16.msra.mxu0 %v858
    %1340 = vmatprep.subr.bf16.mxu0 %v846
    %1341 = vmatpush2.bf16.msra.mxu0 %v845
    %1342 = vmatprep.subr.bf16.mxu0 %v833
    %1343 = vmatpush2.bf16.msra.mxu0 %v832
    %1344 = vmatprep.subr.bf16.mxu0 %v820
    %1345 = vmatpush2.bf16.msra.mxu0 %v819
    %1346 = vmatprep.mubr.bf16.mxu0 %v1141
    %1347 = vmatmul.mubr.bf16.gmra.mxu0 %v1140
    %v1348 = vpop.f32.mrf.mxu0
    %v1349 = vadd.f32 %v1308, %v1348
    %v1350 = vpop.f32.mrf.mxu0
    %v1351 = vadd.f32 %v1310, %v1350
    %v1352 = vpop.f32.mrf.mxu0
    %v1353 = vpop.f32.mrf.mxu0
    %1354 = vdwg.mxu0
    %1355 = vmatprep.subr.bf16.mxu0 %v1015
    %1356 = vmatpush1.bf16.msra.mxu0 %v1014
    %1357 = vmatprep.subr.bf16.mxu0 %v1002
    %1358 = vmatpush1.bf16.msra.mxu0 %v1001
    %1359 = vmatprep.subr.bf16.mxu0 %v989
    %1360 = vmatpush1.bf16.msra.mxu0 %v988
    %1361 = vmatprep.subr.bf16.mxu0 %v976
    %1362 = vmatpush1.bf16.msra.mxu0 %v975
    %1363 = vmatprep.subr.bf16.mxu0 %v963
    %1364 = vmatpush1.bf16.msra.mxu0 %v962
    %1365 = vmatprep.subr.bf16.mxu0 %v950
    %1366 = vmatpush1.bf16.msra.mxu0 %v949
    %1367 = vmatprep.subr.bf16.mxu0 %v937
    %1368 = vmatpush1.bf16.msra.mxu0 %v936
    %1369 = vmatprep.subr.bf16.mxu0 %v924
    %1370 = vmatpush1.bf16.msra.mxu0 %v923
    %1371 = vmatprep.subr.bf16.mxu0 %v1119
    %1372 = vmatpush2.bf16.msra.mxu0 %v1118
    %1373 = vmatprep.subr.bf16.mxu0 %v1106
    %1374 = vmatpush2.bf16.msra.mxu0 %v1105
    %1375 = vmatprep.subr.bf16.mxu0 %v1093
    %1376 = vmatpush2.bf16.msra.mxu0 %v1092
    %1377 = vmatprep.subr.bf16.mxu0 %v1080
    %1378 = vmatpush2.bf16.msra.mxu0 %v1079
    %1379 = vmatprep.subr.bf16.mxu0 %v1067
    %1380 = vmatpush2.bf16.msra.mxu0 %v1066
    %1381 = vmatprep.subr.bf16.mxu0 %v1054
    %1382 = vmatpush2.bf16.msra.mxu0 %v1053
    %1383 = vmatprep.subr.bf16.mxu0 %v1041
    %1384 = vmatpush2.bf16.msra.mxu0 %v1040
    %1385 = vmatprep.subr.bf16.mxu0 %v1028
    %1386 = vmatpush2.bf16.msra.mxu0 %v1027
    %1387 = vmatprep.mubr.bf16.mxu0 %v1143
    %1388 = vmatmul.mubr.bf16.gmra.mxu0 %v1142
    %v1389 = vpop.f32.mrf.mxu0
    %v1390 = vadd.f32 %v1349, %v1389
    %v1391 = vpop.f32.mrf.mxu0
    %v1392 = vadd.f32 %v1351, %v1391
    %v1393 = vpop.f32.mrf.mxu0
    %v1394 = vpop.f32.mrf.mxu0
    %1395 = vdwg.mxu0
    %1396 = vmatprep.subr.bf16.mxu0 %v601
    %1397 = vmatpush1.bf16.msra.mxu0 %v600
    %1398 = vmatprep.subr.bf16.mxu0 %v588
    %1399 = vmatpush1.bf16.msra.mxu0 %v587
    %1400 = vmatprep.subr.bf16.mxu0 %v575
    %1401 = vmatpush1.bf16.msra.mxu0 %v574
    %1402 = vmatprep.subr.bf16.mxu0 %v562
    %1403 = vmatpush1.bf16.msra.mxu0 %v561
    %1404 = vmatprep.subr.bf16.mxu0 %v549
    %1405 = vmatpush1.bf16.msra.mxu0 %v548
    %1406 = vmatprep.subr.bf16.mxu0 %v536
    %1407 = vmatpush1.bf16.msra.mxu0 %v535
    %1408 = vmatprep.subr.bf16.mxu0 %v523
    %1409 = vmatpush1.bf16.msra.mxu0 %v522
    %1410 = vmatprep.subr.bf16.mxu0 %v510
    %1411 = vmatpush1.bf16.msra.mxu0 %v509
    %1412 = vmatprep.subr.bf16.mxu0 %v705
    %1413 = vmatpush2.bf16.msra.mxu0 %v704
    %1414 = vmatprep.subr.bf16.mxu0 %v692
    %1415 = vmatpush2.bf16.msra.mxu0 %v691
    %1416 = vmatprep.subr.bf16.mxu0 %v679
    %1417 = vmatpush2.bf16.msra.mxu0 %v678
    %1418 = vmatprep.subr.bf16.mxu0 %v666
    %1419 = vmatpush2.bf16.msra.mxu0 %v665
    %1420 = vmatprep.subr.bf16.mxu0 %v653
    %1421 = vmatpush2.bf16.msra.mxu0 %v652
    %1422 = vmatprep.subr.bf16.mxu0 %v640
    %1423 = vmatpush2.bf16.msra.mxu0 %v639
    %1424 = vmatprep.subr.bf16.mxu0 %v627
    %1425 = vmatpush2.bf16.msra.mxu0 %v626
    %1426 = vmatprep.subr.bf16.mxu0 %v614
    %1427 = vmatpush2.bf16.msra.mxu0 %v613
    %1428 = vmatprep.mubr.bf16.mxu0 %v1139
    %1429 = vmatmul.mubr.bf16.gmra.mxu0 %v1138
    %v1430 = vpop.f32.mrf.mxu0
    %v1431 = vadd.f32 0.0, %v1430
    %v1432 = vpop.f32.mrf.mxu0
    %v1433 = vadd.f32 0.0, %v1432
    %v1434 = vpop.f32.mrf.mxu0
    %v1435 = vpop.f32.mrf.mxu0
    %1436 = vdwg.mxu0
    %1437 = vmatprep.subr.bf16.mxu0 %v809
    %1438 = vmatpush1.bf16.msra.mxu0 %v808
    %1439 = vmatprep.subr.bf16.mxu0 %v796
    %1440 = vmatpush1.bf16.msra.mxu0 %v795
    %1441 = vmatprep.subr.bf16.mxu0 %v783
    %1442 = vmatpush1.bf16.msra.mxu0 %v782
    %1443 = vmatprep.subr.bf16.mxu0 %v770
    %1444 = vmatpush1.bf16.msra.mxu0 %v769
    %1445 = vmatprep.subr.bf16.mxu0 %v757
    %1446 = vmatpush1.bf16.msra.mxu0 %v756
    %1447 = vmatprep.subr.bf16.mxu0 %v744
    %1448 = vmatpush1.bf16.msra.mxu0 %v743
    %1449 = vmatprep.subr.bf16.mxu0 %v731
    %1450 = vmatpush1.bf16.msra.mxu0 %v730
    %1451 = vmatprep.subr.bf16.mxu0 %v718
    %1452 = vmatpush1.bf16.msra.mxu0 %v717
    %1453 = vmatprep.subr.bf16.mxu0 %v913
    %1454 = vmatpush2.bf16.msra.mxu0 %v912
    %1455 = vmatprep.subr.bf16.mxu0 %v900
    %1456 = vmatpush2.bf16.msra.mxu0 %v899
    %1457 = vmatprep.subr.bf16.mxu0 %v887
    %1458 = vmatpush2.bf16.msra.mxu0 %v886
    %1459 = vmatprep.subr.bf16.mxu0 %v874
    %1460 = vmatpush2.bf16.msra.mxu0 %v873
    %1461 = vmatprep.subr.bf16.mxu0 %v861
    %1462 = vmatpush2.bf16.msra.mxu0 %v860
    %1463 = vmatprep.subr.bf16.mxu0 %v848
    %1464 = vmatpush2.bf16.msra.mxu0 %v847
    %1465 = vmatprep.subr.bf16.mxu0 %v835
    %1466 = vmatpush2.bf16.msra.mxu0 %v834
    %1467 = vmatprep.subr.bf16.mxu0 %v822
    %1468 = vmatpush2.bf16.msra.mxu0 %v821
    %1469 = vmatprep.mubr.bf16.mxu0 %v1141
    %1470 = vmatmul.mubr.bf16.gmra.mxu0 %v1140
    %v1471 = vpop.f32.mrf.mxu0
    %v1472 = vadd.f32 %v1431, %v1471
    %v1473 = vpop.f32.mrf.mxu0
    %v1474 = vadd.f32 %v1433, %v1473
    %v1475 = vpop.f32.mrf.mxu0
    %v1476 = vpop.f32.mrf.mxu0
    %1477 = vdwg.mxu0
    %1478 = vmatprep.subr.bf16.mxu0 %v1017
    %1479 = vmatpush1.bf16.msra.mxu0 %v1016
    %1480 = vmatprep.subr.bf16.mxu0 %v1004
    %1481 = vmatpush1.bf16.msra.mxu0 %v1003
    %1482 = vmatprep.subr.bf16.mxu0 %v991
    %1483 = vmatpush1.bf16.msra.mxu0 %v990
    %1484 = vmatprep.subr.bf16.mxu0 %v978
    %1485 = vmatpush1.bf16.msra.mxu0 %v977
    %1486 = vmatprep.subr.bf16.mxu0 %v965
    %1487 = vmatpush1.bf16.msra.mxu0 %v964
    %1488 = vmatprep.subr.bf16.mxu0 %v952
    %1489 = vmatpush1.bf16.msra.mxu0 %v951
    %1490 = vmatprep.subr.bf16.mxu0 %v939
    %1491 = vmatpush1.bf16.msra.mxu0 %v938
    %1492 = vmatprep.subr.bf16.mxu0 %v926
    %1493 = vmatpush1.bf16.msra.mxu0 %v925
    %1494 = vmatprep.subr.bf16.mxu0 %v1121
    %1495 = vmatpush2.bf16.msra.mxu0 %v1120
    %1496 = vmatprep.subr.bf16.mxu0 %v1108
    %1497 = vmatpush2.bf16.msra.mxu0 %v1107
    %1498 = vmatprep.subr.bf16.mxu0 %v1095
    %1499 = vmatpush2.bf16.msra.mxu0 %v1094
    %1500 = vmatprep.subr.bf16.mxu0 %v1082
    %1501 = vmatpush2.bf16.msra.mxu0 %v1081
    %1502 = vmatprep.subr.bf16.mxu0 %v1069
    %1503 = vmatpush2.bf16.msra.mxu0 %v1068
    %1504 = vmatprep.subr.bf16.mxu0 %v1056
    %1505 = vmatpush2.bf16.msra.mxu0 %v1055
    %1506 = vmatprep.subr.bf16.mxu0 %v1043
    %1507 = vmatpush2.bf16.msra.mxu0 %v1042
    %1508 = vmatprep.subr.bf16.mxu0 %v1030
    %1509 = vmatpush2.bf16.msra.mxu0 %v1029
    %1510 = vmatprep.mubr.bf16.mxu0 %v1143
    %1511 = vmatmul.mubr.bf16.gmra.mxu0 %v1142
    %v1512 = vpop.f32.mrf.mxu0
    %v1513 = vadd.f32 %v1472, %v1512
    %v1514 = vpop.f32.mrf.mxu0
    %v1515 = vadd.f32 %v1474, %v1514
    %v1516 = vpop.f32.mrf.mxu0
    %v1517 = vpop.f32.mrf.mxu0
    %1518 = vdwg.mxu0
    %1519 = vmatprep.subr.bf16.mxu0 %v603
    %1520 = vmatpush1.bf16.msra.mxu0 %v602
    %1521 = vmatprep.subr.bf16.mxu0 %v590
    %1522 = vmatpush1.bf16.msra.mxu0 %v589
    %1523 = vmatprep.subr.bf16.mxu0 %v577
    %1524 = vmatpush1.bf16.msra.mxu0 %v576
    %1525 = vmatprep.subr.bf16.mxu0 %v564
    %1526 = vmatpush1.bf16.msra.mxu0 %v563
    %1527 = vmatprep.subr.bf16.mxu0 %v551
    %1528 = vmatpush1.bf16.msra.mxu0 %v550
    %1529 = vmatprep.subr.bf16.mxu0 %v538
    %1530 = vmatpush1.bf16.msra.mxu0 %v537
    %1531 = vmatprep.subr.bf16.mxu0 %v525
    %1532 = vmatpush1.bf16.msra.mxu0 %v524
    %1533 = vmatprep.subr.bf16.mxu0 %v512
    %1534 = vmatpush1.bf16.msra.mxu0 %v511
    %1535 = vmatprep.subr.bf16.mxu0 %v707
    %1536 = vmatpush2.bf16.msra.mxu0 %v706
    %1537 = vmatprep.subr.bf16.mxu0 %v694
    %1538 = vmatpush2.bf16.msra.mxu0 %v693
    %1539 = vmatprep.subr.bf16.mxu0 %v681
    %1540 = vmatpush2.bf16.msra.mxu0 %v680
    %1541 = vmatprep.subr.bf16.mxu0 %v668
    %1542 = vmatpush2.bf16.msra.mxu0 %v667
    %1543 = vmatprep.subr.bf16.mxu0 %v655
    %1544 = vmatpush2.bf16.msra.mxu0 %v654
    %1545 = vmatprep.subr.bf16.mxu0 %v642
    %1546 = vmatpush2.bf16.msra.mxu0 %v641
    %1547 = vmatprep.subr.bf16.mxu0 %v629
    %1548 = vmatpush2.bf16.msra.mxu0 %v628
    %1549 = vmatprep.subr.bf16.mxu0 %v616
    %1550 = vmatpush2.bf16.msra.mxu0 %v615
    %1551 = vmatprep.mubr.bf16.mxu0 %v1139
    %1552 = vmatmul.mubr.bf16.gmra.mxu0 %v1138
    %v1553 = vpop.f32.mrf.mxu0
    %v1554 = vadd.f32 0.0, %v1553
    %v1555 = vpop.f32.mrf.mxu0
    %v1556 = vadd.f32 0.0, %v1555
    %v1557 = vpop.f32.mrf.mxu0
    %v1558 = vpop.f32.mrf.mxu0
    %1559 = vdwg.mxu0
    %1560 = vmatprep.subr.bf16.mxu0 %v811
    %1561 = vmatpush1.bf16.msra.mxu0 %v810
    %1562 = vmatprep.subr.bf16.mxu0 %v798
    %1563 = vmatpush1.bf16.msra.mxu0 %v797
    %1564 = vmatprep.subr.bf16.mxu0 %v785
    %1565 = vmatpush1.bf16.msra.mxu0 %v784
    %1566 = vmatprep.subr.bf16.mxu0 %v772
    %1567 = vmatpush1.bf16.msra.mxu0 %v771
    %1568 = vmatprep.subr.bf16.mxu0 %v759
    %1569 = vmatpush1.bf16.msra.mxu0 %v758
    %1570 = vmatprep.subr.bf16.mxu0 %v746
    %1571 = vmatpush1.bf16.msra.mxu0 %v745
    %1572 = vmatprep.subr.bf16.mxu0 %v733
    %1573 = vmatpush1.bf16.msra.mxu0 %v732
    %1574 = vmatprep.subr.bf16.mxu0 %v720
    %1575 = vmatpush1.bf16.msra.mxu0 %v719
    %1576 = vmatprep.subr.bf16.mxu0 %v915
    %1577 = vmatpush2.bf16.msra.mxu0 %v914
    %1578 = vmatprep.subr.bf16.mxu0 %v902
    %1579 = vmatpush2.bf16.msra.mxu0 %v901
    %1580 = vmatprep.subr.bf16.mxu0 %v889
    %1581 = vmatpush2.bf16.msra.mxu0 %v888
    %1582 = vmatprep.subr.bf16.mxu0 %v876
    %1583 = vmatpush2.bf16.msra.mxu0 %v875
    %1584 = vmatprep.subr.bf16.mxu0 %v863
    %1585 = vmatpush2.bf16.msra.mxu0 %v862
    %1586 = vmatprep.subr.bf16.mxu0 %v850
    %1587 = vmatpush2.bf16.msra.mxu0 %v849
    %1588 = vmatprep.subr.bf16.mxu0 %v837
    %1589 = vmatpush2.bf16.msra.mxu0 %v836
    %1590 = vmatprep.subr.bf16.mxu0 %v824
    %1591 = vmatpush2.bf16.msra.mxu0 %v823
    %1592 = vmatprep.mubr.bf16.mxu0 %v1141
    %1593 = vmatmul.mubr.bf16.gmra.mxu0 %v1140
    %v1594 = vpop.f32.mrf.mxu0
    %v1595 = vadd.f32 %v1554, %v1594
    %v1596 = vpop.f32.mrf.mxu0
    %v1597 = vadd.f32 %v1556, %v1596
    %v1598 = vpop.f32.mrf.mxu0
    %v1599 = vpop.f32.mrf.mxu0
    %1600 = vdwg.mxu0
    %1601 = vmatprep.subr.bf16.mxu0 %v1019
    %1602 = vmatpush1.bf16.msra.mxu0 %v1018
    %1603 = vmatprep.subr.bf16.mxu0 %v1006
    %1604 = vmatpush1.bf16.msra.mxu0 %v1005
    %1605 = vmatprep.subr.bf16.mxu0 %v993
    %1606 = vmatpush1.bf16.msra.mxu0 %v992
    %1607 = vmatprep.subr.bf16.mxu0 %v980
    %1608 = vmatpush1.bf16.msra.mxu0 %v979
    %1609 = vmatprep.subr.bf16.mxu0 %v967
    %1610 = vmatpush1.bf16.msra.mxu0 %v966
    %1611 = vmatprep.subr.bf16.mxu0 %v954
    %1612 = vmatpush1.bf16.msra.mxu0 %v953
    %1613 = vmatprep.subr.bf16.mxu0 %v941
    %1614 = vmatpush1.bf16.msra.mxu0 %v940
    %1615 = vmatprep.subr.bf16.mxu0 %v928
    %1616 = vmatpush1.bf16.msra.mxu0 %v927
    %1617 = vmatprep.subr.bf16.mxu0 %v1123
    %1618 = vmatpush2.bf16.msra.mxu0 %v1122
    %1619 = vmatprep.subr.bf16.mxu0 %v1110
    %1620 = vmatpush2.bf16.msra.mxu0 %v1109
    %1621 = vmatprep.subr.bf16.mxu0 %v1097
    %1622 = vmatpush2.bf16.msra.mxu0 %v1096
    %1623 = vmatprep.subr.bf16.mxu0 %v1084
    %1624 = vmatpush2.bf16.msra.mxu0 %v1083
    %1625 = vmatprep.subr.bf16.mxu0 %v1071
    %1626 = vmatpush2.bf16.msra.mxu0 %v1070
    %1627 = vmatprep.subr.bf16.mxu0 %v1058
    %1628 = vmatpush2.bf16.msra.mxu0 %v1057
    %1629 = vmatprep.subr.bf16.mxu0 %v1045
    %1630 = vmatpush2.bf16.msra.mxu0 %v1044
    %1631 = vmatprep.subr.bf16.mxu0 %v1032
    %1632 = vmatpush2.bf16.msra.mxu0 %v1031
    %1633 = vmatprep.mubr.bf16.mxu0 %v1143
    %1634 = vmatmul.mubr.bf16.gmra.mxu0 %v1142
    %v1635 = vpop.f32.mrf.mxu0
    %v1636 = vadd.f32 %v1595, %v1635
    %v1637 = vpop.f32.mrf.mxu0
    %v1638 = vadd.f32 %v1597, %v1637
    %v1639 = vpop.f32.mrf.mxu0
    %v1640 = vpop.f32.mrf.mxu0
    %1641 = vdwg.mxu0
    %1642 = vmatprep.subr.bf16.mxu0 %v605
    %1643 = vmatpush1.bf16.msra.mxu0 %v604
    %1644 = vmatprep.subr.bf16.mxu0 %v592
    %1645 = vmatpush1.bf16.msra.mxu0 %v591
    %1646 = vmatprep.subr.bf16.mxu0 %v579
    %1647 = vmatpush1.bf16.msra.mxu0 %v578
    %1648 = vmatprep.subr.bf16.mxu0 %v566
    %1649 = vmatpush1.bf16.msra.mxu0 %v565
    %1650 = vmatprep.subr.bf16.mxu0 %v553
    %1651 = vmatpush1.bf16.msra.mxu0 %v552
    %1652 = vmatprep.subr.bf16.mxu0 %v540
    %1653 = vmatpush1.bf16.msra.mxu0 %v539
    %1654 = vmatprep.subr.bf16.mxu0 %v527
    %1655 = vmatpush1.bf16.msra.mxu0 %v526
    %1656 = vmatprep.subr.bf16.mxu0 %v514
    %1657 = vmatpush1.bf16.msra.mxu0 %v513
    %1658 = vmatprep.subr.bf16.mxu0 %v709
    %1659 = vmatpush2.bf16.msra.mxu0 %v708
    %1660 = vmatprep.subr.bf16.mxu0 %v696
    %1661 = vmatpush2.bf16.msra.mxu0 %v695
    %1662 = vmatprep.subr.bf16.mxu0 %v683
    %1663 = vmatpush2.bf16.msra.mxu0 %v682
    %1664 = vmatprep.subr.bf16.mxu0 %v670
    %1665 = vmatpush2.bf16.msra.mxu0 %v669
    %1666 = vmatprep.subr.bf16.mxu0 %v657
    %1667 = vmatpush2.bf16.msra.mxu0 %v656
    %1668 = vmatprep.subr.bf16.mxu0 %v644
    %1669 = vmatpush2.bf16.msra.mxu0 %v643
    %1670 = vmatprep.subr.bf16.mxu0 %v631
    %1671 = vmatpush2.bf16.msra.mxu0 %v630
    %1672 = vmatprep.subr.bf16.mxu0 %v618
    %1673 = vmatpush2.bf16.msra.mxu0 %v617
    %1674 = vmatprep.mubr.bf16.mxu0 %v1139
    %1675 = vmatmul.mubr.bf16.gmra.mxu0 %v1138
    %v1676 = vpop.f32.mrf.mxu0
    %v1677 = vadd.f32 0.0, %v1676
    %v1678 = vpop.f32.mrf.mxu0
    %v1679 = vadd.f32 0.0, %v1678
    %v1680 = vpop.f32.mrf.mxu0
    %v1681 = vpop.f32.mrf.mxu0
    %1682 = vdwg.mxu0
    %1683 = vmatprep.subr.bf16.mxu0 %v813
    %1684 = vmatpush1.bf16.msra.mxu0 %v812
    %1685 = vmatprep.subr.bf16.mxu0 %v800
    %1686 = vmatpush1.bf16.msra.mxu0 %v799
    %1687 = vmatprep.subr.bf16.mxu0 %v787
    %1688 = vmatpush1.bf16.msra.mxu0 %v786
    %1689 = vmatprep.subr.bf16.mxu0 %v774
    %1690 = vmatpush1.bf16.msra.mxu0 %v773
    %1691 = vmatprep.subr.bf16.mxu0 %v761
    %1692 = vmatpush1.bf16.msra.mxu0 %v760
    %1693 = vmatprep.subr.bf16.mxu0 %v748
    %1694 = vmatpush1.bf16.msra.mxu0 %v747
    %1695 = vmatprep.subr.bf16.mxu0 %v735
    %1696 = vmatpush1.bf16.msra.mxu0 %v734
    %1697 = vmatprep.subr.bf16.mxu0 %v722
    %1698 = vmatpush1.bf16.msra.mxu0 %v721
    %1699 = vmatprep.subr.bf16.mxu0 %v917
    %1700 = vmatpush2.bf16.msra.mxu0 %v916
    %1701 = vmatprep.subr.bf16.mxu0 %v904
    %1702 = vmatpush2.bf16.msra.mxu0 %v903
    %1703 = vmatprep.subr.bf16.mxu0 %v891
    %1704 = vmatpush2.bf16.msra.mxu0 %v890
    %1705 = vmatprep.subr.bf16.mxu0 %v878
    %1706 = vmatpush2.bf16.msra.mxu0 %v877
    %1707 = vmatprep.subr.bf16.mxu0 %v865
    %1708 = vmatpush2.bf16.msra.mxu0 %v864
    %1709 = vmatprep.subr.bf16.mxu0 %v852
    %1710 = vmatpush2.bf16.msra.mxu0 %v851
    %1711 = vmatprep.subr.bf16.mxu0 %v839
    %1712 = vmatpush2.bf16.msra.mxu0 %v838
    %1713 = vmatprep.subr.bf16.mxu0 %v826
    %1714 = vmatpush2.bf16.msra.mxu0 %v825
    %1715 = vmatprep.mubr.bf16.mxu0 %v1141
    %1716 = vmatmul.mubr.bf16.gmra.mxu0 %v1140
    %v1717 = vpop.f32.mrf.mxu0
    %v1718 = vadd.f32 %v1677, %v1717
    %v1719 = vpop.f32.mrf.mxu0
    %v1720 = vadd.f32 %v1679, %v1719
    %v1721 = vpop.f32.mrf.mxu0
    %v1722 = vpop.f32.mrf.mxu0
    %1723 = vdwg.mxu0
    %1724 = vmatprep.subr.bf16.mxu0 %v1021
    %1725 = vmatpush1.bf16.msra.mxu0 %v1020
    %1726 = vmatprep.subr.bf16.mxu0 %v1008
    %1727 = vmatpush1.bf16.msra.mxu0 %v1007
    %1728 = vmatprep.subr.bf16.mxu0 %v995
    %1729 = vmatpush1.bf16.msra.mxu0 %v994
    %1730 = vmatprep.subr.bf16.mxu0 %v982
    %1731 = vmatpush1.bf16.msra.mxu0 %v981
    %1732 = vmatprep.subr.bf16.mxu0 %v969
    %1733 = vmatpush1.bf16.msra.mxu0 %v968
    %1734 = vmatprep.subr.bf16.mxu0 %v956
    %1735 = vmatpush1.bf16.msra.mxu0 %v955
    %1736 = vmatprep.subr.bf16.mxu0 %v943
    %1737 = vmatpush1.bf16.msra.mxu0 %v942
    %1738 = vmatprep.subr.bf16.mxu0 %v930
    %1739 = vmatpush1.bf16.msra.mxu0 %v929
    %1740 = vmatprep.subr.bf16.mxu0 %v1125
    %1741 = vmatpush2.bf16.msra.mxu0 %v1124
    %1742 = vmatprep.subr.bf16.mxu0 %v1112
    %1743 = vmatpush2.bf16.msra.mxu0 %v1111
    %1744 = vmatprep.subr.bf16.mxu0 %v1099
    %1745 = vmatpush2.bf16.msra.mxu0 %v1098
    %1746 = vmatprep.subr.bf16.mxu0 %v1086
    %1747 = vmatpush2.bf16.msra.mxu0 %v1085
    %1748 = vmatprep.subr.bf16.mxu0 %v1073
    %1749 = vmatpush2.bf16.msra.mxu0 %v1072
    %1750 = vmatprep.subr.bf16.mxu0 %v1060
    %1751 = vmatpush2.bf16.msra.mxu0 %v1059
    %1752 = vmatprep.subr.bf16.mxu0 %v1047
    %1753 = vmatpush2.bf16.msra.mxu0 %v1046
    %1754 = vmatprep.subr.bf16.mxu0 %v1034
    %1755 = vmatpush2.bf16.msra.mxu0 %v1033
    %1756 = vmatprep.mubr.bf16.mxu0 %v1143
    %1757 = vmatmul.mubr.bf16.gmra.mxu0 %v1142
    %v1758 = vpop.f32.mrf.mxu0
    %v1759 = vadd.f32 %v1718, %v1758
    %v1760 = vpop.f32.mrf.mxu0
    %v1761 = vadd.f32 %v1720, %v1760
    %v1762 = vpop.f32.mrf.mxu0
    %v1763 = vpop.f32.mrf.mxu0
    %1764 = vdwg.mxu0
    %1765 = vmatprep.subr.bf16.mxu0 %v607
    %1766 = vmatpush1.bf16.msra.mxu0 %v606
    %1767 = vmatprep.subr.bf16.mxu0 %v594
    %1768 = vmatpush1.bf16.msra.mxu0 %v593
    %1769 = vmatprep.subr.bf16.mxu0 %v581
    %1770 = vmatpush1.bf16.msra.mxu0 %v580
    %1771 = vmatprep.subr.bf16.mxu0 %v568
    %1772 = vmatpush1.bf16.msra.mxu0 %v567
    %1773 = vmatprep.subr.bf16.mxu0 %v555
    %1774 = vmatpush1.bf16.msra.mxu0 %v554
    %1775 = vmatprep.subr.bf16.mxu0 %v542
    %1776 = vmatpush1.bf16.msra.mxu0 %v541
    %1777 = vmatprep.subr.bf16.mxu0 %v529
    %1778 = vmatpush1.bf16.msra.mxu0 %v528
    %1779 = vmatprep.subr.bf16.mxu0 %v516
    %1780 = vmatpush1.bf16.msra.mxu0 %v515
    %1781 = vmatprep.subr.bf16.mxu0 %v711
    %1782 = vmatpush2.bf16.msra.mxu0 %v710
    %1783 = vmatprep.subr.bf16.mxu0 %v698
    %1784 = vmatpush2.bf16.msra.mxu0 %v697
    %1785 = vmatprep.subr.bf16.mxu0 %v685
    %1786 = vmatpush2.bf16.msra.mxu0 %v684
    %1787 = vmatprep.subr.bf16.mxu0 %v672
    %1788 = vmatpush2.bf16.msra.mxu0 %v671
    %1789 = vmatprep.subr.bf16.mxu0 %v659
    %1790 = vmatpush2.bf16.msra.mxu0 %v658
    %1791 = vmatprep.subr.bf16.mxu0 %v646
    %1792 = vmatpush2.bf16.msra.mxu0 %v645
    %1793 = vmatprep.subr.bf16.mxu0 %v633
    %1794 = vmatpush2.bf16.msra.mxu0 %v632
    %1795 = vmatprep.subr.bf16.mxu0 %v620
    %1796 = vmatpush2.bf16.msra.mxu0 %v619
    %1797 = vmatprep.mubr.bf16.mxu0 %v1139
    %1798 = vmatmul.mubr.bf16.gmra.mxu0 %v1138
    %v1799 = vpop.f32.mrf.mxu0
    %v1800 = vadd.f32 0.0, %v1799
    %v1801 = vpop.f32.mrf.mxu0
    %v1802 = vadd.f32 0.0, %v1801
    %v1803 = vpop.f32.mrf.mxu0
    %v1804 = vpop.f32.mrf.mxu0
    %1805 = vdwg.mxu0
    %1806 = vmatprep.subr.bf16.mxu0 %v815
    %1807 = vmatpush1.bf16.msra.mxu0 %v814
    %1808 = vmatprep.subr.bf16.mxu0 %v802
    %1809 = vmatpush1.bf16.msra.mxu0 %v801
    %1810 = vmatprep.subr.bf16.mxu0 %v789
    %1811 = vmatpush1.bf16.msra.mxu0 %v788
    %1812 = vmatprep.subr.bf16.mxu0 %v776
    %1813 = vmatpush1.bf16.msra.mxu0 %v775
    %1814 = vmatprep.subr.bf16.mxu0 %v763
    %1815 = vmatpush1.bf16.msra.mxu0 %v762
    %1816 = vmatprep.subr.bf16.mxu0 %v750
    %1817 = vmatpush1.bf16.msra.mxu0 %v749
    %1818 = vmatprep.subr.bf16.mxu0 %v737
    %1819 = vmatpush1.bf16.msra.mxu0 %v736
    %1820 = vmatprep.subr.bf16.mxu0 %v724
    %1821 = vmatpush1.bf16.msra.mxu0 %v723
    %1822 = vmatprep.subr.bf16.mxu0 %v919
    %1823 = vmatpush2.bf16.msra.mxu0 %v918
    %1824 = vmatprep.subr.bf16.mxu0 %v906
    %1825 = vmatpush2.bf16.msra.mxu0 %v905
    %1826 = vmatprep.subr.bf16.mxu0 %v893
    %1827 = vmatpush2.bf16.msra.mxu0 %v892
    %1828 = vmatprep.subr.bf16.mxu0 %v880
    %1829 = vmatpush2.bf16.msra.mxu0 %v879
    %1830 = vmatprep.subr.bf16.mxu0 %v867
    %1831 = vmatpush2.bf16.msra.mxu0 %v866
    %1832 = vmatprep.subr.bf16.mxu0 %v854
    %1833 = vmatpush2.bf16.msra.mxu0 %v853
    %1834 = vmatprep.subr.bf16.mxu0 %v841
    %1835 = vmatpush2.bf16.msra.mxu0 %v840
    %1836 = vmatprep.subr.bf16.mxu0 %v828
    %1837 = vmatpush2.bf16.msra.mxu0 %v827
    %1838 = vmatprep.mubr.bf16.mxu0 %v1141
    %1839 = vmatmul.mubr.bf16.gmra.mxu0 %v1140
    %v1840 = vpop.f32.mrf.mxu0
    %v1841 = vadd.f32 %v1800, %v1840
    %v1842 = vpop.f32.mrf.mxu0
    %v1843 = vadd.f32 %v1802, %v1842
    %v1844 = vpop.f32.mrf.mxu0
    %v1845 = vpop.f32.mrf.mxu0
    %1846 = vdwg.mxu0
    %1847 = vmatprep.subr.bf16.mxu0 %v1023
    %1848 = vmatpush1.bf16.msra.mxu0 %v1022
    %1849 = vmatprep.subr.bf16.mxu0 %v1010
    %1850 = vmatpush1.bf16.msra.mxu0 %v1009
    %1851 = vmatprep.subr.bf16.mxu0 %v997
    %1852 = vmatpush1.bf16.msra.mxu0 %v996
    %1853 = vmatprep.subr.bf16.mxu0 %v984
    %1854 = vmatpush1.bf16.msra.mxu0 %v983
    %1855 = vmatprep.subr.bf16.mxu0 %v971
    %1856 = vmatpush1.bf16.msra.mxu0 %v970
    %1857 = vmatprep.subr.bf16.mxu0 %v958
    %1858 = vmatpush1.bf16.msra.mxu0 %v957
    %1859 = vmatprep.subr.bf16.mxu0 %v945
    %1860 = vmatpush1.bf16.msra.mxu0 %v944
    %1861 = vmatprep.subr.bf16.mxu0 %v932
    %1862 = vmatpush1.bf16.msra.mxu0 %v931
    %1863 = vmatprep.subr.bf16.mxu0 %v1127
    %1864 = vmatpush2.bf16.msra.mxu0 %v1126
    %1865 = vmatprep.subr.bf16.mxu0 %v1114
    %1866 = vmatpush2.bf16.msra.mxu0 %v1113
    %1867 = vmatprep.subr.bf16.mxu0 %v1101
    %1868 = vmatpush2.bf16.msra.mxu0 %v1100
    %1869 = vmatprep.subr.bf16.mxu0 %v1088
    %1870 = vmatpush2.bf16.msra.mxu0 %v1087
    %1871 = vmatprep.subr.bf16.mxu0 %v1075
    %1872 = vmatpush2.bf16.msra.mxu0 %v1074
    %1873 = vmatprep.subr.bf16.mxu0 %v1062
    %1874 = vmatpush2.bf16.msra.mxu0 %v1061
    %1875 = vmatprep.subr.bf16.mxu0 %v1049
    %1876 = vmatpush2.bf16.msra.mxu0 %v1048
    %1877 = vmatprep.subr.bf16.mxu0 %v1036
    %1878 = vmatpush2.bf16.msra.mxu0 %v1035
    %1879 = vmatprep.mubr.bf16.mxu0 %v1143
    %1880 = vmatmul.mubr.bf16.gmra.mxu0 %v1142
    %v1881 = vpop.f32.mrf.mxu0
    %v1882 = vadd.f32 %v1841, %v1881
    %v1883 = vpop.f32.mrf.mxu0
    %v1884 = vadd.f32 %v1843, %v1883
    %v1885 = vpop.f32.mrf.mxu0
    %v1886 = vpop.f32.mrf.mxu0
    %1887 = vdwg.mxu0
    %1888 = vmatprep.subr.bf16.mxu0 0
    %1889 = vmatpush1.bf16.msra.mxu0 %v608
    %1890 = vmatprep.subr.bf16.mxu0 0
    %1891 = vmatpush1.bf16.msra.mxu0 %v595
    %1892 = vmatprep.subr.bf16.mxu0 0
    %1893 = vmatpush1.bf16.msra.mxu0 %v582
    %1894 = vmatprep.subr.bf16.mxu0 0
    %1895 = vmatpush1.bf16.msra.mxu0 %v569
    %1896 = vmatprep.subr.bf16.mxu0 0
    %1897 = vmatpush1.bf16.msra.mxu0 %v556
    %1898 = vmatprep.subr.bf16.mxu0 0
    %1899 = vmatpush1.bf16.msra.mxu0 %v543
    %1900 = vmatprep.subr.bf16.mxu0 0
    %1901 = vmatpush1.bf16.msra.mxu0 %v530
    %1902 = vmatprep.subr.bf16.mxu0 0
    %1903 = vmatpush1.bf16.msra.mxu0 %v517
    %1904 = vmatprep.subr.bf16.mxu0 0
    %1905 = vmatpush2.bf16.msra.mxu0 %v712
    %1906 = vmatprep.subr.bf16.mxu0 0
    %1907 = vmatpush2.bf16.msra.mxu0 %v699
    %1908 = vmatprep.subr.bf16.mxu0 0
    %1909 = vmatpush2.bf16.msra.mxu0 %v686
    %1910 = vmatprep.subr.bf16.mxu0 0
    %1911 = vmatpush2.bf16.msra.mxu0 %v673
    %1912 = vmatprep.subr.bf16.mxu0 0
    %1913 = vmatpush2.bf16.msra.mxu0 %v660
    %1914 = vmatprep.subr.bf16.mxu0 0
    %1915 = vmatpush2.bf16.msra.mxu0 %v647
    %1916 = vmatprep.subr.bf16.mxu0 0
    %1917 = vmatpush2.bf16.msra.mxu0 %v634
    %1918 = vmatprep.subr.bf16.mxu0 0
    %1919 = vmatpush2.bf16.msra.mxu0 %v621
    %1920 = vmatprep.mubr.bf16.mxu0 %v1139
    %1921 = vmatmul.mubr.bf16.gmra.mxu0 %v1138
    %v1922 = vpop.f32.mrf.mxu0
    %v1923 = vadd.f32 0.0, %v1922
    %v1924 = vpop.f32.mrf.mxu0
    %v1925 = vpop.f32.mrf.mxu0
    %v1926 = vpop.f32.mrf.mxu0
    %1927 = vdwg.mxu0
    %1928 = vmatprep.subr.bf16.mxu0 0
    %1929 = vmatpush1.bf16.msra.mxu0 %v816
    %1930 = vmatprep.subr.bf16.mxu0 0
    %1931 = vmatpush1.bf16.msra.mxu0 %v803
    %1932 = vmatprep.subr.bf16.mxu0 0
    %1933 = vmatpush1.bf16.msra.mxu0 %v790
    %1934 = vmatprep.subr.bf16.mxu0 0
    %1935 = vmatpush1.bf16.msra.mxu0 %v777
    %1936 = vmatprep.subr.bf16.mxu0 0
    %1937 = vmatpush1.bf16.msra.mxu0 %v764
    %1938 = vmatprep.subr.bf16.mxu0 0
    %1939 = vmatpush1.bf16.msra.mxu0 %v751
    %1940 = vmatprep.subr.bf16.mxu0 0
    %1941 = vmatpush1.bf16.msra.mxu0 %v738
    %1942 = vmatprep.subr.bf16.mxu0 0
    %1943 = vmatpush1.bf16.msra.mxu0 %v725
    %1944 = vmatprep.subr.bf16.mxu0 0
    %1945 = vmatpush2.bf16.msra.mxu0 %v920
    %1946 = vmatprep.subr.bf16.mxu0 0
    %1947 = vmatpush2.bf16.msra.mxu0 %v907
    %1948 = vmatprep.subr.bf16.mxu0 0
    %1949 = vmatpush2.bf16.msra.mxu0 %v894
    %1950 = vmatprep.subr.bf16.mxu0 0
    %1951 = vmatpush2.bf16.msra.mxu0 %v881
    %1952 = vmatprep.subr.bf16.mxu0 0
    %1953 = vmatpush2.bf16.msra.mxu0 %v868
    %1954 = vmatprep.subr.bf16.mxu0 0
    %1955 = vmatpush2.bf16.msra.mxu0 %v855
    %1956 = vmatprep.subr.bf16.mxu0 0
    %1957 = vmatpush2.bf16.msra.mxu0 %v842
    %1958 = vmatprep.subr.bf16.mxu0 0
    %1959 = vmatpush2.bf16.msra.mxu0 %v829
    %1960 = vmatprep.mubr.bf16.mxu0 %v1141
    %1961 = vmatmul.mubr.bf16.gmra.mxu0 %v1140
    %v1962 = vpop.f32.mrf.mxu0
    %v1963 = vadd.f32 %v1923, %v1962
    %v1964 = vpop.f32.mrf.mxu0
    %v1965 = vpop.f32.mrf.mxu0
    %v1966 = vpop.f32.mrf.mxu0
    %1967 = vdwg.mxu0
    %1968 = vmatprep.subr.bf16.mxu0 0
    %1969 = vmatpush1.bf16.msra.mxu0 %v1024
    %1970 = vmatprep.subr.bf16.mxu0 0
    %1971 = vmatpush1.bf16.msra.mxu0 %v1011
    %1972 = vmatprep.subr.bf16.mxu0 0
    %1973 = vmatpush1.bf16.msra.mxu0 %v998
    %1974 = vmatprep.subr.bf16.mxu0 0
    %1975 = vmatpush1.bf16.msra.mxu0 %v985
    %1976 = vmatprep.subr.bf16.mxu0 0
    %1977 = vmatpush1.bf16.msra.mxu0 %v972
    %1978 = vmatprep.subr.bf16.mxu0 0
    %1979 = vmatpush1.bf16.msra.mxu0 %v959
    %1980 = vmatprep.subr.bf16.mxu0 0
    %1981 = vmatpush1.bf16.msra.mxu0 %v946
    %1982 = vmatprep.subr.bf16.mxu0 0
    %1983 = vmatpush1.bf16.msra.mxu0 %v933
    %1984 = vmatprep.subr.bf16.mxu0 0
    %1985 = vmatpush2.bf16.msra.mxu0 %v1128
    %1986 = vmatprep.subr.bf16.mxu0 0
    %1987 = vmatpush2.bf16.msra.mxu0 %v1115
    %1988 = vmatprep.subr.bf16.mxu0 0
    %1989 = vmatpush2.bf16.msra.mxu0 %v1102
    %1990 = vmatprep.subr.bf16.mxu0 0
    %1991 = vmatpush2.bf16.msra.mxu0 %v1089
    %1992 = vmatprep.subr.bf16.mxu0 0
    %1993 = vmatpush2.bf16.msra.mxu0 %v1076
    %1994 = vmatprep.subr.bf16.mxu0 0
    %1995 = vmatpush2.bf16.msra.mxu0 %v1063
    %1996 = vmatprep.subr.bf16.mxu0 0
    %1997 = vmatpush2.bf16.msra.mxu0 %v1050
    %1998 = vmatprep.subr.bf16.mxu0 0
    %1999 = vmatpush2.bf16.msra.mxu0 %v1037
    %2000 = vmatprep.mubr.bf16.mxu0 %v1143
    %2001 = vmatmul.mubr.bf16.gmra.mxu0 %v1142
    %v2002 = vpop.f32.mrf.mxu0
    %v2003 = vadd.f32 %v1963, %v2002
    %v2004 = vpop.f32.mrf.mxu0
    %v2005 = vpop.f32.mrf.mxu0
    %v2006 = vpop.f32.mrf.mxu0
    %2007 = vdwg.mxu0
    %v2008 = vld [vmem:[#allocation7] sm:$0xff]
    %v2009 = vld [vmem:[#allocation7 + $0x8] sm:$0x1f]
    %v2012 = vlaneseq
    %v2013 = vshrl.u32 %v2012, 7
    %v2014 = vsub.s32 0, %v2013
    %v2015 = vrot.slane %v2008, %v2014
    %v2016 = vlaneseq
    %v2017 = vshrl.u32 %v2016, 7
    %v2018 = vsub.s32 1, %v2017
    %v2019 = vrot.slane %v2008, %v2018
    %v2020 = vlaneseq
    %v2021 = vshrl.u32 %v2020, 7
    %v2022 = vsub.s32 2, %v2021
    %v2023 = vrot.slane %v2008, %v2022
    %v2024 = vlaneseq
    %v2025 = vshrl.u32 %v2024, 7
    %v2026 = vsub.s32 3, %v2025
    %v2027 = vrot.slane %v2008, %v2026
    %v2028 = vlaneseq
    %v2029 = vshrl.u32 %v2028, 7
    %v2030 = vsub.s32 4, %v2029
    %v2031 = vrot.slane %v2008, %v2030
    %v2032 = vlaneseq
    %v2033 = vshrl.u32 %v2032, 7
    %v2034 = vsub.s32 5, %v2033
    %v2035 = vrot.slane %v2008, %v2034
    %v2036 = vlaneseq
    %v2037 = vshrl.u32 %v2036, 7
    %v2038 = vsub.s32 6, %v2037
    %v2039 = vrot.slane %v2008, %v2038
    %v2040 = vlaneseq
    %v2041 = vshrl.u32 %v2040, 7
    %v2042 = vsub.s32 7, %v2041
    %v2043 = vrot.slane %v2008, %v2042
    %v2044 = vlaneseq
    %v2045 = vshrl.u32 %v2044, 7
    %v2046 = vsub.s32 0, %v2045
    %v2047 = vrot.slane %v2009, %v2046
    %v2048 = vlaneseq
    %v2049 = vshrl.u32 %v2048, 7
    %v2050 = vsub.s32 1, %v2049
    %v2051 = vrot.slane %v2009, %v2050
    %v2052 = vlaneseq
    %v2053 = vshrl.u32 %v2052, 7
    %v2054 = vsub.s32 2, %v2053
    %v2055 = vrot.slane %v2009, %v2054
    %v2056 = vlaneseq
    %v2057 = vshrl.u32 %v2056, 7
    %v2058 = vsub.s32 3, %v2057
    %v2059 = vrot.slane %v2009, %v2058
    %v2060 = vlaneseq
    %v2061 = vshrl.u32 %v2060, 7
    %v2062 = vsub.s32 4, %v2061
    %v2063 = vrot.slane %v2009, %v2062
    %v2077 = vmul.f32 %v1267, %v2015
    %v2078 = vmul.f32 %v1269, %v2019
    %v2079 = vmul.f32 %v1390, %v2023
    %v2080 = vmul.f32 %v1392, %v2027
    %v2081 = vmul.f32 %v1513, %v2031
    %v2082 = vmul.f32 %v1515, %v2035
    %v2083 = vmul.f32 %v1636, %v2039
    %v2084 = vmul.f32 %v1638, %v2043
    %v2085 = vmul.f32 %v1759, %v2047
    %v2086 = vmul.f32 %v1761, %v2051
    %v2087 = vmul.f32 %v1882, %v2055
    %v2088 = vmul.f32 %v1884, %v2059
    %v2089 = vmul.f32 %v2003, %v2063
    %v2090 = vld [vmem:[#allocation8] sm:$0xff]
    %v2091 = vld [vmem:[#allocation8 + $0x8] sm:$0x1f]
    %v2094 = vlaneseq
    %v2095 = vshrl.u32 %v2094, 7
    %v2096 = vsub.s32 0, %v2095
    %v2097 = vrot.slane %v2090, %v2096
    %v2098 = vlaneseq
    %v2099 = vshrl.u32 %v2098, 7
    %v2100 = vsub.s32 1, %v2099
    %v2101 = vrot.slane %v2090, %v2100
    %v2102 = vlaneseq
    %v2103 = vshrl.u32 %v2102, 7
    %v2104 = vsub.s32 2, %v2103
    %v2105 = vrot.slane %v2090, %v2104
    %v2106 = vlaneseq
    %v2107 = vshrl.u32 %v2106, 7
    %v2108 = vsub.s32 3, %v2107
    %v2109 = vrot.slane %v2090, %v2108
    %v2110 = vlaneseq
    %v2111 = vshrl.u32 %v2110, 7
    %v2112 = vsub.s32 4, %v2111
    %v2113 = vrot.slane %v2090, %v2112
    %v2114 = vlaneseq
    %v2115 = vshrl.u32 %v2114, 7
    %v2116 = vsub.s32 5, %v2115
    %v2117 = vrot.slane %v2090, %v2116
    %v2118 = vlaneseq
    %v2119 = vshrl.u32 %v2118, 7
    %v2120 = vsub.s32 6, %v2119
    %v2121 = vrot.slane %v2090, %v2120
    %v2122 = vlaneseq
    %v2123 = vshrl.u32 %v2122, 7
    %v2124 = vsub.s32 7, %v2123
    %v2125 = vrot.slane %v2090, %v2124
    %v2126 = vlaneseq
    %v2127 = vshrl.u32 %v2126, 7
    %v2128 = vsub.s32 0, %v2127
    %v2129 = vrot.slane %v2091, %v2128
    %v2130 = vlaneseq
    %v2131 = vshrl.u32 %v2130, 7
    %v2132 = vsub.s32 1, %v2131
    %v2133 = vrot.slane %v2091, %v2132
    %v2134 = vlaneseq
    %v2135 = vshrl.u32 %v2134, 7
    %v2136 = vsub.s32 2, %v2135
    %v2137 = vrot.slane %v2091, %v2136
    %v2138 = vlaneseq
    %v2139 = vshrl.u32 %v2138, 7
    %v2140 = vsub.s32 3, %v2139
    %v2141 = vrot.slane %v2091, %v2140
    %v2142 = vlaneseq
    %v2143 = vshrl.u32 %v2142, 7
    %v2144 = vsub.s32 4, %v2143
    %v2145 = vrot.slane %v2091, %v2144
    %v2159 = vadd.f32 %v2077, %v2097
    %v2160 = vadd.f32 %v2078, %v2101
    %v2161 = vadd.f32 %v2079, %v2105
    %v2162 = vadd.f32 %v2080, %v2109
    %v2163 = vadd.f32 %v2081, %v2113
    %v2164 = vadd.f32 %v2082, %v2117
    %v2165 = vadd.f32 %v2083, %v2121
    %v2166 = vadd.f32 %v2084, %v2125
    %v2167 = vadd.f32 %v2085, %v2129
    %v2168 = vadd.f32 %v2086, %v2133
    %v2169 = vadd.f32 %v2087, %v2137
    %v2170 = vadd.f32 %v2088, %v2141
    %v2171 = vadd.f32 %v2089, %v2145
    %v2172 = vmax.f32 %v2159, 0.0
    %v2173 = vmax.f32 %v2160, 0.0
    %v2174 = vmax.f32 %v2161, 0.0
    %v2175 = vmax.f32 %v2162, 0.0
    %v2176 = vmax.f32 %v2163, 0.0
    %v2177 = vmax.f32 %v2164, 0.0
    %v2178 = vmax.f32 %v2165, 0.0
    %v2179 = vmax.f32 %v2166, 0.0
    %v2180 = vmax.f32 %v2167, 0.0
    %v2181 = vmax.f32 %v2168, 0.0
    %v2182 = vmax.f32 %v2169, 0.0
    %v2183 = vmax.f32 %v2170, 0.0
    %v2184 = vmax.f32 %v2171, 0.0
    %v2185 = vpack.c.bf16 %v2172, %v2172
    %v2186 = vpack.c.bf16 %v2173, %v2173
    %v2187 = vpack.c.bf16 %v2174, %v2174
    %v2188 = vpack.c.bf16 %v2175, %v2175
    %v2189 = vpack.c.bf16 %v2176, %v2176
    %v2190 = vpack.c.bf16 %v2177, %v2177
    %v2191 = vpack.c.bf16 %v2178, %v2178
    %v2192 = vpack.c.bf16 %v2179, %v2179
    %v2193 = vpack.c.bf16 %v2180, %v2180
    %v2194 = vpack.c.bf16 %v2181, %v2181
    %v2195 = vpack.c.bf16 %v2182, %v2182
    %v2196 = vpack.c.bf16 %v2183, %v2183
    %v2197 = vpack.c.bf16 %v2184, %v2184
    %v2198 = vld [vmem:[#allocation10] sm:$0xff]
    %v2199 = vld [vmem:[#allocation10 + $0x8] sm:$0xff]
    %v2200 = vld [vmem:[#allocation10 + $0x10] sm:$0xff]
    %v2201 = vld [vmem:[#allocation10 + $0x18] sm:$0xff]
    %v2202 = vld [vmem:[#allocation10 + $0x20] sm:$0xff]
    %v2203 = vld [vmem:[#allocation10 + $0x28] sm:$0xff]
    %v2204 = vld [vmem:[#allocation10 + $0x30] sm:$0xff]
    %v2205 = vld [vmem:[#allocation10 + $0x38] sm:$0xff]
    %v2206 = vld [vmem:[#allocation10 + $0x40] sm:$0xff]
    %v2207 = vld [vmem:[#allocation10 + $0x48] sm:$0xff]
    %v2208 = vld [vmem:[#allocation10 + $0x50] sm:$0xff]
    %v2209 = vld [vmem:[#allocation10 + $0x58] sm:$0xff]
    %v2210 = vld [vmem:[#allocation10 + $0x60] sm:$0xff]
    %v2211 = vld [vmem:[#allocation10 + $0x68] sm:$0xff]
    %v2212 = vld [vmem:[#allocation10 + $0x70] sm:$0xff]
    %v2213 = vld [vmem:[#allocation10 + $0x78] sm:$0xff]
    %v2214 = vld [vmem:[#allocation10 + $0x80] sm:$0xff]
    %v2215 = vld [vmem:[#allocation10 + $0x88] sm:$0xff]
    %v2216 = vld [vmem:[#allocation10 + $0x90] sm:$0xff]
    %v2217 = vld [vmem:[#allocation10 + $0x98] sm:$0xff]
    %v2218 = vld [vmem:[#allocation10 + $0xa0] sm:$0xff]
    %v2219 = vld [vmem:[#allocation10 + $0xa8] sm:$0xff]
    %v2220 = vld [vmem:[#allocation10 + $0xb0] sm:$0xff]
    %v2221 = vld [vmem:[#allocation10 + $0xb8] sm:$0xff]
    %v2222 = vld [vmem:[#allocation10 + $0xc0] sm:$0xff]
    %v2223 = vld [vmem:[#allocation10 + $0xc8] sm:$0xff]
    %v2224 = vld [vmem:[#allocation10 + $0xd0] sm:$0xff]
    %v2225 = vld [vmem:[#allocation10 + $0xd8] sm:$0xff]
    %v2226 = vld [vmem:[#allocation10 + $0xe0] sm:$0xff]
    %v2227 = vld [vmem:[#allocation10 + $0xe8] sm:$0xff]
    %v2228 = vld [vmem:[#allocation10 + $0xf0] sm:$0xff]
    %v2229 = vld [vmem:[#allocation10 + $0xf8] sm:$0xff]
    %v2230 = vld [vmem:[#allocation10 + $0x100] sm:$0xff]
    %v2231 = vld [vmem:[#allocation10 + $0x108] sm:$0xff]
    %v2232 = vld [vmem:[#allocation10 + $0x110] sm:$0xff]
    %v2233 = vld [vmem:[#allocation10 + $0x118] sm:$0xff]
    %v2234 = vld [vmem:[#allocation10 + $0x120] sm:$0xff]
    %v2235 = vld [vmem:[#allocation10 + $0x128] sm:$0xff]
    %v2236 = vld [vmem:[#allocation10 + $0x130] sm:$0xff]
    %v2237 = vld [vmem:[#allocation10 + $0x138] sm:$0xff]
    %v2238 = vld [vmem:[#allocation10 + $0x140] sm:$0xff]
    %v2239 = vld [vmem:[#allocation10 + $0x148] sm:$0xff]
    %v2240 = vld [vmem:[#allocation10 + $0x150] sm:$0xff]
    %v2241 = vld [vmem:[#allocation10 + $0x158] sm:$0xff]
    %v2242 = vld [vmem:[#allocation10 + $0x160] sm:$0xff]
    %v2243 = vld [vmem:[#allocation10 + $0x168] sm:$0xff]
    %v2244 = vld [vmem:[#allocation10 + $0x170] sm:$0xff]
    %v2245 = vld [vmem:[#allocation10 + $0x178] sm:$0xff]
    %v2246 = vld [vmem:[#allocation10 + $0x180] sm:$0xff]
    %v2247 = vld [vmem:[#allocation10 + $0x188] sm:$0xff]
    %v2248 = vld [vmem:[#allocation10 + $0x190] sm:$0xff]
    %v2249 = vld [vmem:[#allocation10 + $0x198] sm:$0xff]
    %v2250 = vld [vmem:[#allocation10 + $0x1a0] sm:$0xff]
    %v2251 = vld [vmem:[#allocation10 + $0x1a8] sm:$0xff]
    %v2252 = vld [vmem:[#allocation10 + $0x1b0] sm:$0xff]
    %v2253 = vld [vmem:[#allocation10 + $0x1b8] sm:$0xff]
    %v2254 = vld [vmem:[#allocation10 + $0x1c0] sm:$0xff]
    %v2255 = vld [vmem:[#allocation10 + $0x1c8] sm:$0xff]
    %v2256 = vld [vmem:[#allocation10 + $0x1d0] sm:$0xff]
    %v2257 = vld [vmem:[#allocation10 + $0x1d8] sm:$0xff]
    %v2258 = vld [vmem:[#allocation10 + $0x1e0] sm:$0xff]
    %v2259 = vld [vmem:[#allocation10 + $0x1e8] sm:$0xff]
    %v2260 = vld [vmem:[#allocation10 + $0x1f0] sm:$0xff]
    %v2261 = vld [vmem:[#allocation10 + $0x1f8] sm:$0xff]
    %v2262 = vld [vmem:[#allocation10 + $0x200] sm:$0xff]
    %v2263 = vld [vmem:[#allocation10 + $0x208] sm:$0xff]
    %v2264 = vld [vmem:[#allocation10 + $0x210] sm:$0xff]
    %v2265 = vld [vmem:[#allocation10 + $0x218] sm:$0xff]
    %v2266 = vld [vmem:[#allocation10 + $0x220] sm:$0xff]
    %v2267 = vld [vmem:[#allocation10 + $0x228] sm:$0xff]
    %v2268 = vld [vmem:[#allocation10 + $0x230] sm:$0xff]
    %v2269 = vld [vmem:[#allocation10 + $0x238] sm:$0xff]
    %v2270 = vld [vmem:[#allocation10 + $0x240] sm:$0xff]
    %v2271 = vld [vmem:[#allocation10 + $0x248] sm:$0xff]
    %v2272 = vld [vmem:[#allocation10 + $0x250] sm:$0xff]
    %v2273 = vld [vmem:[#allocation10 + $0x258] sm:$0xff]
    %v2274 = vld [vmem:[#allocation10 + $0x260] sm:$0xff]
    %v2275 = vld [vmem:[#allocation10 + $0x268] sm:$0xff]
    %v2276 = vld [vmem:[#allocation10 + $0x270] sm:$0xff]
    %v2277 = vld [vmem:[#allocation10 + $0x278] sm:$0xff]
    %v2278 = vld [vmem:[#allocation10 + $0x280] sm:$0xff]
    %v2279 = vld [vmem:[#allocation10 + $0x288] sm:$0xff]
    %v2280 = vld [vmem:[#allocation10 + $0x290] sm:$0xff]
    %v2281 = vld [vmem:[#allocation10 + $0x298] sm:$0xff]
    %v2282 = vld [vmem:[#allocation10 + $0x2a0] sm:$0xff]
    %v2283 = vld [vmem:[#allocation10 + $0x2a8] sm:$0xff]
    %v2284 = vld [vmem:[#allocation10 + $0x2b0] sm:$0xff]
    %v2285 = vld [vmem:[#allocation10 + $0x2b8] sm:$0xff]
    %v2286 = vld [vmem:[#allocation10 + $0x2c0] sm:$0xff]
    %v2287 = vld [vmem:[#allocation10 + $0x2c8] sm:$0xff]
    %v2288 = vld [vmem:[#allocation10 + $0x2d0] sm:$0xff]
    %v2289 = vld [vmem:[#allocation10 + $0x2d8] sm:$0xff]
    %v2290 = vld [vmem:[#allocation10 + $0x2e0] sm:$0xff]
    %v2291 = vld [vmem:[#allocation10 + $0x2e8] sm:$0xff]
    %v2292 = vld [vmem:[#allocation10 + $0x2f0] sm:$0xff]
    %v2293 = vld [vmem:[#allocation10 + $0x2f8] sm:$0xff]
    %v2294 = vld [vmem:[#allocation10 + $0x300] sm:$0xff]
    %v2295 = vld [vmem:[#allocation10 + $0x308] sm:$0xff]
    %v2296 = vld [vmem:[#allocation10 + $0x310] sm:$0xff]
    %v2297 = vld [vmem:[#allocation10 + $0x318] sm:$0xff]
    %v2298 = vld [vmem:[#allocation10 + $0x320] sm:$0xff]
    %v2299 = vld [vmem:[#allocation10 + $0x328] sm:$0xff]
    %v2300 = vld [vmem:[#allocation10 + $0x330] sm:$0xff]
    %v2301 = vld [vmem:[#allocation10 + $0x338] sm:$0xff]
    %v2302 = vld [vmem:[#allocation10 + $0x340] sm:$0xff]
    %v2303 = vld [vmem:[#allocation10 + $0x348] sm:$0xff]
    %v2304 = vld [vmem:[#allocation10 + $0x350] sm:$0xff]
    %v2305 = vld [vmem:[#allocation10 + $0x358] sm:$0xff]
    %v2306 = vld [vmem:[#allocation10 + $0x360] sm:$0xff]
    %v2307 = vld [vmem:[#allocation10 + $0x368] sm:$0xff]
    %v2308 = vld [vmem:[#allocation10 + $0x370] sm:$0xff]
    %v2309 = vld [vmem:[#allocation10 + $0x378] sm:$0xff]
    %v2310 = vld [vmem:[#allocation10 + $0x380] sm:$0xff]
    %v2311 = vld [vmem:[#allocation10 + $0x388] sm:$0xff]
    %v2312 = vld [vmem:[#allocation10 + $0x390] sm:$0xff]
    %v2313 = vld [vmem:[#allocation10 + $0x398] sm:$0xff]
    %v2314 = vld [vmem:[#allocation10 + $0x3a0] sm:$0xff]
    %v2315 = vld [vmem:[#allocation10 + $0x3a8] sm:$0xff]
    %v2316 = vld [vmem:[#allocation10 + $0x3b0] sm:$0xff]
    %v2317 = vld [vmem:[#allocation10 + $0x3b8] sm:$0xff]
    %v2318 = vld [vmem:[#allocation10 + $0x3c0] sm:$0xff]
    %v2319 = vld [vmem:[#allocation10 + $0x3c8] sm:$0xff]
    %v2320 = vld [vmem:[#allocation10 + $0x3d0] sm:$0xff]
    %v2321 = vld [vmem:[#allocation10 + $0x3d8] sm:$0xff]
    %v2322 = vld [vmem:[#allocation10 + $0x3e0] sm:$0xff]
    %v2323 = vld [vmem:[#allocation10 + $0x3e8] sm:$0xff]
    %v2324 = vld [vmem:[#allocation10 + $0x3f0] sm:$0xff]
    %v2325 = vld [vmem:[#allocation10 + $0x3f8] sm:$0xff]
    %v2326 = vld [vmem:[#allocation10 + $0x400] sm:$0xff]
    %v2327 = vld [vmem:[#allocation10 + $0x408] sm:$0xff]
    %v2328 = vld [vmem:[#allocation10 + $0x410] sm:$0xff]
    %v2329 = vld [vmem:[#allocation10 + $0x418] sm:$0xff]
    %v2330 = vld [vmem:[#allocation10 + $0x420] sm:$0xff]
    %v2331 = vld [vmem:[#allocation10 + $0x428] sm:$0xff]
    %v2332 = vld [vmem:[#allocation10 + $0x430] sm:$0xff]
    %v2333 = vld [vmem:[#allocation10 + $0x438] sm:$0xff]
    %v2334 = vld [vmem:[#allocation10 + $0x440] sm:$0xff]
    %v2335 = vld [vmem:[#allocation10 + $0x448] sm:$0xff]
    %v2336 = vld [vmem:[#allocation10 + $0x450] sm:$0xff]
    %v2337 = vld [vmem:[#allocation10 + $0x458] sm:$0xff]
    %v2338 = vld [vmem:[#allocation10 + $0x460] sm:$0xff]
    %v2339 = vld [vmem:[#allocation10 + $0x468] sm:$0xff]
    %v2340 = vld [vmem:[#allocation10 + $0x470] sm:$0xff]
    %v2341 = vld [vmem:[#allocation10 + $0x478] sm:$0xff]
    %v2342 = vld [vmem:[#allocation10 + $0x480] sm:$0xff]
    %v2343 = vld [vmem:[#allocation10 + $0x488] sm:$0xff]
    %v2344 = vld [vmem:[#allocation10 + $0x490] sm:$0xff]
    %v2345 = vld [vmem:[#allocation10 + $0x498] sm:$0xff]
    %v2346 = vld [vmem:[#allocation10 + $0x4a0] sm:$0xff]
    %v2347 = vld [vmem:[#allocation10 + $0x4a8] sm:$0xff]
    %v2348 = vld [vmem:[#allocation10 + $0x4b0] sm:$0xff]
    %v2349 = vld [vmem:[#allocation10 + $0x4b8] sm:$0xff]
    %v2350 = vld [vmem:[#allocation10 + $0x4c0] sm:$0xff]
    %v2351 = vld [vmem:[#allocation10 + $0x4c8] sm:$0xff]
    %v2352 = vld [vmem:[#allocation10 + $0x4d0] sm:$0xff]
    %v2353 = vld [vmem:[#allocation10 + $0x4d8] sm:$0xff]
    %v2354 = vld [vmem:[#allocation10 + $0x4e0] sm:$0xff]
    %v2355 = vld [vmem:[#allocation10 + $0x4e8] sm:$0xff]
    %v2356 = vld [vmem:[#allocation10 + $0x4f0] sm:$0xff]
    %v2357 = vld [vmem:[#allocation10 + $0x4f8] sm:$0xff]
    %v2358 = vld [vmem:[#allocation10 + $0x500] sm:$0xff]
    %v2359 = vld [vmem:[#allocation10 + $0x508] sm:$0xff]
    %v2360 = vld [vmem:[#allocation10 + $0x510] sm:$0xff]
    %v2361 = vld [vmem:[#allocation10 + $0x518] sm:$0xff]
    %v2362 = vld [vmem:[#allocation10 + $0x520] sm:$0xff]
    %v2363 = vld [vmem:[#allocation10 + $0x528] sm:$0xff]
    %v2364 = vld [vmem:[#allocation10 + $0x530] sm:$0xff]
    %v2365 = vld [vmem:[#allocation10 + $0x538] sm:$0xff]
    %v2366 = vld [vmem:[#allocation10 + $0x540] sm:$0xff]
    %v2367 = vld [vmem:[#allocation10 + $0x548] sm:$0xff]
    %v2368 = vld [vmem:[#allocation10 + $0x550] sm:$0xff]
    %v2369 = vld [vmem:[#allocation10 + $0x558] sm:$0xff]
    %v2370 = vld [vmem:[#allocation10 + $0x560] sm:$0xff]
    %v2371 = vld [vmem:[#allocation10 + $0x568] sm:$0xff]
    %v2372 = vld [vmem:[#allocation10 + $0x570] sm:$0xff]
    %v2373 = vld [vmem:[#allocation10 + $0x578] sm:$0xff]
    %v2374 = vld [vmem:[#allocation10 + $0x580] sm:$0xff]
    %v2375 = vld [vmem:[#allocation10 + $0x588] sm:$0xff]
    %v2376 = vld [vmem:[#allocation10 + $0x590] sm:$0xff]
    %v2377 = vld [vmem:[#allocation10 + $0x598] sm:$0xff]
    %v2378 = vld [vmem:[#allocation10 + $0x5a0] sm:$0xff]
    %v2379 = vld [vmem:[#allocation10 + $0x5a8] sm:$0xff]
    %v2380 = vld [vmem:[#allocation10 + $0x5b0] sm:$0xff]
    %v2381 = vld [vmem:[#allocation10 + $0x5b8] sm:$0xff]
    %v2382 = vld [vmem:[#allocation10 + $0x5c0] sm:$0xff]
    %v2383 = vld [vmem:[#allocation10 + $0x5c8] sm:$0xff]
    %v2384 = vld [vmem:[#allocation10 + $0x5d0] sm:$0xff]
    %v2385 = vld [vmem:[#allocation10 + $0x5d8] sm:$0xff]
    %v2386 = vld [vmem:[#allocation10 + $0x5e0] sm:$0xff]
    %v2387 = vld [vmem:[#allocation10 + $0x5e8] sm:$0xff]
    %v2388 = vld [vmem:[#allocation10 + $0x5f0] sm:$0xff]
    %v2389 = vld [vmem:[#allocation10 + $0x5f8] sm:$0xff]
    %v2390 = vld [vmem:[#allocation10 + $0x600] sm:$0xff]
    %v2391 = vld [vmem:[#allocation10 + $0x608] sm:$0xff]
    %v2392 = vld [vmem:[#allocation10 + $0x610] sm:$0xff]
    %v2393 = vld [vmem:[#allocation10 + $0x618] sm:$0xff]
    %v2394 = vld [vmem:[#allocation10 + $0x620] sm:$0xff]
    %v2395 = vld [vmem:[#allocation10 + $0x628] sm:$0xff]
    %v2396 = vld [vmem:[#allocation10 + $0x630] sm:$0xff]
    %v2397 = vld [vmem:[#allocation10 + $0x638] sm:$0xff]
    %v2398 = vld [vmem:[#allocation10 + $0x640] sm:$0xff]
    %v2399 = vld [vmem:[#allocation10 + $0x648] sm:$0xff]
    %v2400 = vld [vmem:[#allocation10 + $0x650] sm:$0xff]
    %v2401 = vld [vmem:[#allocation10 + $0x658] sm:$0xff]
    %v2402 = vld [vmem:[#allocation10 + $0x660] sm:$0xff]
    %v2403 = vld [vmem:[#allocation10 + $0x668] sm:$0xff]
    %v2404 = vld [vmem:[#allocation10 + $0x670] sm:$0xff]
    %v2405 = vld [vmem:[#allocation10 + $0x678] sm:$0xff]
    %v2406 = vld [vmem:[#allocation10 + $0x680] sm:$0xff]
    %v2407 = vld [vmem:[#allocation10 + $0x688] sm:$0xff]
    %v2408 = vld [vmem:[#allocation10 + $0x690] sm:$0xff]
    %v2409 = vld [vmem:[#allocation10 + $0x698] sm:$0xff]
    %v2410 = vld [vmem:[#allocation10 + $0x6a0] sm:$0xff]
    %v2411 = vld [vmem:[#allocation10 + $0x6a8] sm:$0xff]
    %v2412 = vld [vmem:[#allocation10 + $0x6b0] sm:$0xff]
    %v2413 = vld [vmem:[#allocation10 + $0x6b8] sm:$0xff]
    %v2414 = vld [vmem:[#allocation10 + $0x6c0] sm:$0xff]
    %v2415 = vld [vmem:[#allocation10 + $0x6c8] sm:$0xff]
    %v2416 = vld [vmem:[#allocation10 + $0x6d0] sm:$0xff]
    %v2417 = vld [vmem:[#allocation10 + $0x6d8] sm:$0xff]
    %v2418 = vld [vmem:[#allocation10 + $0x6e0] sm:$0xff]
    %v2419 = vld [vmem:[#allocation10 + $0x6e8] sm:$0xff]
    %v2420 = vld [vmem:[#allocation10 + $0x6f0] sm:$0xff]
    %v2421 = vld [vmem:[#allocation10 + $0x6f8] sm:$0xff]
    %v2422 = vld [vmem:[#allocation10 + $0x700] sm:$0xff]
    %v2423 = vld [vmem:[#allocation10 + $0x708] sm:$0xff]
    %v2424 = vld [vmem:[#allocation10 + $0x710] sm:$0xff]
    %v2425 = vld [vmem:[#allocation10 + $0x718] sm:$0xff]
    %v2426 = vld [vmem:[#allocation10 + $0x720] sm:$0xff]
    %v2427 = vld [vmem:[#allocation10 + $0x728] sm:$0xff]
    %v2428 = vld [vmem:[#allocation10 + $0x730] sm:$0xff]
    %v2429 = vld [vmem:[#allocation10 + $0x738] sm:$0xff]
    %v2430 = vld [vmem:[#allocation10 + $0x740] sm:$0xff]
    %v2431 = vld [vmem:[#allocation10 + $0x748] sm:$0xff]
    %v2432 = vld [vmem:[#allocation10 + $0x750] sm:$0xff]
    %v2433 = vld [vmem:[#allocation10 + $0x758] sm:$0xff]
    %v2434 = vld [vmem:[#allocation10 + $0x760] sm:$0xff]
    %v2435 = vld [vmem:[#allocation10 + $0x768] sm:$0xff]
    %v2436 = vld [vmem:[#allocation10 + $0x770] sm:$0xff]
    %v2437 = vld [vmem:[#allocation10 + $0x778] sm:$0xff]
    %v2438 = vld [vmem:[#allocation10 + $0x780] sm:$0xff]
    %v2439 = vld [vmem:[#allocation10 + $0x788] sm:$0xff]
    %v2440 = vld [vmem:[#allocation10 + $0x790] sm:$0xff]
    %v2441 = vld [vmem:[#allocation10 + $0x798] sm:$0xff]
    %v2442 = vld [vmem:[#allocation10 + $0x7a0] sm:$0xff]
    %v2443 = vld [vmem:[#allocation10 + $0x7a8] sm:$0xff]
    %v2444 = vld [vmem:[#allocation10 + $0x7b0] sm:$0xff]
    %v2445 = vld [vmem:[#allocation10 + $0x7b8] sm:$0xff]
    %v2446 = vld [vmem:[#allocation10 + $0x7c0] sm:$0xff]
    %v2447 = vld [vmem:[#allocation10 + $0x7c8] sm:$0xff]
    %v2448 = vld [vmem:[#allocation10 + $0x7d0] sm:$0xff]
    %v2449 = vld [vmem:[#allocation10 + $0x7d8] sm:$0xff]
    %v2450 = vld [vmem:[#allocation10 + $0x7e0] sm:$0xff]
    %v2451 = vld [vmem:[#allocation10 + $0x7e8] sm:$0xff]
    %v2452 = vld [vmem:[#allocation10 + $0x7f0] sm:$0xff]
    %v2453 = vld [vmem:[#allocation10 + $0x7f8] sm:$0xff]
    %v2454 = vld [vmem:[#allocation10 + $0x800] sm:$0xff]
    %v2455 = vld [vmem:[#allocation10 + $0x808] sm:$0xff]
    %v2456 = vld [vmem:[#allocation10 + $0x810] sm:$0xff]
    %v2457 = vld [vmem:[#allocation10 + $0x818] sm:$0xff]
    %v2458 = vld [vmem:[#allocation10 + $0x820] sm:$0xff]
    %v2459 = vld [vmem:[#allocation10 + $0x828] sm:$0xff]
    %v2460 = vld [vmem:[#allocation10 + $0x830] sm:$0xff]
    %v2461 = vld [vmem:[#allocation10 + $0x838] sm:$0xff]
    %v2462 = vld [vmem:[#allocation10 + $0x840] sm:$0xff]
    %v2463 = vld [vmem:[#allocation10 + $0x848] sm:$0xff]
    %v2464 = vld [vmem:[#allocation10 + $0x850] sm:$0xff]
    %v2465 = vld [vmem:[#allocation10 + $0x858] sm:$0xff]
    %v2466 = vld [vmem:[#allocation10 + $0x860] sm:$0xff]
    %v2467 = vld [vmem:[#allocation10 + $0x868] sm:$0xff]
    %v2468 = vld [vmem:[#allocation10 + $0x870] sm:$0xff]
    %v2469 = vld [vmem:[#allocation10 + $0x878] sm:$0xff]
    %v2470 = vld [vmem:[#allocation10 + $0x880] sm:$0xff]
    %v2471 = vld [vmem:[#allocation10 + $0x888] sm:$0xff]
    %v2472 = vld [vmem:[#allocation10 + $0x890] sm:$0xff]
    %v2473 = vld [vmem:[#allocation10 + $0x898] sm:$0xff]
    %v2474 = vld [vmem:[#allocation10 + $0x8a0] sm:$0xff]
    %v2475 = vld [vmem:[#allocation10 + $0x8a8] sm:$0xff]
    %v2476 = vld [vmem:[#allocation10 + $0x8b0] sm:$0xff]
    %v2477 = vld [vmem:[#allocation10 + $0x8b8] sm:$0xff]
    %v2478 = vld [vmem:[#allocation10 + $0x8c0] sm:$0xff]
    %v2479 = vld [vmem:[#allocation10 + $0x8c8] sm:$0xff]
    %v2480 = vld [vmem:[#allocation10 + $0x8d0] sm:$0xff]
    %v2481 = vld [vmem:[#allocation10 + $0x8d8] sm:$0xff]
    %v2482 = vld [vmem:[#allocation10 + $0x8e0] sm:$0xff]
    %v2483 = vld [vmem:[#allocation10 + $0x8e8] sm:$0xff]
    %v2484 = vld [vmem:[#allocation10 + $0x8f0] sm:$0xff]
    %v2485 = vld [vmem:[#allocation10 + $0x8f8] sm:$0xff]
    %v2486 = vld [vmem:[#allocation10 + $0x900] sm:$0xff]
    %v2487 = vld [vmem:[#allocation10 + $0x908] sm:$0xff]
    %v2488 = vld [vmem:[#allocation10 + $0x910] sm:$0xff]
    %v2489 = vld [vmem:[#allocation10 + $0x918] sm:$0xff]
    %v2490 = vld [vmem:[#allocation10 + $0x920] sm:$0xff]
    %v2491 = vld [vmem:[#allocation10 + $0x928] sm:$0xff]
    %v2492 = vld [vmem:[#allocation10 + $0x930] sm:$0xff]
    %v2493 = vld [vmem:[#allocation10 + $0x938] sm:$0xff]
    %v2494 = vld [vmem:[#allocation10 + $0x940] sm:$0xff]
    %v2495 = vld [vmem:[#allocation10 + $0x948] sm:$0xff]
    %v2496 = vld [vmem:[#allocation10 + $0x950] sm:$0xff]
    %v2497 = vld [vmem:[#allocation10 + $0x958] sm:$0xff]
    %v2498 = vld [vmem:[#allocation10 + $0x960] sm:$0xff]
    %v2499 = vld [vmem:[#allocation10 + $0x968] sm:$0xff]
    %v2500 = vld [vmem:[#allocation10 + $0x970] sm:$0xff]
    %v2501 = vld [vmem:[#allocation10 + $0x978] sm:$0xff]
    %v2502 = vld [vmem:[#allocation10 + $0x980] sm:$0xff]
    %v2503 = vld [vmem:[#allocation10 + $0x988] sm:$0xff]
    %v2504 = vld [vmem:[#allocation10 + $0x990] sm:$0xff]
    %v2505 = vld [vmem:[#allocation10 + $0x998] sm:$0xff]
    %v2506 = vld [vmem:[#allocation10 + $0x9a0] sm:$0xff]
    %v2507 = vld [vmem:[#allocation10 + $0x9a8] sm:$0xff]
    %v2508 = vld [vmem:[#allocation10 + $0x9b0] sm:$0xff]
    %v2509 = vld [vmem:[#allocation10 + $0x9b8] sm:$0xff]
    %v2510 = vld [vmem:[#allocation10 + $0x9c0] sm:$0xff]
    %v2511 = vld [vmem:[#allocation10 + $0x9c8] sm:$0xff]
    %v2512 = vld [vmem:[#allocation10 + $0x9d0] sm:$0xff]
    %v2513 = vld [vmem:[#allocation10 + $0x9d8] sm:$0xff]
    %v2514 = vld [vmem:[#allocation10 + $0x9e0] sm:$0xff]
    %v2515 = vld [vmem:[#allocation10 + $0x9e8] sm:$0xff]
    %v2516 = vld [vmem:[#allocation10 + $0x9f0] sm:$0xff]
    %v2517 = vld [vmem:[#allocation10 + $0x9f8] sm:$0xff]
    %v2518 = vld [vmem:[#allocation10 + $0xa00] sm:$0xff]
    %v2519 = vld [vmem:[#allocation10 + $0xa08] sm:$0xff]
    %v2520 = vld [vmem:[#allocation10 + $0xa10] sm:$0xff]
    %v2521 = vld [vmem:[#allocation10 + $0xa18] sm:$0xff]
    %v2522 = vld [vmem:[#allocation10 + $0xa20] sm:$0xff]
    %v2523 = vld [vmem:[#allocation10 + $0xa28] sm:$0xff]
    %v2524 = vld [vmem:[#allocation10 + $0xa30] sm:$0xff]
    %v2525 = vld [vmem:[#allocation10 + $0xa38] sm:$0xff]
    %v2526 = vld [vmem:[#allocation10 + $0xa40] sm:$0xff]
    %v2527 = vld [vmem:[#allocation10 + $0xa48] sm:$0xff]
    %v2528 = vld [vmem:[#allocation10 + $0xa50] sm:$0xff]
    %v2529 = vld [vmem:[#allocation10 + $0xa58] sm:$0xff]
    %v2530 = vld [vmem:[#allocation10 + $0xa60] sm:$0xff]
    %v2531 = vld [vmem:[#allocation10 + $0xa68] sm:$0xff]
    %v2532 = vld [vmem:[#allocation10 + $0xa70] sm:$0xff]
    %v2533 = vld [vmem:[#allocation10 + $0xa78] sm:$0xff]
    %v2534 = vld [vmem:[#allocation10 + $0xa80] sm:$0xff]
    %v2535 = vld [vmem:[#allocation10 + $0xa88] sm:$0xff]
    %v2536 = vld [vmem:[#allocation10 + $0xa90] sm:$0xff]
    %v2537 = vld [vmem:[#allocation10 + $0xa98] sm:$0xff]
    %v2538 = vld [vmem:[#allocation10 + $0xaa0] sm:$0xff]
    %v2539 = vld [vmem:[#allocation10 + $0xaa8] sm:$0xff]
    %v2540 = vld [vmem:[#allocation10 + $0xab0] sm:$0xff]
    %v2541 = vld [vmem:[#allocation10 + $0xab8] sm:$0xff]
    %v2542 = vld [vmem:[#allocation10 + $0xac0] sm:$0xff]
    %v2543 = vld [vmem:[#allocation10 + $0xac8] sm:$0xff]
    %v2544 = vld [vmem:[#allocation10 + $0xad0] sm:$0xff]
    %v2545 = vld [vmem:[#allocation10 + $0xad8] sm:$0xff]
    %v2546 = vld [vmem:[#allocation10 + $0xae0] sm:$0xff]
    %v2547 = vld [vmem:[#allocation10 + $0xae8] sm:$0xff]
    %v2548 = vld [vmem:[#allocation10 + $0xaf0] sm:$0xff]
    %v2549 = vld [vmem:[#allocation10 + $0xaf8] sm:$0xff]
    %v2550 = vld [vmem:[#allocation10 + $0xb00] sm:$0xff]
    %v2551 = vld [vmem:[#allocation10 + $0xb08] sm:$0xff]
    %v2552 = vld [vmem:[#allocation10 + $0xb10] sm:$0xff]
    %v2553 = vld [vmem:[#allocation10 + $0xb18] sm:$0xff]
    %v2554 = vld [vmem:[#allocation10 + $0xb20] sm:$0xff]
    %v2555 = vld [vmem:[#allocation10 + $0xb28] sm:$0xff]
    %v2556 = vld [vmem:[#allocation10 + $0xb30] sm:$0xff]
    %v2557 = vld [vmem:[#allocation10 + $0xb38] sm:$0xff]
    %v2558 = vld [vmem:[#allocation10 + $0xb40] sm:$0xff]
    %v2559 = vld [vmem:[#allocation10 + $0xb48] sm:$0xff]
    %v2560 = vld [vmem:[#allocation10 + $0xb50] sm:$0xff]
    %v2561 = vld [vmem:[#allocation10 + $0xb58] sm:$0xff]
    %v2562 = vunpack.c.l.s8.bf16 %v2198
    %v2563 = vunpack.c.l.s8.bf16 %v2199
    %v2564 = vunpack.c.l.s8.bf16 %v2200
    %v2565 = vunpack.c.l.s8.bf16 %v2201
    %v2566 = vunpack.c.l.s8.bf16 %v2202
    %v2567 = vunpack.c.l.s8.bf16 %v2203
    %v2568 = vunpack.c.l.s8.bf16 %v2204
    %v2569 = vunpack.c.h.s8.bf16 %v2198
    %v2570 = vunpack.c.h.s8.bf16 %v2199
    %v2571 = vunpack.c.h.s8.bf16 %v2200
    %v2572 = vunpack.c.h.s8.bf16 %v2201
    %v2573 = vunpack.c.h.s8.bf16 %v2202
    %v2574 = vunpack.c.h.s8.bf16 %v2203
    %v2575 = vunpack.c.h.s8.bf16 %v2204
    %v2576 = vunpack.c.l.s8.bf16 %v2205
    %v2577 = vunpack.c.l.s8.bf16 %v2206
    %v2578 = vunpack.c.l.s8.bf16 %v2207
    %v2579 = vunpack.c.l.s8.bf16 %v2208
    %v2580 = vunpack.c.l.s8.bf16 %v2209
    %v2581 = vunpack.c.l.s8.bf16 %v2210
    %v2582 = vunpack.c.l.s8.bf16 %v2211
    %v2583 = vunpack.c.h.s8.bf16 %v2205
    %v2584 = vunpack.c.h.s8.bf16 %v2206
    %v2585 = vunpack.c.h.s8.bf16 %v2207
    %v2586 = vunpack.c.h.s8.bf16 %v2208
    %v2587 = vunpack.c.h.s8.bf16 %v2209
    %v2588 = vunpack.c.h.s8.bf16 %v2210
    %v2589 = vunpack.c.h.s8.bf16 %v2211
    %v2590 = vunpack.c.l.s8.bf16 %v2212
    %v2591 = vunpack.c.l.s8.bf16 %v2213
    %v2592 = vunpack.c.l.s8.bf16 %v2214
    %v2593 = vunpack.c.l.s8.bf16 %v2215
    %v2594 = vunpack.c.l.s8.bf16 %v2216
    %v2595 = vunpack.c.l.s8.bf16 %v2217
    %v2596 = vunpack.c.l.s8.bf16 %v2218
    %v2597 = vunpack.c.h.s8.bf16 %v2212
    %v2598 = vunpack.c.h.s8.bf16 %v2213
    %v2599 = vunpack.c.h.s8.bf16 %v2214
    %v2600 = vunpack.c.h.s8.bf16 %v2215
    %v2601 = vunpack.c.h.s8.bf16 %v2216
    %v2602 = vunpack.c.h.s8.bf16 %v2217
    %v2603 = vunpack.c.h.s8.bf16 %v2218
    %v2604 = vunpack.c.l.s8.bf16 %v2219
    %v2605 = vunpack.c.l.s8.bf16 %v2220
    %v2606 = vunpack.c.l.s8.bf16 %v2221
    %v2607 = vunpack.c.l.s8.bf16 %v2222
    %v2608 = vunpack.c.l.s8.bf16 %v2223
    %v2609 = vunpack.c.l.s8.bf16 %v2224
    %v2610 = vunpack.c.l.s8.bf16 %v2225
    %v2611 = vunpack.c.h.s8.bf16 %v2219
    %v2612 = vunpack.c.h.s8.bf16 %v2220
    %v2613 = vunpack.c.h.s8.bf16 %v2221
    %v2614 = vunpack.c.h.s8.bf16 %v2222
    %v2615 = vunpack.c.h.s8.bf16 %v2223
    %v2616 = vunpack.c.h.s8.bf16 %v2224
    %v2617 = vunpack.c.h.s8.bf16 %v2225
    %v2618 = vunpack.c.l.s8.bf16 %v2226
    %v2619 = vunpack.c.l.s8.bf16 %v2227
    %v2620 = vunpack.c.l.s8.bf16 %v2228
    %v2621 = vunpack.c.l.s8.bf16 %v2229
    %v2622 = vunpack.c.l.s8.bf16 %v2230
    %v2623 = vunpack.c.l.s8.bf16 %v2231
    %v2624 = vunpack.c.l.s8.bf16 %v2232
    %v2625 = vunpack.c.h.s8.bf16 %v2226
    %v2626 = vunpack.c.h.s8.bf16 %v2227
    %v2627 = vunpack.c.h.s8.bf16 %v2228
    %v2628 = vunpack.c.h.s8.bf16 %v2229
    %v2629 = vunpack.c.h.s8.bf16 %v2230
    %v2630 = vunpack.c.h.s8.bf16 %v2231
    %v2631 = vunpack.c.h.s8.bf16 %v2232
    %v2632 = vunpack.c.l.s8.bf16 %v2233
    %v2633 = vunpack.c.l.s8.bf16 %v2234
    %v2634 = vunpack.c.l.s8.bf16 %v2235
    %v2635 = vunpack.c.l.s8.bf16 %v2236
    %v2636 = vunpack.c.l.s8.bf16 %v2237
    %v2637 = vunpack.c.l.s8.bf16 %v2238
    %v2638 = vunpack.c.l.s8.bf16 %v2239
    %v2639 = vunpack.c.h.s8.bf16 %v2233
    %v2640 = vunpack.c.h.s8.bf16 %v2234
    %v2641 = vunpack.c.h.s8.bf16 %v2235
    %v2642 = vunpack.c.h.s8.bf16 %v2236
    %v2643 = vunpack.c.h.s8.bf16 %v2237
    %v2644 = vunpack.c.h.s8.bf16 %v2238
    %v2645 = vunpack.c.h.s8.bf16 %v2239
    %v2646 = vunpack.c.l.s8.bf16 %v2240
    %v2647 = vunpack.c.l.s8.bf16 %v2241
    %v2648 = vunpack.c.l.s8.bf16 %v2242
    %v2649 = vunpack.c.l.s8.bf16 %v2243
    %v2650 = vunpack.c.l.s8.bf16 %v2244
    %v2651 = vunpack.c.l.s8.bf16 %v2245
    %v2652 = vunpack.c.l.s8.bf16 %v2246
    %v2653 = vunpack.c.h.s8.bf16 %v2240
    %v2654 = vunpack.c.h.s8.bf16 %v2241
    %v2655 = vunpack.c.h.s8.bf16 %v2242
    %v2656 = vunpack.c.h.s8.bf16 %v2243
    %v2657 = vunpack.c.h.s8.bf16 %v2244
    %v2658 = vunpack.c.h.s8.bf16 %v2245
    %v2659 = vunpack.c.h.s8.bf16 %v2246
    %v2660 = vunpack.c.l.s8.bf16 %v2247
    %v2661 = vunpack.c.l.s8.bf16 %v2248
    %v2662 = vunpack.c.l.s8.bf16 %v2249
    %v2663 = vunpack.c.l.s8.bf16 %v2250
    %v2664 = vunpack.c.l.s8.bf16 %v2251
    %v2665 = vunpack.c.l.s8.bf16 %v2252
    %v2666 = vunpack.c.l.s8.bf16 %v2253
    %v2667 = vunpack.c.h.s8.bf16 %v2247
    %v2668 = vunpack.c.h.s8.bf16 %v2248
    %v2669 = vunpack.c.h.s8.bf16 %v2249
    %v2670 = vunpack.c.h.s8.bf16 %v2250
    %v2671 = vunpack.c.h.s8.bf16 %v2251
    %v2672 = vunpack.c.h.s8.bf16 %v2252
    %v2673 = vunpack.c.h.s8.bf16 %v2253
    %v2674 = vunpack.c.l.s8.bf16 %v2254
    %v2675 = vunpack.c.l.s8.bf16 %v2255
    %v2676 = vunpack.c.l.s8.bf16 %v2256
    %v2677 = vunpack.c.l.s8.bf16 %v2257
    %v2678 = vunpack.c.l.s8.bf16 %v2258
    %v2679 = vunpack.c.l.s8.bf16 %v2259
    %v2680 = vunpack.c.l.s8.bf16 %v2260
    %v2681 = vunpack.c.h.s8.bf16 %v2254
    %v2682 = vunpack.c.h.s8.bf16 %v2255
    %v2683 = vunpack.c.h.s8.bf16 %v2256
    %v2684 = vunpack.c.h.s8.bf16 %v2257
    %v2685 = vunpack.c.h.s8.bf16 %v2258
    %v2686 = vunpack.c.h.s8.bf16 %v2259
    %v2687 = vunpack.c.h.s8.bf16 %v2260
    %v2688 = vunpack.c.l.s8.bf16 %v2261
    %v2689 = vunpack.c.l.s8.bf16 %v2262
    %v2690 = vunpack.c.l.s8.bf16 %v2263
    %v2691 = vunpack.c.l.s8.bf16 %v2264
    %v2692 = vunpack.c.l.s8.bf16 %v2265
    %v2693 = vunpack.c.l.s8.bf16 %v2266
    %v2694 = vunpack.c.l.s8.bf16 %v2267
    %v2695 = vunpack.c.h.s8.bf16 %v2261
    %v2696 = vunpack.c.h.s8.bf16 %v2262
    %v2697 = vunpack.c.h.s8.bf16 %v2263
    %v2698 = vunpack.c.h.s8.bf16 %v2264
    %v2699 = vunpack.c.h.s8.bf16 %v2265
    %v2700 = vunpack.c.h.s8.bf16 %v2266
    %v2701 = vunpack.c.h.s8.bf16 %v2267
    %v2702 = vunpack.c.l.s8.bf16 %v2268
    %v2703 = vunpack.c.l.s8.bf16 %v2269
    %v2704 = vunpack.c.l.s8.bf16 %v2270
    %v2705 = vunpack.c.l.s8.bf16 %v2271
    %v2706 = vunpack.c.l.s8.bf16 %v2272
    %v2707 = vunpack.c.l.s8.bf16 %v2273
    %v2708 = vunpack.c.l.s8.bf16 %v2274
    %v2709 = vunpack.c.h.s8.bf16 %v2268
    %v2710 = vunpack.c.h.s8.bf16 %v2269
    %v2711 = vunpack.c.h.s8.bf16 %v2270
    %v2712 = vunpack.c.h.s8.bf16 %v2271
    %v2713 = vunpack.c.h.s8.bf16 %v2272
    %v2714 = vunpack.c.h.s8.bf16 %v2273
    %v2715 = vunpack.c.h.s8.bf16 %v2274
    %v2716 = vunpack.c.l.s8.bf16 %v2275
    %v2717 = vunpack.c.l.s8.bf16 %v2276
    %v2718 = vunpack.c.l.s8.bf16 %v2277
    %v2719 = vunpack.c.l.s8.bf16 %v2278
    %v2720 = vunpack.c.l.s8.bf16 %v2279
    %v2721 = vunpack.c.l.s8.bf16 %v2280
    %v2722 = vunpack.c.l.s8.bf16 %v2281
    %v2723 = vunpack.c.h.s8.bf16 %v2275
    %v2724 = vunpack.c.h.s8.bf16 %v2276
    %v2725 = vunpack.c.h.s8.bf16 %v2277
    %v2726 = vunpack.c.h.s8.bf16 %v2278
    %v2727 = vunpack.c.h.s8.bf16 %v2279
    %v2728 = vunpack.c.h.s8.bf16 %v2280
    %v2729 = vunpack.c.h.s8.bf16 %v2281
    %v2730 = vunpack.c.l.s8.bf16 %v2282
    %v2731 = vunpack.c.l.s8.bf16 %v2283
    %v2732 = vunpack.c.l.s8.bf16 %v2284
    %v2733 = vunpack.c.l.s8.bf16 %v2285
    %v2734 = vunpack.c.l.s8.bf16 %v2286
    %v2735 = vunpack.c.l.s8.bf16 %v2287
    %v2736 = vunpack.c.l.s8.bf16 %v2288
    %v2737 = vunpack.c.h.s8.bf16 %v2282
    %v2738 = vunpack.c.h.s8.bf16 %v2283
    %v2739 = vunpack.c.h.s8.bf16 %v2284
    %v2740 = vunpack.c.h.s8.bf16 %v2285
    %v2741 = vunpack.c.h.s8.bf16 %v2286
    %v2742 = vunpack.c.h.s8.bf16 %v2287
    %v2743 = vunpack.c.h.s8.bf16 %v2288
    %v2744 = vunpack.c.l.s8.bf16 %v2289
    %v2745 = vunpack.c.l.s8.bf16 %v2290
    %v2746 = vunpack.c.l.s8.bf16 %v2291
    %v2747 = vunpack.c.l.s8.bf16 %v2292
    %v2748 = vunpack.c.l.s8.bf16 %v2293
    %v2749 = vunpack.c.l.s8.bf16 %v2294
    %v2750 = vunpack.c.l.s8.bf16 %v2295
    %v2751 = vunpack.c.h.s8.bf16 %v2289
    %v2752 = vunpack.c.h.s8.bf16 %v2290
    %v2753 = vunpack.c.h.s8.bf16 %v2291
    %v2754 = vunpack.c.h.s8.bf16 %v2292
    %v2755 = vunpack.c.h.s8.bf16 %v2293
    %v2756 = vunpack.c.h.s8.bf16 %v2294
    %v2757 = vunpack.c.h.s8.bf16 %v2295
    %v2758 = vunpack.c.l.s8.bf16 %v2296
    %v2759 = vunpack.c.l.s8.bf16 %v2297
    %v2760 = vunpack.c.l.s8.bf16 %v2298
    %v2761 = vunpack.c.l.s8.bf16 %v2299
    %v2762 = vunpack.c.l.s8.bf16 %v2300
    %v2763 = vunpack.c.l.s8.bf16 %v2301
    %v2764 = vunpack.c.l.s8.bf16 %v2302
    %v2765 = vunpack.c.h.s8.bf16 %v2296
    %v2766 = vunpack.c.h.s8.bf16 %v2297
    %v2767 = vunpack.c.h.s8.bf16 %v2298
    %v2768 = vunpack.c.h.s8.bf16 %v2299
    %v2769 = vunpack.c.h.s8.bf16 %v2300
    %v2770 = vunpack.c.h.s8.bf16 %v2301
    %v2771 = vunpack.c.h.s8.bf16 %v2302
    %v2772 = vunpack.c.l.s8.bf16 %v2303
    %v2773 = vunpack.c.l.s8.bf16 %v2304
    %v2774 = vunpack.c.l.s8.bf16 %v2305
    %v2775 = vunpack.c.l.s8.bf16 %v2306
    %v2776 = vunpack.c.l.s8.bf16 %v2307
    %v2777 = vunpack.c.l.s8.bf16 %v2308
    %v2778 = vunpack.c.l.s8.bf16 %v2309
    %v2779 = vunpack.c.h.s8.bf16 %v2303
    %v2780 = vunpack.c.h.s8.bf16 %v2304
    %v2781 = vunpack.c.h.s8.bf16 %v2305
    %v2782 = vunpack.c.h.s8.bf16 %v2306
    %v2783 = vunpack.c.h.s8.bf16 %v2307
    %v2784 = vunpack.c.h.s8.bf16 %v2308
    %v2785 = vunpack.c.h.s8.bf16 %v2309
    %v2786 = vunpack.c.l.s8.bf16 %v2310
    %v2787 = vunpack.c.l.s8.bf16 %v2311
    %v2788 = vunpack.c.l.s8.bf16 %v2312
    %v2789 = vunpack.c.l.s8.bf16 %v2313
    %v2790 = vunpack.c.l.s8.bf16 %v2314
    %v2791 = vunpack.c.l.s8.bf16 %v2315
    %v2792 = vunpack.c.l.s8.bf16 %v2316
    %v2793 = vunpack.c.h.s8.bf16 %v2310
    %v2794 = vunpack.c.h.s8.bf16 %v2311
    %v2795 = vunpack.c.h.s8.bf16 %v2312
    %v2796 = vunpack.c.h.s8.bf16 %v2313
    %v2797 = vunpack.c.h.s8.bf16 %v2314
    %v2798 = vunpack.c.h.s8.bf16 %v2315
    %v2799 = vunpack.c.h.s8.bf16 %v2316
    %v2800 = vunpack.c.l.s8.bf16 %v2317
    %v2801 = vunpack.c.l.s8.bf16 %v2318
    %v2802 = vunpack.c.l.s8.bf16 %v2319
    %v2803 = vunpack.c.l.s8.bf16 %v2320
    %v2804 = vunpack.c.l.s8.bf16 %v2321
    %v2805 = vunpack.c.l.s8.bf16 %v2322
    %v2806 = vunpack.c.l.s8.bf16 %v2323
    %v2807 = vunpack.c.h.s8.bf16 %v2317
    %v2808 = vunpack.c.h.s8.bf16 %v2318
    %v2809 = vunpack.c.h.s8.bf16 %v2319
    %v2810 = vunpack.c.h.s8.bf16 %v2320
    %v2811 = vunpack.c.h.s8.bf16 %v2321
    %v2812 = vunpack.c.h.s8.bf16 %v2322
    %v2813 = vunpack.c.h.s8.bf16 %v2323
    %v2814 = vunpack.c.l.s8.bf16 %v2324
    %v2815 = vunpack.c.l.s8.bf16 %v2325
    %v2816 = vunpack.c.l.s8.bf16 %v2326
    %v2817 = vunpack.c.l.s8.bf16 %v2327
    %v2818 = vunpack.c.l.s8.bf16 %v2328
    %v2819 = vunpack.c.l.s8.bf16 %v2329
    %v2820 = vunpack.c.l.s8.bf16 %v2330
    %v2821 = vunpack.c.h.s8.bf16 %v2324
    %v2822 = vunpack.c.h.s8.bf16 %v2325
    %v2823 = vunpack.c.h.s8.bf16 %v2326
    %v2824 = vunpack.c.h.s8.bf16 %v2327
    %v2825 = vunpack.c.h.s8.bf16 %v2328
    %v2826 = vunpack.c.h.s8.bf16 %v2329
    %v2827 = vunpack.c.h.s8.bf16 %v2330
    %v2828 = vunpack.c.l.s8.bf16 %v2331
    %v2829 = vunpack.c.l.s8.bf16 %v2332
    %v2830 = vunpack.c.l.s8.bf16 %v2333
    %v2831 = vunpack.c.l.s8.bf16 %v2334
    %v2832 = vunpack.c.l.s8.bf16 %v2335
    %v2833 = vunpack.c.l.s8.bf16 %v2336
    %v2834 = vunpack.c.l.s8.bf16 %v2337
    %v2835 = vunpack.c.h.s8.bf16 %v2331
    %v2836 = vunpack.c.h.s8.bf16 %v2332
    %v2837 = vunpack.c.h.s8.bf16 %v2333
    %v2838 = vunpack.c.h.s8.bf16 %v2334
    %v2839 = vunpack.c.h.s8.bf16 %v2335
    %v2840 = vunpack.c.h.s8.bf16 %v2336
    %v2841 = vunpack.c.h.s8.bf16 %v2337
    %v2842 = vunpack.c.l.s8.bf16 %v2338
    %v2843 = vunpack.c.l.s8.bf16 %v2339
    %v2844 = vunpack.c.l.s8.bf16 %v2340
    %v2845 = vunpack.c.l.s8.bf16 %v2341
    %v2846 = vunpack.c.l.s8.bf16 %v2342
    %v2847 = vunpack.c.l.s8.bf16 %v2343
    %v2848 = vunpack.c.l.s8.bf16 %v2344
    %v2849 = vunpack.c.h.s8.bf16 %v2338
    %v2850 = vunpack.c.h.s8.bf16 %v2339
    %v2851 = vunpack.c.h.s8.bf16 %v2340
    %v2852 = vunpack.c.h.s8.bf16 %v2341
    %v2853 = vunpack.c.h.s8.bf16 %v2342
    %v2854 = vunpack.c.h.s8.bf16 %v2343
    %v2855 = vunpack.c.h.s8.bf16 %v2344
    %v2856 = vunpack.c.l.s8.bf16 %v2345
    %v2857 = vunpack.c.l.s8.bf16 %v2346
    %v2858 = vunpack.c.l.s8.bf16 %v2347
    %v2859 = vunpack.c.l.s8.bf16 %v2348
    %v2860 = vunpack.c.l.s8.bf16 %v2349
    %v2861 = vunpack.c.l.s8.bf16 %v2350
    %v2862 = vunpack.c.l.s8.bf16 %v2351
    %v2863 = vunpack.c.h.s8.bf16 %v2345
    %v2864 = vunpack.c.h.s8.bf16 %v2346
    %v2865 = vunpack.c.h.s8.bf16 %v2347
    %v2866 = vunpack.c.h.s8.bf16 %v2348
    %v2867 = vunpack.c.h.s8.bf16 %v2349
    %v2868 = vunpack.c.h.s8.bf16 %v2350
    %v2869 = vunpack.c.h.s8.bf16 %v2351
    %v2870 = vunpack.c.l.s8.bf16 %v2352
    %v2871 = vunpack.c.l.s8.bf16 %v2353
    %v2872 = vunpack.c.l.s8.bf16 %v2354
    %v2873 = vunpack.c.l.s8.bf16 %v2355
    %v2874 = vunpack.c.l.s8.bf16 %v2356
    %v2875 = vunpack.c.l.s8.bf16 %v2357
    %v2876 = vunpack.c.l.s8.bf16 %v2358
    %v2877 = vunpack.c.h.s8.bf16 %v2352
    %v2878 = vunpack.c.h.s8.bf16 %v2353
    %v2879 = vunpack.c.h.s8.bf16 %v2354
    %v2880 = vunpack.c.h.s8.bf16 %v2355
    %v2881 = vunpack.c.h.s8.bf16 %v2356
    %v2882 = vunpack.c.h.s8.bf16 %v2357
    %v2883 = vunpack.c.h.s8.bf16 %v2358
    %v2884 = vunpack.c.l.s8.bf16 %v2359
    %v2885 = vunpack.c.l.s8.bf16 %v2360
    %v2886 = vunpack.c.l.s8.bf16 %v2361
    %v2887 = vunpack.c.l.s8.bf16 %v2362
    %v2888 = vunpack.c.l.s8.bf16 %v2363
    %v2889 = vunpack.c.l.s8.bf16 %v2364
    %v2890 = vunpack.c.l.s8.bf16 %v2365
    %v2891 = vunpack.c.h.s8.bf16 %v2359
    %v2892 = vunpack.c.h.s8.bf16 %v2360
    %v2893 = vunpack.c.h.s8.bf16 %v2361
    %v2894 = vunpack.c.h.s8.bf16 %v2362
    %v2895 = vunpack.c.h.s8.bf16 %v2363
    %v2896 = vunpack.c.h.s8.bf16 %v2364
    %v2897 = vunpack.c.h.s8.bf16 %v2365
    %v2898 = vunpack.c.l.s8.bf16 %v2366
    %v2899 = vunpack.c.l.s8.bf16 %v2367
    %v2900 = vunpack.c.l.s8.bf16 %v2368
    %v2901 = vunpack.c.l.s8.bf16 %v2369
    %v2902 = vunpack.c.l.s8.bf16 %v2370
    %v2903 = vunpack.c.l.s8.bf16 %v2371
    %v2904 = vunpack.c.l.s8.bf16 %v2372
    %v2905 = vunpack.c.h.s8.bf16 %v2366
    %v2906 = vunpack.c.h.s8.bf16 %v2367
    %v2907 = vunpack.c.h.s8.bf16 %v2368
    %v2908 = vunpack.c.h.s8.bf16 %v2369
    %v2909 = vunpack.c.h.s8.bf16 %v2370
    %v2910 = vunpack.c.h.s8.bf16 %v2371
    %v2911 = vunpack.c.h.s8.bf16 %v2372
    %v2912 = vunpack.c.l.s8.bf16 %v2373
    %v2913 = vunpack.c.l.s8.bf16 %v2374
    %v2914 = vunpack.c.l.s8.bf16 %v2375
    %v2915 = vunpack.c.l.s8.bf16 %v2376
    %v2916 = vunpack.c.l.s8.bf16 %v2377
    %v2917 = vunpack.c.l.s8.bf16 %v2378
    %v2918 = vunpack.c.l.s8.bf16 %v2379
    %v2919 = vunpack.c.h.s8.bf16 %v2373
    %v2920 = vunpack.c.h.s8.bf16 %v2374
    %v2921 = vunpack.c.h.s8.bf16 %v2375
    %v2922 = vunpack.c.h.s8.bf16 %v2376
    %v2923 = vunpack.c.h.s8.bf16 %v2377
    %v2924 = vunpack.c.h.s8.bf16 %v2378
    %v2925 = vunpack.c.h.s8.bf16 %v2379
    %v2926 = vunpack.c.l.s8.bf16 %v2380
    %v2927 = vunpack.c.l.s8.bf16 %v2381
    %v2928 = vunpack.c.l.s8.bf16 %v2382
    %v2929 = vunpack.c.l.s8.bf16 %v2383
    %v2930 = vunpack.c.l.s8.bf16 %v2384
    %v2931 = vunpack.c.l.s8.bf16 %v2385
    %v2932 = vunpack.c.l.s8.bf16 %v2386
    %v2933 = vunpack.c.h.s8.bf16 %v2380
    %v2934 = vunpack.c.h.s8.bf16 %v2381
    %v2935 = vunpack.c.h.s8.bf16 %v2382
    %v2936 = vunpack.c.h.s8.bf16 %v2383
    %v2937 = vunpack.c.h.s8.bf16 %v2384
    %v2938 = vunpack.c.h.s8.bf16 %v2385
    %v2939 = vunpack.c.h.s8.bf16 %v2386
    %v2940 = vunpack.c.l.s8.bf16 %v2387
    %v2941 = vunpack.c.l.s8.bf16 %v2388
    %v2942 = vunpack.c.l.s8.bf16 %v2389
    %v2943 = vunpack.c.l.s8.bf16 %v2390
    %v2944 = vunpack.c.l.s8.bf16 %v2391
    %v2945 = vunpack.c.l.s8.bf16 %v2392
    %v2946 = vunpack.c.l.s8.bf16 %v2393
    %v2947 = vunpack.c.h.s8.bf16 %v2387
    %v2948 = vunpack.c.h.s8.bf16 %v2388
    %v2949 = vunpack.c.h.s8.bf16 %v2389
    %v2950 = vunpack.c.h.s8.bf16 %v2390
    %v2951 = vunpack.c.h.s8.bf16 %v2391
    %v2952 = vunpack.c.h.s8.bf16 %v2392
    %v2953 = vunpack.c.h.s8.bf16 %v2393
    %v2954 = vunpack.c.l.s8.bf16 %v2394
    %v2955 = vunpack.c.l.s8.bf16 %v2395
    %v2956 = vunpack.c.l.s8.bf16 %v2396
    %v2957 = vunpack.c.l.s8.bf16 %v2397
    %v2958 = vunpack.c.l.s8.bf16 %v2398
    %v2959 = vunpack.c.l.s8.bf16 %v2399
    %v2960 = vunpack.c.l.s8.bf16 %v2400
    %v2961 = vunpack.c.h.s8.bf16 %v2394
    %v2962 = vunpack.c.h.s8.bf16 %v2395
    %v2963 = vunpack.c.h.s8.bf16 %v2396
    %v2964 = vunpack.c.h.s8.bf16 %v2397
    %v2965 = vunpack.c.h.s8.bf16 %v2398
    %v2966 = vunpack.c.h.s8.bf16 %v2399
    %v2967 = vunpack.c.h.s8.bf16 %v2400
    %v2968 = vunpack.c.l.s8.bf16 %v2401
    %v2969 = vunpack.c.l.s8.bf16 %v2402
    %v2970 = vunpack.c.l.s8.bf16 %v2403
    %v2971 = vunpack.c.l.s8.bf16 %v2404
    %v2972 = vunpack.c.l.s8.bf16 %v2405
    %v2973 = vunpack.c.l.s8.bf16 %v2406
    %v2974 = vunpack.c.l.s8.bf16 %v2407
    %v2975 = vunpack.c.h.s8.bf16 %v2401
    %v2976 = vunpack.c.h.s8.bf16 %v2402
    %v2977 = vunpack.c.h.s8.bf16 %v2403
    %v2978 = vunpack.c.h.s8.bf16 %v2404
    %v2979 = vunpack.c.h.s8.bf16 %v2405
    %v2980 = vunpack.c.h.s8.bf16 %v2406
    %v2981 = vunpack.c.h.s8.bf16 %v2407
    %v2982 = vunpack.c.l.s8.bf16 %v2408
    %v2983 = vunpack.c.l.s8.bf16 %v2409
    %v2984 = vunpack.c.l.s8.bf16 %v2410
    %v2985 = vunpack.c.l.s8.bf16 %v2411
    %v2986 = vunpack.c.l.s8.bf16 %v2412
    %v2987 = vunpack.c.l.s8.bf16 %v2413
    %v2988 = vunpack.c.l.s8.bf16 %v2414
    %v2989 = vunpack.c.h.s8.bf16 %v2408
    %v2990 = vunpack.c.h.s8.bf16 %v2409
    %v2991 = vunpack.c.h.s8.bf16 %v2410
    %v2992 = vunpack.c.h.s8.bf16 %v2411
    %v2993 = vunpack.c.h.s8.bf16 %v2412
    %v2994 = vunpack.c.h.s8.bf16 %v2413
    %v2995 = vunpack.c.h.s8.bf16 %v2414
    %v2996 = vunpack.c.l.s8.bf16 %v2415
    %v2997 = vunpack.c.l.s8.bf16 %v2416
    %v2998 = vunpack.c.l.s8.bf16 %v2417
    %v2999 = vunpack.c.l.s8.bf16 %v2418
    %v3000 = vunpack.c.l.s8.bf16 %v2419
    %v3001 = vunpack.c.l.s8.bf16 %v2420
    %v3002 = vunpack.c.l.s8.bf16 %v2421
    %v3003 = vunpack.c.h.s8.bf16 %v2415
    %v3004 = vunpack.c.h.s8.bf16 %v2416
    %v3005 = vunpack.c.h.s8.bf16 %v2417
    %v3006 = vunpack.c.h.s8.bf16 %v2418
    %v3007 = vunpack.c.h.s8.bf16 %v2419
    %v3008 = vunpack.c.h.s8.bf16 %v2420
    %v3009 = vunpack.c.h.s8.bf16 %v2421
    %v3010 = vunpack.c.l.s8.bf16 %v2422
    %v3011 = vunpack.c.l.s8.bf16 %v2423
    %v3012 = vunpack.c.l.s8.bf16 %v2424
    %v3013 = vunpack.c.l.s8.bf16 %v2425
    %v3014 = vunpack.c.l.s8.bf16 %v2426
    %v3015 = vunpack.c.l.s8.bf16 %v2427
    %v3016 = vunpack.c.l.s8.bf16 %v2428
    %v3017 = vunpack.c.h.s8.bf16 %v2422
    %v3018 = vunpack.c.h.s8.bf16 %v2423
    %v3019 = vunpack.c.h.s8.bf16 %v2424
    %v3020 = vunpack.c.h.s8.bf16 %v2425
    %v3021 = vunpack.c.h.s8.bf16 %v2426
    %v3022 = vunpack.c.h.s8.bf16 %v2427
    %v3023 = vunpack.c.h.s8.bf16 %v2428
    %v3024 = vunpack.c.l.s8.bf16 %v2429
    %v3025 = vunpack.c.l.s8.bf16 %v2430
    %v3026 = vunpack.c.l.s8.bf16 %v2431
    %v3027 = vunpack.c.l.s8.bf16 %v2432
    %v3028 = vunpack.c.l.s8.bf16 %v2433
    %v3029 = vunpack.c.l.s8.bf16 %v2434
    %v3030 = vunpack.c.l.s8.bf16 %v2435
    %v3031 = vunpack.c.h.s8.bf16 %v2429
    %v3032 = vunpack.c.h.s8.bf16 %v2430
    %v3033 = vunpack.c.h.s8.bf16 %v2431
    %v3034 = vunpack.c.h.s8.bf16 %v2432
    %v3035 = vunpack.c.h.s8.bf16 %v2433
    %v3036 = vunpack.c.h.s8.bf16 %v2434
    %v3037 = vunpack.c.h.s8.bf16 %v2435
    %v3038 = vunpack.c.l.s8.bf16 %v2436
    %v3039 = vunpack.c.l.s8.bf16 %v2437
    %v3040 = vunpack.c.l.s8.bf16 %v2438
    %v3041 = vunpack.c.l.s8.bf16 %v2439
    %v3042 = vunpack.c.l.s8.bf16 %v2440
    %v3043 = vunpack.c.l.s8.bf16 %v2441
    %v3044 = vunpack.c.l.s8.bf16 %v2442
    %v3045 = vunpack.c.h.s8.bf16 %v2436
    %v3046 = vunpack.c.h.s8.bf16 %v2437
    %v3047 = vunpack.c.h.s8.bf16 %v2438
    %v3048 = vunpack.c.h.s8.bf16 %v2439
    %v3049 = vunpack.c.h.s8.bf16 %v2440
    %v3050 = vunpack.c.h.s8.bf16 %v2441
    %v3051 = vunpack.c.h.s8.bf16 %v2442
    %v3052 = vunpack.c.l.s8.bf16 %v2443
    %v3053 = vunpack.c.l.s8.bf16 %v2444
    %v3054 = vunpack.c.l.s8.bf16 %v2445
    %v3055 = vunpack.c.l.s8.bf16 %v2446
    %v3056 = vunpack.c.l.s8.bf16 %v2447
    %v3057 = vunpack.c.l.s8.bf16 %v2448
    %v3058 = vunpack.c.l.s8.bf16 %v2449
    %v3059 = vunpack.c.h.s8.bf16 %v2443
    %v3060 = vunpack.c.h.s8.bf16 %v2444
    %v3061 = vunpack.c.h.s8.bf16 %v2445
    %v3062 = vunpack.c.h.s8.bf16 %v2446
    %v3063 = vunpack.c.h.s8.bf16 %v2447
    %v3064 = vunpack.c.h.s8.bf16 %v2448
    %v3065 = vunpack.c.h.s8.bf16 %v2449
    %v3066 = vunpack.c.l.s8.bf16 %v2450
    %v3067 = vunpack.c.l.s8.bf16 %v2451
    %v3068 = vunpack.c.l.s8.bf16 %v2452
    %v3069 = vunpack.c.l.s8.bf16 %v2453
    %v3070 = vunpack.c.l.s8.bf16 %v2454
    %v3071 = vunpack.c.l.s8.bf16 %v2455
    %v3072 = vunpack.c.l.s8.bf16 %v2456
    %v3073 = vunpack.c.h.s8.bf16 %v2450
    %v3074 = vunpack.c.h.s8.bf16 %v2451
    %v3075 = vunpack.c.h.s8.bf16 %v2452
    %v3076 = vunpack.c.h.s8.bf16 %v2453
    %v3077 = vunpack.c.h.s8.bf16 %v2454
    %v3078 = vunpack.c.h.s8.bf16 %v2455
    %v3079 = vunpack.c.h.s8.bf16 %v2456
    %v3080 = vunpack.c.l.s8.bf16 %v2457
    %v3081 = vunpack.c.l.s8.bf16 %v2458
    %v3082 = vunpack.c.l.s8.bf16 %v2459
    %v3083 = vunpack.c.l.s8.bf16 %v2460
    %v3084 = vunpack.c.l.s8.bf16 %v2461
    %v3085 = vunpack.c.l.s8.bf16 %v2462
    %v3086 = vunpack.c.l.s8.bf16 %v2463
    %v3087 = vunpack.c.h.s8.bf16 %v2457
    %v3088 = vunpack.c.h.s8.bf16 %v2458
    %v3089 = vunpack.c.h.s8.bf16 %v2459
    %v3090 = vunpack.c.h.s8.bf16 %v2460
    %v3091 = vunpack.c.h.s8.bf16 %v2461
    %v3092 = vunpack.c.h.s8.bf16 %v2462
    %v3093 = vunpack.c.h.s8.bf16 %v2463
    %v3094 = vunpack.c.l.s8.bf16 %v2464
    %v3095 = vunpack.c.l.s8.bf16 %v2465
    %v3096 = vunpack.c.l.s8.bf16 %v2466
    %v3097 = vunpack.c.l.s8.bf16 %v2467
    %v3098 = vunpack.c.l.s8.bf16 %v2468
    %v3099 = vunpack.c.l.s8.bf16 %v2469
    %v3100 = vunpack.c.l.s8.bf16 %v2470
    %v3101 = vunpack.c.h.s8.bf16 %v2464
    %v3102 = vunpack.c.h.s8.bf16 %v2465
    %v3103 = vunpack.c.h.s8.bf16 %v2466
    %v3104 = vunpack.c.h.s8.bf16 %v2467
    %v3105 = vunpack.c.h.s8.bf16 %v2468
    %v3106 = vunpack.c.h.s8.bf16 %v2469
    %v3107 = vunpack.c.h.s8.bf16 %v2470
    %v3108 = vunpack.c.l.s8.bf16 %v2471
    %v3109 = vunpack.c.l.s8.bf16 %v2472
    %v3110 = vunpack.c.l.s8.bf16 %v2473
    %v3111 = vunpack.c.l.s8.bf16 %v2474
    %v3112 = vunpack.c.l.s8.bf16 %v2475
    %v3113 = vunpack.c.l.s8.bf16 %v2476
    %v3114 = vunpack.c.l.s8.bf16 %v2477
    %v3115 = vunpack.c.h.s8.bf16 %v2471
    %v3116 = vunpack.c.h.s8.bf16 %v2472
    %v3117 = vunpack.c.h.s8.bf16 %v2473
    %v3118 = vunpack.c.h.s8.bf16 %v2474
    %v3119 = vunpack.c.h.s8.bf16 %v2475
    %v3120 = vunpack.c.h.s8.bf16 %v2476
    %v3121 = vunpack.c.h.s8.bf16 %v2477
    %v3122 = vunpack.c.l.s8.bf16 %v2478
    %v3123 = vunpack.c.l.s8.bf16 %v2479
    %v3124 = vunpack.c.l.s8.bf16 %v2480
    %v3125 = vunpack.c.l.s8.bf16 %v2481
    %v3126 = vunpack.c.l.s8.bf16 %v2482
    %v3127 = vunpack.c.l.s8.bf16 %v2483
    %v3128 = vunpack.c.l.s8.bf16 %v2484
    %v3129 = vunpack.c.h.s8.bf16 %v2478
    %v3130 = vunpack.c.h.s8.bf16 %v2479
    %v3131 = vunpack.c.h.s8.bf16 %v2480
    %v3132 = vunpack.c.h.s8.bf16 %v2481
    %v3133 = vunpack.c.h.s8.bf16 %v2482
    %v3134 = vunpack.c.h.s8.bf16 %v2483
    %v3135 = vunpack.c.h.s8.bf16 %v2484
    %v3136 = vunpack.c.l.s8.bf16 %v2485
    %v3137 = vunpack.c.l.s8.bf16 %v2486
    %v3138 = vunpack.c.l.s8.bf16 %v2487
    %v3139 = vunpack.c.l.s8.bf16 %v2488
    %v3140 = vunpack.c.l.s8.bf16 %v2489
    %v3141 = vunpack.c.l.s8.bf16 %v2490
    %v3142 = vunpack.c.l.s8.bf16 %v2491
    %v3143 = vunpack.c.h.s8.bf16 %v2485
    %v3144 = vunpack.c.h.s8.bf16 %v2486
    %v3145 = vunpack.c.h.s8.bf16 %v2487
    %v3146 = vunpack.c.h.s8.bf16 %v2488
    %v3147 = vunpack.c.h.s8.bf16 %v2489
    %v3148 = vunpack.c.h.s8.bf16 %v2490
    %v3149 = vunpack.c.h.s8.bf16 %v2491
    %v3150 = vunpack.c.l.s8.bf16 %v2492
    %v3151 = vunpack.c.l.s8.bf16 %v2493
    %v3152 = vunpack.c.l.s8.bf16 %v2494
    %v3153 = vunpack.c.l.s8.bf16 %v2495
    %v3154 = vunpack.c.l.s8.bf16 %v2496
    %v3155 = vunpack.c.l.s8.bf16 %v2497
    %v3156 = vunpack.c.l.s8.bf16 %v2498
    %v3157 = vunpack.c.h.s8.bf16 %v2492
    %v3158 = vunpack.c.h.s8.bf16 %v2493
    %v3159 = vunpack.c.h.s8.bf16 %v2494
    %v3160 = vunpack.c.h.s8.bf16 %v2495
    %v3161 = vunpack.c.h.s8.bf16 %v2496
    %v3162 = vunpack.c.h.s8.bf16 %v2497
    %v3163 = vunpack.c.h.s8.bf16 %v2498
    %v3164 = vunpack.c.l.s8.bf16 %v2499
    %v3165 = vunpack.c.l.s8.bf16 %v2500
    %v3166 = vunpack.c.l.s8.bf16 %v2501
    %v3167 = vunpack.c.l.s8.bf16 %v2502
    %v3168 = vunpack.c.l.s8.bf16 %v2503
    %v3169 = vunpack.c.l.s8.bf16 %v2504
    %v3170 = vunpack.c.l.s8.bf16 %v2505
    %v3171 = vunpack.c.h.s8.bf16 %v2499
    %v3172 = vunpack.c.h.s8.bf16 %v2500
    %v3173 = vunpack.c.h.s8.bf16 %v2501
    %v3174 = vunpack.c.h.s8.bf16 %v2502
    %v3175 = vunpack.c.h.s8.bf16 %v2503
    %v3176 = vunpack.c.h.s8.bf16 %v2504
    %v3177 = vunpack.c.h.s8.bf16 %v2505
    %v3178 = vunpack.c.l.s8.bf16 %v2506
    %v3179 = vunpack.c.l.s8.bf16 %v2507
    %v3180 = vunpack.c.l.s8.bf16 %v2508
    %v3181 = vunpack.c.l.s8.bf16 %v2509
    %v3182 = vunpack.c.l.s8.bf16 %v2510
    %v3183 = vunpack.c.l.s8.bf16 %v2511
    %v3184 = vunpack.c.l.s8.bf16 %v2512
    %v3185 = vunpack.c.h.s8.bf16 %v2506
    %v3186 = vunpack.c.h.s8.bf16 %v2507
    %v3187 = vunpack.c.h.s8.bf16 %v2508
    %v3188 = vunpack.c.h.s8.bf16 %v2509
    %v3189 = vunpack.c.h.s8.bf16 %v2510
    %v3190 = vunpack.c.h.s8.bf16 %v2511
    %v3191 = vunpack.c.h.s8.bf16 %v2512
    %v3192 = vunpack.c.l.s8.bf16 %v2513
    %v3193 = vunpack.c.l.s8.bf16 %v2514
    %v3194 = vunpack.c.l.s8.bf16 %v2515
    %v3195 = vunpack.c.l.s8.bf16 %v2516
    %v3196 = vunpack.c.l.s8.bf16 %v2517
    %v3197 = vunpack.c.l.s8.bf16 %v2518
    %v3198 = vunpack.c.l.s8.bf16 %v2519
    %v3199 = vunpack.c.h.s8.bf16 %v2513
    %v3200 = vunpack.c.h.s8.bf16 %v2514
    %v3201 = vunpack.c.h.s8.bf16 %v2515
    %v3202 = vunpack.c.h.s8.bf16 %v2516
    %v3203 = vunpack.c.h.s8.bf16 %v2517
    %v3204 = vunpack.c.h.s8.bf16 %v2518
    %v3205 = vunpack.c.h.s8.bf16 %v2519
    %v3206 = vunpack.c.l.s8.bf16 %v2520
    %v3207 = vunpack.c.l.s8.bf16 %v2521
    %v3208 = vunpack.c.l.s8.bf16 %v2522
    %v3209 = vunpack.c.l.s8.bf16 %v2523
    %v3210 = vunpack.c.l.s8.bf16 %v2524
    %v3211 = vunpack.c.l.s8.bf16 %v2525
    %v3212 = vunpack.c.l.s8.bf16 %v2526
    %v3213 = vunpack.c.h.s8.bf16 %v2520
    %v3214 = vunpack.c.h.s8.bf16 %v2521
    %v3215 = vunpack.c.h.s8.bf16 %v2522
    %v3216 = vunpack.c.h.s8.bf16 %v2523
    %v3217 = vunpack.c.h.s8.bf16 %v2524
    %v3218 = vunpack.c.h.s8.bf16 %v2525
    %v3219 = vunpack.c.h.s8.bf16 %v2526
    %v3220 = vunpack.c.l.s8.bf16 %v2527
    %v3221 = vunpack.c.l.s8.bf16 %v2528
    %v3222 = vunpack.c.l.s8.bf16 %v2529
    %v3223 = vunpack.c.l.s8.bf16 %v2530
    %v3224 = vunpack.c.l.s8.bf16 %v2531
    %v3225 = vunpack.c.l.s8.bf16 %v2532
    %v3226 = vunpack.c.l.s8.bf16 %v2533
    %v3227 = vunpack.c.h.s8.bf16 %v2527
    %v3228 = vunpack.c.h.s8.bf16 %v2528
    %v3229 = vunpack.c.h.s8.bf16 %v2529
    %v3230 = vunpack.c.h.s8.bf16 %v2530
    %v3231 = vunpack.c.h.s8.bf16 %v2531
    %v3232 = vunpack.c.h.s8.bf16 %v2532
    %v3233 = vunpack.c.h.s8.bf16 %v2533
    %v3234 = vunpack.c.l.s8.bf16 %v2534
    %v3235 = vunpack.c.l.s8.bf16 %v2535
    %v3236 = vunpack.c.l.s8.bf16 %v2536
    %v3237 = vunpack.c.l.s8.bf16 %v2537
    %v3238 = vunpack.c.l.s8.bf16 %v2538
    %v3239 = vunpack.c.l.s8.bf16 %v2539
    %v3240 = vunpack.c.l.s8.bf16 %v2540
    %v3241 = vunpack.c.h.s8.bf16 %v2534
    %v3242 = vunpack.c.h.s8.bf16 %v2535
    %v3243 = vunpack.c.h.s8.bf16 %v2536
    %v3244 = vunpack.c.h.s8.bf16 %v2537
    %v3245 = vunpack.c.h.s8.bf16 %v2538
    %v3246 = vunpack.c.h.s8.bf16 %v2539
    %v3247 = vunpack.c.h.s8.bf16 %v2540
    %v3248 = vunpack.c.l.s8.bf16 %v2541
    %v3249 = vunpack.c.l.s8.bf16 %v2542
    %v3250 = vunpack.c.l.s8.bf16 %v2543
    %v3251 = vunpack.c.l.s8.bf16 %v2544
    %v3252 = vunpack.c.l.s8.bf16 %v2545
    %v3253 = vunpack.c.l.s8.bf16 %v2546
    %v3254 = vunpack.c.l.s8.bf16 %v2547
    %v3255 = vunpack.c.h.s8.bf16 %v2541
    %v3256 = vunpack.c.h.s8.bf16 %v2542
    %v3257 = vunpack.c.h.s8.bf16 %v2543
    %v3258 = vunpack.c.h.s8.bf16 %v2544
    %v3259 = vunpack.c.h.s8.bf16 %v2545
    %v3260 = vunpack.c.h.s8.bf16 %v2546
    %v3261 = vunpack.c.h.s8.bf16 %v2547
    %v3262 = vunpack.c.l.s8.bf16 %v2548
    %v3263 = vunpack.c.l.s8.bf16 %v2549
    %v3264 = vunpack.c.l.s8.bf16 %v2550
    %v3265 = vunpack.c.l.s8.bf16 %v2551
    %v3266 = vunpack.c.l.s8.bf16 %v2552
    %v3267 = vunpack.c.l.s8.bf16 %v2553
    %v3268 = vunpack.c.l.s8.bf16 %v2554
    %v3269 = vunpack.c.h.s8.bf16 %v2548
    %v3270 = vunpack.c.h.s8.bf16 %v2549
    %v3271 = vunpack.c.h.s8.bf16 %v2550
    %v3272 = vunpack.c.h.s8.bf16 %v2551
    %v3273 = vunpack.c.h.s8.bf16 %v2552
    %v3274 = vunpack.c.h.s8.bf16 %v2553
    %v3275 = vunpack.c.h.s8.bf16 %v2554
    %v3276 = vunpack.c.l.s8.bf16 %v2555
    %v3277 = vunpack.c.l.s8.bf16 %v2556
    %v3278 = vunpack.c.l.s8.bf16 %v2557
    %v3279 = vunpack.c.l.s8.bf16 %v2558
    %v3280 = vunpack.c.l.s8.bf16 %v2559
    %v3281 = vunpack.c.l.s8.bf16 %v2560
    %v3282 = vunpack.c.l.s8.bf16 %v2561
    %v3283 = vunpack.c.h.s8.bf16 %v2555
    %v3284 = vunpack.c.h.s8.bf16 %v2556
    %v3285 = vunpack.c.h.s8.bf16 %v2557
    %v3286 = vunpack.c.h.s8.bf16 %v2558
    %v3287 = vunpack.c.h.s8.bf16 %v2559
    %v3288 = vunpack.c.h.s8.bf16 %v2560
    %v3289 = vunpack.c.h.s8.bf16 %v2561
    %3290 = vmatprep.subr.bf16.mxu0 %v2612
    %3291 = vmatpush1.bf16.msra.mxu0 %v2611
    %3292 = vmatprep.subr.bf16.mxu0 %v2605
    %3293 = vmatpush1.bf16.msra.mxu0 %v2604
    %3294 = vmatprep.subr.bf16.mxu0 %v2598
    %3295 = vmatpush1.bf16.msra.mxu0 %v2597
    %3296 = vmatprep.subr.bf16.mxu0 %v2591
    %3297 = vmatpush1.bf16.msra.mxu0 %v2590
    %3298 = vmatprep.subr.bf16.mxu0 %v2584
    %3299 = vmatpush1.bf16.msra.mxu0 %v2583
    %3300 = vmatprep.subr.bf16.mxu0 %v2577
    %3301 = vmatpush1.bf16.msra.mxu0 %v2576
    %3302 = vmatprep.subr.bf16.mxu0 %v2570
    %3303 = vmatpush1.bf16.msra.mxu0 %v2569
    %3304 = vmatprep.subr.bf16.mxu0 %v2563
    %3305 = vmatpush1.bf16.msra.mxu0 %v2562
    %3306 = vmatprep.subr.bf16.mxu0 %v2668
    %3307 = vmatpush2.bf16.msra.mxu0 %v2667
    %3308 = vmatprep.subr.bf16.mxu0 %v2661
    %3309 = vmatpush2.bf16.msra.mxu0 %v2660
    %3310 = vmatprep.subr.bf16.mxu0 %v2654
    %3311 = vmatpush2.bf16.msra.mxu0 %v2653
    %3312 = vmatprep.subr.bf16.mxu0 %v2647
    %3313 = vmatpush2.bf16.msra.mxu0 %v2646
    %3314 = vmatprep.subr.bf16.mxu0 %v2640
    %3315 = vmatpush2.bf16.msra.mxu0 %v2639
    %3316 = vmatprep.subr.bf16.mxu0 %v2633
    %3317 = vmatpush2.bf16.msra.mxu0 %v2632
    %3318 = vmatprep.subr.bf16.mxu0 %v2626
    %3319 = vmatpush2.bf16.msra.mxu0 %v2625
    %3320 = vmatprep.subr.bf16.mxu0 %v2619
    %3321 = vmatpush2.bf16.msra.mxu0 %v2618
    %3322 = vmatprep.mubr.bf16.mxu0 %v2186
    %3323 = vmatmul.mubr.bf16.gmra.mxu0 %v2185
    %v3324 = vpop.f32.mrf.mxu0
    %v3325 = vadd.f32 0.0, %v3324
    %v3326 = vpop.f32.mrf.mxu0
    %v3327 = vadd.f32 0.0, %v3326
    %v3328 = vpop.f32.mrf.mxu0
    %v3329 = vpop.f32.mrf.mxu0
    %3330 = vdwg.mxu0
    %3331 = vmatprep.subr.bf16.mxu0 %v2724
    %3332 = vmatpush1.bf16.msra.mxu0 %v2723
    %3333 = vmatprep.subr.bf16.mxu0 %v2717
    %3334 = vmatpush1.bf16.msra.mxu0 %v2716
    %3335 = vmatprep.subr.bf16.mxu0 %v2710
    %3336 = vmatpush1.bf16.msra.mxu0 %v2709
    %3337 = vmatprep.subr.bf16.mxu0 %v2703
    %3338 = vmatpush1.bf16.msra.mxu0 %v2702
    %3339 = vmatprep.subr.bf16.mxu0 %v2696
    %3340 = vmatpush1.bf16.msra.mxu0 %v2695
    %3341 = vmatprep.subr.bf16.mxu0 %v2689
    %3342 = vmatpush1.bf16.msra.mxu0 %v2688
    %3343 = vmatprep.subr.bf16.mxu0 %v2682
    %3344 = vmatpush1.bf16.msra.mxu0 %v2681
    %3345 = vmatprep.subr.bf16.mxu0 %v2675
    %3346 = vmatpush1.bf16.msra.mxu0 %v2674
    %3347 = vmatprep.subr.bf16.mxu0 %v2780
    %3348 = vmatpush2.bf16.msra.mxu0 %v2779
    %3349 = vmatprep.subr.bf16.mxu0 %v2773
    %3350 = vmatpush2.bf16.msra.mxu0 %v2772
    %3351 = vmatprep.subr.bf16.mxu0 %v2766
    %3352 = vmatpush2.bf16.msra.mxu0 %v2765
    %3353 = vmatprep.subr.bf16.mxu0 %v2759
    %3354 = vmatpush2.bf16.msra.mxu0 %v2758
    %3355 = vmatprep.subr.bf16.mxu0 %v2752
    %3356 = vmatpush2.bf16.msra.mxu0 %v2751
    %3357 = vmatprep.subr.bf16.mxu0 %v2745
    %3358 = vmatpush2.bf16.msra.mxu0 %v2744
    %3359 = vmatprep.subr.bf16.mxu0 %v2738
    %3360 = vmatpush2.bf16.msra.mxu0 %v2737
    %3361 = vmatprep.subr.bf16.mxu0 %v2731
    %3362 = vmatpush2.bf16.msra.mxu0 %v2730
    %3363 = vmatprep.mubr.bf16.mxu0 %v2188
    %3364 = vmatmul.mubr.bf16.gmra.mxu0 %v2187
    %v3365 = vpop.f32.mrf.mxu0
    %v3366 = vadd.f32 %v3325, %v3365
    %v3367 = vpop.f32.mrf.mxu0
    %v3368 = vadd.f32 %v3327, %v3367
    %v3369 = vpop.f32.mrf.mxu0
    %v3370 = vpop.f32.mrf.mxu0
    %3371 = vdwg.mxu0
    %3372 = vmatprep.subr.bf16.mxu0 %v2836
    %3373 = vmatpush1.bf16.msra.mxu0 %v2835
    %3374 = vmatprep.subr.bf16.mxu0 %v2829
    %3375 = vmatpush1.bf16.msra.mxu0 %v2828
    %3376 = vmatprep.subr.bf16.mxu0 %v2822
    %3377 = vmatpush1.bf16.msra.mxu0 %v2821
    %3378 = vmatprep.subr.bf16.mxu0 %v2815
    %3379 = vmatpush1.bf16.msra.mxu0 %v2814
    %3380 = vmatprep.subr.bf16.mxu0 %v2808
    %3381 = vmatpush1.bf16.msra.mxu0 %v2807
    %3382 = vmatprep.subr.bf16.mxu0 %v2801
    %3383 = vmatpush1.bf16.msra.mxu0 %v2800
    %3384 = vmatprep.subr.bf16.mxu0 %v2794
    %3385 = vmatpush1.bf16.msra.mxu0 %v2793
    %3386 = vmatprep.subr.bf16.mxu0 %v2787
    %3387 = vmatpush1.bf16.msra.mxu0 %v2786
    %3388 = vmatprep.subr.bf16.mxu0 %v2892
    %3389 = vmatpush2.bf16.msra.mxu0 %v2891
    %3390 = vmatprep.subr.bf16.mxu0 %v2885
    %3391 = vmatpush2.bf16.msra.mxu0 %v2884
    %3392 = vmatprep.subr.bf16.mxu0 %v2878
    %3393 = vmatpush2.bf16.msra.mxu0 %v2877
    %3394 = vmatprep.subr.bf16.mxu0 %v2871
    %3395 = vmatpush2.bf16.msra.mxu0 %v2870
    %3396 = vmatprep.subr.bf16.mxu0 %v2864
    %3397 = vmatpush2.bf16.msra.mxu0 %v2863
    %3398 = vmatprep.subr.bf16.mxu0 %v2857
    %3399 = vmatpush2.bf16.msra.mxu0 %v2856
    %3400 = vmatprep.subr.bf16.mxu0 %v2850
    %3401 = vmatpush2.bf16.msra.mxu0 %v2849
    %3402 = vmatprep.subr.bf16.mxu0 %v2843
    %3403 = vmatpush2.bf16.msra.mxu0 %v2842
    %3404 = vmatprep.mubr.bf16.mxu0 %v2190
    %3405 = vmatmul.mubr.bf16.gmra.mxu0 %v2189
    %v3406 = vpop.f32.mrf.mxu0
    %v3407 = vadd.f32 %v3366, %v3406
    %v3408 = vpop.f32.mrf.mxu0
    %v3409 = vadd.f32 %v3368, %v3408
    %v3410 = vpop.f32.mrf.mxu0
    %v3411 = vpop.f32.mrf.mxu0
    %3412 = vdwg.mxu0
    %3413 = vmatprep.subr.bf16.mxu0 %v2948
    %3414 = vmatpush1.bf16.msra.mxu0 %v2947
    %3415 = vmatprep.subr.bf16.mxu0 %v2941
    %3416 = vmatpush1.bf16.msra.mxu0 %v2940
    %3417 = vmatprep.subr.bf16.mxu0 %v2934
    %3418 = vmatpush1.bf16.msra.mxu0 %v2933
    %3419 = vmatprep.subr.bf16.mxu0 %v2927
    %3420 = vmatpush1.bf16.msra.mxu0 %v2926
    %3421 = vmatprep.subr.bf16.mxu0 %v2920
    %3422 = vmatpush1.bf16.msra.mxu0 %v2919
    %3423 = vmatprep.subr.bf16.mxu0 %v2913
    %3424 = vmatpush1.bf16.msra.mxu0 %v2912
    %3425 = vmatprep.subr.bf16.mxu0 %v2906
    %3426 = vmatpush1.bf16.msra.mxu0 %v2905
    %3427 = vmatprep.subr.bf16.mxu0 %v2899
    %3428 = vmatpush1.bf16.msra.mxu0 %v2898
    %3429 = vmatprep.subr.bf16.mxu0 %v3004
    %3430 = vmatpush2.bf16.msra.mxu0 %v3003
    %3431 = vmatprep.subr.bf16.mxu0 %v2997
    %3432 = vmatpush2.bf16.msra.mxu0 %v2996
    %3433 = vmatprep.subr.bf16.mxu0 %v2990
    %3434 = vmatpush2.bf16.msra.mxu0 %v2989
    %3435 = vmatprep.subr.bf16.mxu0 %v2983
    %3436 = vmatpush2.bf16.msra.mxu0 %v2982
    %3437 = vmatprep.subr.bf16.mxu0 %v2976
    %3438 = vmatpush2.bf16.msra.mxu0 %v2975
    %3439 = vmatprep.subr.bf16.mxu0 %v2969
    %3440 = vmatpush2.bf16.msra.mxu0 %v2968
    %3441 = vmatprep.subr.bf16.mxu0 %v2962
    %3442 = vmatpush2.bf16.msra.mxu0 %v2961
    %3443 = vmatprep.subr.bf16.mxu0 %v2955
    %3444 = vmatpush2.bf16.msra.mxu0 %v2954
    %3445 = vmatprep.mubr.bf16.mxu0 %v2192
    %3446 = vmatmul.mubr.bf16.gmra.mxu0 %v2191
    %v3447 = vpop.f32.mrf.mxu0
    %v3448 = vadd.f32 %v3407, %v3447
    %v3449 = vpop.f32.mrf.mxu0
    %v3450 = vadd.f32 %v3409, %v3449
    %v3451 = vpop.f32.mrf.mxu0
    %v3452 = vpop.f32.mrf.mxu0
    %3453 = vdwg.mxu0
    %3454 = vmatprep.subr.bf16.mxu0 %v3060
    %3455 = vmatpush1.bf16.msra.mxu0 %v3059
    %3456 = vmatprep.subr.bf16.mxu0 %v3053
    %3457 = vmatpush1.bf16.msra.mxu0 %v3052
    %3458 = vmatprep.subr.bf16.mxu0 %v3046
    %3459 = vmatpush1.bf16.msra.mxu0 %v3045
    %3460 = vmatprep.subr.bf16.mxu0 %v3039
    %3461 = vmatpush1.bf16.msra.mxu0 %v3038
    %3462 = vmatprep.subr.bf16.mxu0 %v3032
    %3463 = vmatpush1.bf16.msra.mxu0 %v3031
    %3464 = vmatprep.subr.bf16.mxu0 %v3025
    %3465 = vmatpush1.bf16.msra.mxu0 %v3024
    %3466 = vmatprep.subr.bf16.mxu0 %v3018
    %3467 = vmatpush1.bf16.msra.mxu0 %v3017
    %3468 = vmatprep.subr.bf16.mxu0 %v3011
    %3469 = vmatpush1.bf16.msra.mxu0 %v3010
    %3470 = vmatprep.subr.bf16.mxu0 %v3116
    %3471 = vmatpush2.bf16.msra.mxu0 %v3115
    %3472 = vmatprep.subr.bf16.mxu0 %v3109
    %3473 = vmatpush2.bf16.msra.mxu0 %v3108
    %3474 = vmatprep.subr.bf16.mxu0 %v3102
    %3475 = vmatpush2.bf16.msra.mxu0 %v3101
    %3476 = vmatprep.subr.bf16.mxu0 %v3095
    %3477 = vmatpush2.bf16.msra.mxu0 %v3094
    %3478 = vmatprep.subr.bf16.mxu0 %v3088
    %3479 = vmatpush2.bf16.msra.mxu0 %v3087
    %3480 = vmatprep.subr.bf16.mxu0 %v3081
    %3481 = vmatpush2.bf16.msra.mxu0 %v3080
    %3482 = vmatprep.subr.bf16.mxu0 %v3074
    %3483 = vmatpush2.bf16.msra.mxu0 %v3073
    %3484 = vmatprep.subr.bf16.mxu0 %v3067
    %3485 = vmatpush2.bf16.msra.mxu0 %v3066
    %3486 = vmatprep.mubr.bf16.mxu0 %v2194
    %3487 = vmatmul.mubr.bf16.gmra.mxu0 %v2193
    %v3488 = vpop.f32.mrf.mxu0
    %v3489 = vadd.f32 %v3448, %v3488
    %v3490 = vpop.f32.mrf.mxu0
    %v3491 = vadd.f32 %v3450, %v3490
    %v3492 = vpop.f32.mrf.mxu0
    %v3493 = vpop.f32.mrf.mxu0
    %3494 = vdwg.mxu0
    %3495 = vmatprep.subr.bf16.mxu0 %v3172
    %3496 = vmatpush1.bf16.msra.mxu0 %v3171
    %3497 = vmatprep.subr.bf16.mxu0 %v3165
    %3498 = vmatpush1.bf16.msra.mxu0 %v3164
    %3499 = vmatprep.subr.bf16.mxu0 %v3158
    %3500 = vmatpush1.bf16.msra.mxu0 %v3157
    %3501 = vmatprep.subr.bf16.mxu0 %v3151
    %3502 = vmatpush1.bf16.msra.mxu0 %v3150
    %3503 = vmatprep.subr.bf16.mxu0 %v3144
    %3504 = vmatpush1.bf16.msra.mxu0 %v3143
    %3505 = vmatprep.subr.bf16.mxu0 %v3137
    %3506 = vmatpush1.bf16.msra.mxu0 %v3136
    %3507 = vmatprep.subr.bf16.mxu0 %v3130
    %3508 = vmatpush1.bf16.msra.mxu0 %v3129
    %3509 = vmatprep.subr.bf16.mxu0 %v3123
    %3510 = vmatpush1.bf16.msra.mxu0 %v3122
    %3511 = vmatprep.subr.bf16.mxu0 %v3228
    %3512 = vmatpush2.bf16.msra.mxu0 %v3227
    %3513 = vmatprep.subr.bf16.mxu0 %v3221
    %3514 = vmatpush2.bf16.msra.mxu0 %v3220
    %3515 = vmatprep.subr.bf16.mxu0 %v3214
    %3516 = vmatpush2.bf16.msra.mxu0 %v3213
    %3517 = vmatprep.subr.bf16.mxu0 %v3207
    %3518 = vmatpush2.bf16.msra.mxu0 %v3206
    %3519 = vmatprep.subr.bf16.mxu0 %v3200
    %3520 = vmatpush2.bf16.msra.mxu0 %v3199
    %3521 = vmatprep.subr.bf16.mxu0 %v3193
    %3522 = vmatpush2.bf16.msra.mxu0 %v3192
    %3523 = vmatprep.subr.bf16.mxu0 %v3186
    %3524 = vmatpush2.bf16.msra.mxu0 %v3185
    %3525 = vmatprep.subr.bf16.mxu0 %v3179
    %3526 = vmatpush2.bf16.msra.mxu0 %v3178
    %3527 = vmatprep.mubr.bf16.mxu0 %v2196
    %3528 = vmatmul.mubr.bf16.gmra.mxu0 %v2195
    %v3529 = vpop.f32.mrf.mxu0
    %v3530 = vadd.f32 %v3489, %v3529
    %v3531 = vpop.f32.mrf.mxu0
    %v3532 = vadd.f32 %v3491, %v3531
    %v3533 = vpop.f32.mrf.mxu0
    %v3534 = vpop.f32.mrf.mxu0
    %3535 = vdwg.mxu0
    %3536 = vmatprep.subr.bf16.mxu0 %v3284
    %3537 = vmatpush1.bf16.msra.mxu0 %v3283
    %3538 = vmatprep.subr.bf16.mxu0 %v3277
    %3539 = vmatpush1.bf16.msra.mxu0 %v3276
    %3540 = vmatprep.subr.bf16.mxu0 %v3270
    %3541 = vmatpush1.bf16.msra.mxu0 %v3269
    %3542 = vmatprep.subr.bf16.mxu0 %v3263
    %3543 = vmatpush1.bf16.msra.mxu0 %v3262
    %3544 = vmatprep.subr.bf16.mxu0 %v3256
    %3545 = vmatpush1.bf16.msra.mxu0 %v3255
    %3546 = vmatprep.subr.bf16.mxu0 %v3249
    %3547 = vmatpush1.bf16.msra.mxu0 %v3248
    %3548 = vmatprep.subr.bf16.mxu0 %v3242
    %3549 = vmatpush1.bf16.msra.mxu0 %v3241
    %3550 = vmatprep.subr.bf16.mxu0 %v3235
    %3551 = vmatpush1.bf16.msra.mxu0 %v3234
    %3552 = vmatprep.subr.bf16.mxu0 0
    %3553 = vmatpush2.bf16.msra.mxu0 0
    %3554 = vmatprep.subr.bf16.mxu0 0
    %3555 = vmatpush2.bf16.msra.mxu0 0
    %3556 = vmatprep.subr.bf16.mxu0 0
    %3557 = vmatpush2.bf16.msra.mxu0 0
    %3558 = vmatprep.subr.bf16.mxu0 0
    %3559 = vmatpush2.bf16.msra.mxu0 0
    %3560 = vmatprep.subr.bf16.mxu0 0
    %3561 = vmatpush2.bf16.msra.mxu0 0
    %3562 = vmatprep.subr.bf16.mxu0 0
    %3563 = vmatpush2.bf16.msra.mxu0 0
    %3564 = vmatprep.subr.bf16.mxu0 0
    %3565 = vmatpush2.bf16.msra.mxu0 0
    %3566 = vmatprep.subr.bf16.mxu0 0
    %3567 = vmatpush2.bf16.msra.mxu0 0
    %3568 = vmatprep.mubr.bf16.mxu0 0
    %3569 = vmatmul.mubr.bf16.gmra.mxu0 %v2197
    %v3570 = vpop.f32.mrf.mxu0
    %v3571 = vadd.f32 %v3530, %v3570
    %v3572 = vpop.f32.mrf.mxu0
    %v3573 = vadd.f32 %v3532, %v3572
    %v3574 = vpop.f32.mrf.mxu0
    %v3575 = vpop.f32.mrf.mxu0
    %3576 = vdwg.mxu0
    %3577 = vmatprep.subr.bf16.mxu0 %v2614
    %3578 = vmatpush1.bf16.msra.mxu0 %v2613
    %3579 = vmatprep.subr.bf16.mxu0 %v2607
    %3580 = vmatpush1.bf16.msra.mxu0 %v2606
    %3581 = vmatprep.subr.bf16.mxu0 %v2600
    %3582 = vmatpush1.bf16.msra.mxu0 %v2599
    %3583 = vmatprep.subr.bf16.mxu0 %v2593
    %3584 = vmatpush1.bf16.msra.mxu0 %v2592
    %3585 = vmatprep.subr.bf16.mxu0 %v2586
    %3586 = vmatpush1.bf16.msra.mxu0 %v2585
    %3587 = vmatprep.subr.bf16.mxu0 %v2579
    %3588 = vmatpush1.bf16.msra.mxu0 %v2578
    %3589 = vmatprep.subr.bf16.mxu0 %v2572
    %3590 = vmatpush1.bf16.msra.mxu0 %v2571
    %3591 = vmatprep.subr.bf16.mxu0 %v2565
    %3592 = vmatpush1.bf16.msra.mxu0 %v2564
    %3593 = vmatprep.subr.bf16.mxu0 %v2670
    %3594 = vmatpush2.bf16.msra.mxu0 %v2669
    %3595 = vmatprep.subr.bf16.mxu0 %v2663
    %3596 = vmatpush2.bf16.msra.mxu0 %v2662
    %3597 = vmatprep.subr.bf16.mxu0 %v2656
    %3598 = vmatpush2.bf16.msra.mxu0 %v2655
    %3599 = vmatprep.subr.bf16.mxu0 %v2649
    %3600 = vmatpush2.bf16.msra.mxu0 %v2648
    %3601 = vmatprep.subr.bf16.mxu0 %v2642
    %3602 = vmatpush2.bf16.msra.mxu0 %v2641
    %3603 = vmatprep.subr.bf16.mxu0 %v2635
    %3604 = vmatpush2.bf16.msra.mxu0 %v2634
    %3605 = vmatprep.subr.bf16.mxu0 %v2628
    %3606 = vmatpush2.bf16.msra.mxu0 %v2627
    %3607 = vmatprep.subr.bf16.mxu0 %v2621
    %3608 = vmatpush2.bf16.msra.mxu0 %v2620
    %3609 = vmatprep.mubr.bf16.mxu0 %v2186
    %3610 = vmatmul.mubr.bf16.gmra.mxu0 %v2185
    %v3611 = vpop.f32.mrf.mxu0
    %v3612 = vadd.f32 0.0, %v3611
    %v3613 = vpop.f32.mrf.mxu0
    %v3614 = vadd.f32 0.0, %v3613
    %v3615 = vpop.f32.mrf.mxu0
    %v3616 = vpop.f32.mrf.mxu0
    %3617 = vdwg.mxu0
    %3618 = vmatprep.subr.bf16.mxu0 %v2726
    %3619 = vmatpush1.bf16.msra.mxu0 %v2725
    %3620 = vmatprep.subr.bf16.mxu0 %v2719
    %3621 = vmatpush1.bf16.msra.mxu0 %v2718
    %3622 = vmatprep.subr.bf16.mxu0 %v2712
    %3623 = vmatpush1.bf16.msra.mxu0 %v2711
    %3624 = vmatprep.subr.bf16.mxu0 %v2705
    %3625 = vmatpush1.bf16.msra.mxu0 %v2704
    %3626 = vmatprep.subr.bf16.mxu0 %v2698
    %3627 = vmatpush1.bf16.msra.mxu0 %v2697
    %3628 = vmatprep.subr.bf16.mxu0 %v2691
    %3629 = vmatpush1.bf16.msra.mxu0 %v2690
    %3630 = vmatprep.subr.bf16.mxu0 %v2684
    %3631 = vmatpush1.bf16.msra.mxu0 %v2683
    %3632 = vmatprep.subr.bf16.mxu0 %v2677
    %3633 = vmatpush1.bf16.msra.mxu0 %v2676
    %3634 = vmatprep.subr.bf16.mxu0 %v2782
    %3635 = vmatpush2.bf16.msra.mxu0 %v2781
    %3636 = vmatprep.subr.bf16.mxu0 %v2775
    %3637 = vmatpush2.bf16.msra.mxu0 %v2774
    %3638 = vmatprep.subr.bf16.mxu0 %v2768
    %3639 = vmatpush2.bf16.msra.mxu0 %v2767
    %3640 = vmatprep.subr.bf16.mxu0 %v2761
    %3641 = vmatpush2.bf16.msra.mxu0 %v2760
    %3642 = vmatprep.subr.bf16.mxu0 %v2754
    %3643 = vmatpush2.bf16.msra.mxu0 %v2753
    %3644 = vmatprep.subr.bf16.mxu0 %v2747
    %3645 = vmatpush2.bf16.msra.mxu0 %v2746
    %3646 = vmatprep.subr.bf16.mxu0 %v2740
    %3647 = vmatpush2.bf16.msra.mxu0 %v2739
    %3648 = vmatprep.subr.bf16.mxu0 %v2733
    %3649 = vmatpush2.bf16.msra.mxu0 %v2732
    %3650 = vmatprep.mubr.bf16.mxu0 %v2188
    %3651 = vmatmul.mubr.bf16.gmra.mxu0 %v2187
    %v3652 = vpop.f32.mrf.mxu0
    %v3653 = vadd.f32 %v3612, %v3652
    %v3654 = vpop.f32.mrf.mxu0
    %v3655 = vadd.f32 %v3614, %v3654
    %v3656 = vpop.f32.mrf.mxu0
    %v3657 = vpop.f32.mrf.mxu0
    %3658 = vdwg.mxu0
    %3659 = vmatprep.subr.bf16.mxu0 %v2838
    %3660 = vmatpush1.bf16.msra.mxu0 %v2837
    %3661 = vmatprep.subr.bf16.mxu0 %v2831
    %3662 = vmatpush1.bf16.msra.mxu0 %v2830
    %3663 = vmatprep.subr.bf16.mxu0 %v2824
    %3664 = vmatpush1.bf16.msra.mxu0 %v2823
    %3665 = vmatprep.subr.bf16.mxu0 %v2817
    %3666 = vmatpush1.bf16.msra.mxu0 %v2816
    %3667 = vmatprep.subr.bf16.mxu0 %v2810
    %3668 = vmatpush1.bf16.msra.mxu0 %v2809
    %3669 = vmatprep.subr.bf16.mxu0 %v2803
    %3670 = vmatpush1.bf16.msra.mxu0 %v2802
    %3671 = vmatprep.subr.bf16.mxu0 %v2796
    %3672 = vmatpush1.bf16.msra.mxu0 %v2795
    %3673 = vmatprep.subr.bf16.mxu0 %v2789
    %3674 = vmatpush1.bf16.msra.mxu0 %v2788
    %3675 = vmatprep.subr.bf16.mxu0 %v2894
    %3676 = vmatpush2.bf16.msra.mxu0 %v2893
    %3677 = vmatprep.subr.bf16.mxu0 %v2887
    %3678 = vmatpush2.bf16.msra.mxu0 %v2886
    %3679 = vmatprep.subr.bf16.mxu0 %v2880
    %3680 = vmatpush2.bf16.msra.mxu0 %v2879
    %3681 = vmatprep.subr.bf16.mxu0 %v2873
    %3682 = vmatpush2.bf16.msra.mxu0 %v2872
    %3683 = vmatprep.subr.bf16.mxu0 %v2866
    %3684 = vmatpush2.bf16.msra.mxu0 %v2865
    %3685 = vmatprep.subr.bf16.mxu0 %v2859
    %3686 = vmatpush2.bf16.msra.mxu0 %v2858
    %3687 = vmatprep.subr.bf16.mxu0 %v2852
    %3688 = vmatpush2.bf16.msra.mxu0 %v2851
    %3689 = vmatprep.subr.bf16.mxu0 %v2845
    %3690 = vmatpush2.bf16.msra.mxu0 %v2844
    %3691 = vmatprep.mubr.bf16.mxu0 %v2190
    %3692 = vmatmul.mubr.bf16.gmra.mxu0 %v2189
    %v3693 = vpop.f32.mrf.mxu0
    %v3694 = vadd.f32 %v3653, %v3693
    %v3695 = vpop.f32.mrf.mxu0
    %v3696 = vadd.f32 %v3655, %v3695
    %v3697 = vpop.f32.mrf.mxu0
    %v3698 = vpop.f32.mrf.mxu0
    %3699 = vdwg.mxu0
    %3700 = vmatprep.subr.bf16.mxu0 %v2950
    %3701 = vmatpush1.bf16.msra.mxu0 %v2949
    %3702 = vmatprep.subr.bf16.mxu0 %v2943
    %3703 = vmatpush1.bf16.msra.mxu0 %v2942
    %3704 = vmatprep.subr.bf16.mxu0 %v2936
    %3705 = vmatpush1.bf16.msra.mxu0 %v2935
    %3706 = vmatprep.subr.bf16.mxu0 %v2929
    %3707 = vmatpush1.bf16.msra.mxu0 %v2928
    %3708 = vmatprep.subr.bf16.mxu0 %v2922
    %3709 = vmatpush1.bf16.msra.mxu0 %v2921
    %3710 = vmatprep.subr.bf16.mxu0 %v2915
    %3711 = vmatpush1.bf16.msra.mxu0 %v2914
    %3712 = vmatprep.subr.bf16.mxu0 %v2908
    %3713 = vmatpush1.bf16.msra.mxu0 %v2907
    %3714 = vmatprep.subr.bf16.mxu0 %v2901
    %3715 = vmatpush1.bf16.msra.mxu0 %v2900
    %3716 = vmatprep.subr.bf16.mxu0 %v3006
    %3717 = vmatpush2.bf16.msra.mxu0 %v3005
    %3718 = vmatprep.subr.bf16.mxu0 %v2999
    %3719 = vmatpush2.bf16.msra.mxu0 %v2998
    %3720 = vmatprep.subr.bf16.mxu0 %v2992
    %3721 = vmatpush2.bf16.msra.mxu0 %v2991
    %3722 = vmatprep.subr.bf16.mxu0 %v2985
    %3723 = vmatpush2.bf16.msra.mxu0 %v2984
    %3724 = vmatprep.subr.bf16.mxu0 %v2978
    %3725 = vmatpush2.bf16.msra.mxu0 %v2977
    %3726 = vmatprep.subr.bf16.mxu0 %v2971
    %3727 = vmatpush2.bf16.msra.mxu0 %v2970
    %3728 = vmatprep.subr.bf16.mxu0 %v2964
    %3729 = vmatpush2.bf16.msra.mxu0 %v2963
    %3730 = vmatprep.subr.bf16.mxu0 %v2957
    %3731 = vmatpush2.bf16.msra.mxu0 %v2956
    %3732 = vmatprep.mubr.bf16.mxu0 %v2192
    %3733 = vmatmul.mubr.bf16.gmra.mxu0 %v2191
    %v3734 = vpop.f32.mrf.mxu0
    %v3735 = vadd.f32 %v3694, %v3734
    %v3736 = vpop.f32.mrf.mxu0
    %v3737 = vadd.f32 %v3696, %v3736
    %v3738 = vpop.f32.mrf.mxu0
    %v3739 = vpop.f32.mrf.mxu0
    %3740 = vdwg.mxu0
    %3741 = vmatprep.subr.bf16.mxu0 %v3062
    %3742 = vmatpush1.bf16.msra.mxu0 %v3061
    %3743 = vmatprep.subr.bf16.mxu0 %v3055
    %3744 = vmatpush1.bf16.msra.mxu0 %v3054
    %3745 = vmatprep.subr.bf16.mxu0 %v3048
    %3746 = vmatpush1.bf16.msra.mxu0 %v3047
    %3747 = vmatprep.subr.bf16.mxu0 %v3041
    %3748 = vmatpush1.bf16.msra.mxu0 %v3040
    %3749 = vmatprep.subr.bf16.mxu0 %v3034
    %3750 = vmatpush1.bf16.msra.mxu0 %v3033
    %3751 = vmatprep.subr.bf16.mxu0 %v3027
    %3752 = vmatpush1.bf16.msra.mxu0 %v3026
    %3753 = vmatprep.subr.bf16.mxu0 %v3020
    %3754 = vmatpush1.bf16.msra.mxu0 %v3019
    %3755 = vmatprep.subr.bf16.mxu0 %v3013
    %3756 = vmatpush1.bf16.msra.mxu0 %v3012
    %3757 = vmatprep.subr.bf16.mxu0 %v3118
    %3758 = vmatpush2.bf16.msra.mxu0 %v3117
    %3759 = vmatprep.subr.bf16.mxu0 %v3111
    %3760 = vmatpush2.bf16.msra.mxu0 %v3110
    %3761 = vmatprep.subr.bf16.mxu0 %v3104
    %3762 = vmatpush2.bf16.msra.mxu0 %v3103
    %3763 = vmatprep.subr.bf16.mxu0 %v3097
    %3764 = vmatpush2.bf16.msra.mxu0 %v3096
    %3765 = vmatprep.subr.bf16.mxu0 %v3090
    %3766 = vmatpush2.bf16.msra.mxu0 %v3089
    %3767 = vmatprep.subr.bf16.mxu0 %v3083
    %3768 = vmatpush2.bf16.msra.mxu0 %v3082
    %3769 = vmatprep.subr.bf16.mxu0 %v3076
    %3770 = vmatpush2.bf16.msra.mxu0 %v3075
    %3771 = vmatprep.subr.bf16.mxu0 %v3069
    %3772 = vmatpush2.bf16.msra.mxu0 %v3068
    %3773 = vmatprep.mubr.bf16.mxu0 %v2194
    %3774 = vmatmul.mubr.bf16.gmra.mxu0 %v2193
    %v3775 = vpop.f32.mrf.mxu0
    %v3776 = vadd.f32 %v3735, %v3775
    %v3777 = vpop.f32.mrf.mxu0
    %v3778 = vadd.f32 %v3737, %v3777
    %v3779 = vpop.f32.mrf.mxu0
    %v3780 = vpop.f32.mrf.mxu0
    %3781 = vdwg.mxu0
    %3782 = vmatprep.subr.bf16.mxu0 %v3174
    %3783 = vmatpush1.bf16.msra.mxu0 %v3173
    %3784 = vmatprep.subr.bf16.mxu0 %v3167
    %3785 = vmatpush1.bf16.msra.mxu0 %v3166
    %3786 = vmatprep.subr.bf16.mxu0 %v3160
    %3787 = vmatpush1.bf16.msra.mxu0 %v3159
    %3788 = vmatprep.subr.bf16.mxu0 %v3153
    %3789 = vmatpush1.bf16.msra.mxu0 %v3152
    %3790 = vmatprep.subr.bf16.mxu0 %v3146
    %3791 = vmatpush1.bf16.msra.mxu0 %v3145
    %3792 = vmatprep.subr.bf16.mxu0 %v3139
    %3793 = vmatpush1.bf16.msra.mxu0 %v3138
    %3794 = vmatprep.subr.bf16.mxu0 %v3132
    %3795 = vmatpush1.bf16.msra.mxu0 %v3131
    %3796 = vmatprep.subr.bf16.mxu0 %v3125
    %3797 = vmatpush1.bf16.msra.mxu0 %v3124
    %3798 = vmatprep.subr.bf16.mxu0 %v3230
    %3799 = vmatpush2.bf16.msra.mxu0 %v3229
    %3800 = vmatprep.subr.bf16.mxu0 %v3223
    %3801 = vmatpush2.bf16.msra.mxu0 %v3222
    %3802 = vmatprep.subr.bf16.mxu0 %v3216
    %3803 = vmatpush2.bf16.msra.mxu0 %v3215
    %3804 = vmatprep.subr.bf16.mxu0 %v3209
    %3805 = vmatpush2.bf16.msra.mxu0 %v3208
    %3806 = vmatprep.subr.bf16.mxu0 %v3202
    %3807 = vmatpush2.bf16.msra.mxu0 %v3201
    %3808 = vmatprep.subr.bf16.mxu0 %v3195
    %3809 = vmatpush2.bf16.msra.mxu0 %v3194
    %3810 = vmatprep.subr.bf16.mxu0 %v3188
    %3811 = vmatpush2.bf16.msra.mxu0 %v3187
    %3812 = vmatprep.subr.bf16.mxu0 %v3181
    %3813 = vmatpush2.bf16.msra.mxu0 %v3180
    %3814 = vmatprep.mubr.bf16.mxu0 %v2196
    %3815 = vmatmul.mubr.bf16.gmra.mxu0 %v2195
    %v3816 = vpop.f32.mrf.mxu0
    %v3817 = vadd.f32 %v3776, %v3816
    %v3818 = vpop.f32.mrf.mxu0
    %v3819 = vadd.f32 %v3778, %v3818
    %v3820 = vpop.f32.mrf.mxu0
    %v3821 = vpop.f32.mrf.mxu0
    %3822 = vdwg.mxu0
    %3823 = vmatprep.subr.bf16.mxu0 %v3286
    %3824 = vmatpush1.bf16.msra.mxu0 %v3285
    %3825 = vmatprep.subr.bf16.mxu0 %v3279
    %3826 = vmatpush1.bf16.msra.mxu0 %v3278
    %3827 = vmatprep.subr.bf16.mxu0 %v3272
    %3828 = vmatpush1.bf16.msra.mxu0 %v3271
    %3829 = vmatprep.subr.bf16.mxu0 %v3265
    %3830 = vmatpush1.bf16.msra.mxu0 %v3264
    %3831 = vmatprep.subr.bf16.mxu0 %v3258
    %3832 = vmatpush1.bf16.msra.mxu0 %v3257
    %3833 = vmatprep.subr.bf16.mxu0 %v3251
    %3834 = vmatpush1.bf16.msra.mxu0 %v3250
    %3835 = vmatprep.subr.bf16.mxu0 %v3244
    %3836 = vmatpush1.bf16.msra.mxu0 %v3243
    %3837 = vmatprep.subr.bf16.mxu0 %v3237
    %3838 = vmatpush1.bf16.msra.mxu0 %v3236
    %3839 = vmatprep.subr.bf16.mxu0 0
    %3840 = vmatpush2.bf16.msra.mxu0 0
    %3841 = vmatprep.subr.bf16.mxu0 0
    %3842 = vmatpush2.bf16.msra.mxu0 0
    %3843 = vmatprep.subr.bf16.mxu0 0
    %3844 = vmatpush2.bf16.msra.mxu0 0
    %3845 = vmatprep.subr.bf16.mxu0 0
    %3846 = vmatpush2.bf16.msra.mxu0 0
    %3847 = vmatprep.subr.bf16.mxu0 0
    %3848 = vmatpush2.bf16.msra.mxu0 0
    %3849 = vmatprep.subr.bf16.mxu0 0
    %3850 = vmatpush2.bf16.msra.mxu0 0
    %3851 = vmatprep.subr.bf16.mxu0 0
    %3852 = vmatpush2.bf16.msra.mxu0 0
    %3853 = vmatprep.subr.bf16.mxu0 0
    %3854 = vmatpush2.bf16.msra.mxu0 0
    %3855 = vmatprep.mubr.bf16.mxu0 0
    %3856 = vmatmul.mubr.bf16.gmra.mxu0 %v2197
    %v3857 = vpop.f32.mrf.mxu0
    %v3858 = vadd.f32 %v3817, %v3857
    %v3859 = vpop.f32.mrf.mxu0
    %v3860 = vadd.f32 %v3819, %v3859
    %v3861 = vpop.f32.mrf.mxu0
    %v3862 = vpop.f32.mrf.mxu0
    %3863 = vdwg.mxu0
    %3864 = vmatprep.subr.bf16.mxu0 %v2616
    %3865 = vmatpush1.bf16.msra.mxu0 %v2615
    %3866 = vmatprep.subr.bf16.mxu0 %v2609
    %3867 = vmatpush1.bf16.msra.mxu0 %v2608
    %3868 = vmatprep.subr.bf16.mxu0 %v2602
    %3869 = vmatpush1.bf16.msra.mxu0 %v2601
    %3870 = vmatprep.subr.bf16.mxu0 %v2595
    %3871 = vmatpush1.bf16.msra.mxu0 %v2594
    %3872 = vmatprep.subr.bf16.mxu0 %v2588
    %3873 = vmatpush1.bf16.msra.mxu0 %v2587
    %3874 = vmatprep.subr.bf16.mxu0 %v2581
    %3875 = vmatpush1.bf16.msra.mxu0 %v2580
    %3876 = vmatprep.subr.bf16.mxu0 %v2574
    %3877 = vmatpush1.bf16.msra.mxu0 %v2573
    %3878 = vmatprep.subr.bf16.mxu0 %v2567
    %3879 = vmatpush1.bf16.msra.mxu0 %v2566
    %3880 = vmatprep.subr.bf16.mxu0 %v2672
    %3881 = vmatpush2.bf16.msra.mxu0 %v2671
    %3882 = vmatprep.subr.bf16.mxu0 %v2665
    %3883 = vmatpush2.bf16.msra.mxu0 %v2664
    %3884 = vmatprep.subr.bf16.mxu0 %v2658
    %3885 = vmatpush2.bf16.msra.mxu0 %v2657
    %3886 = vmatprep.subr.bf16.mxu0 %v2651
    %3887 = vmatpush2.bf16.msra.mxu0 %v2650
    %3888 = vmatprep.subr.bf16.mxu0 %v2644
    %3889 = vmatpush2.bf16.msra.mxu0 %v2643
    %3890 = vmatprep.subr.bf16.mxu0 %v2637
    %3891 = vmatpush2.bf16.msra.mxu0 %v2636
    %3892 = vmatprep.subr.bf16.mxu0 %v2630
    %3893 = vmatpush2.bf16.msra.mxu0 %v2629
    %3894 = vmatprep.subr.bf16.mxu0 %v2623
    %3895 = vmatpush2.bf16.msra.mxu0 %v2622
    %3896 = vmatprep.mubr.bf16.mxu0 %v2186
    %3897 = vmatmul.mubr.bf16.gmra.mxu0 %v2185
    %v3898 = vpop.f32.mrf.mxu0
    %v3899 = vadd.f32 0.0, %v3898
    %v3900 = vpop.f32.mrf.mxu0
    %v3901 = vadd.f32 0.0, %v3900
    %v3902 = vpop.f32.mrf.mxu0
    %v3903 = vpop.f32.mrf.mxu0
    %3904 = vdwg.mxu0
    %3905 = vmatprep.subr.bf16.mxu0 %v2728
    %3906 = vmatpush1.bf16.msra.mxu0 %v2727
    %3907 = vmatprep.subr.bf16.mxu0 %v2721
    %3908 = vmatpush1.bf16.msra.mxu0 %v2720
    %3909 = vmatprep.subr.bf16.mxu0 %v2714
    %3910 = vmatpush1.bf16.msra.mxu0 %v2713
    %3911 = vmatprep.subr.bf16.mxu0 %v2707
    %3912 = vmatpush1.bf16.msra.mxu0 %v2706
    %3913 = vmatprep.subr.bf16.mxu0 %v2700
    %3914 = vmatpush1.bf16.msra.mxu0 %v2699
    %3915 = vmatprep.subr.bf16.mxu0 %v2693
    %3916 = vmatpush1.bf16.msra.mxu0 %v2692
    %3917 = vmatprep.subr.bf16.mxu0 %v2686
    %3918 = vmatpush1.bf16.msra.mxu0 %v2685
    %3919 = vmatprep.subr.bf16.mxu0 %v2679
    %3920 = vmatpush1.bf16.msra.mxu0 %v2678
    %3921 = vmatprep.subr.bf16.mxu0 %v2784
    %3922 = vmatpush2.bf16.msra.mxu0 %v2783
    %3923 = vmatprep.subr.bf16.mxu0 %v2777
    %3924 = vmatpush2.bf16.msra.mxu0 %v2776
    %3925 = vmatprep.subr.bf16.mxu0 %v2770
    %3926 = vmatpush2.bf16.msra.mxu0 %v2769
    %3927 = vmatprep.subr.bf16.mxu0 %v2763
    %3928 = vmatpush2.bf16.msra.mxu0 %v2762
    %3929 = vmatprep.subr.bf16.mxu0 %v2756
    %3930 = vmatpush2.bf16.msra.mxu0 %v2755
    %3931 = vmatprep.subr.bf16.mxu0 %v2749
    %3932 = vmatpush2.bf16.msra.mxu0 %v2748
    %3933 = vmatprep.subr.bf16.mxu0 %v2742
    %3934 = vmatpush2.bf16.msra.mxu0 %v2741
    %3935 = vmatprep.subr.bf16.mxu0 %v2735
    %3936 = vmatpush2.bf16.msra.mxu0 %v2734
    %3937 = vmatprep.mubr.bf16.mxu0 %v2188
    %3938 = vmatmul.mubr.bf16.gmra.mxu0 %v2187
    %v3939 = vpop.f32.mrf.mxu0
    %v3940 = vadd.f32 %v3899, %v3939
    %v3941 = vpop.f32.mrf.mxu0
    %v3942 = vadd.f32 %v3901, %v3941
    %v3943 = vpop.f32.mrf.mxu0
    %v3944 = vpop.f32.mrf.mxu0
    %3945 = vdwg.mxu0
    %3946 = vmatprep.subr.bf16.mxu0 %v2840
    %3947 = vmatpush1.bf16.msra.mxu0 %v2839
    %3948 = vmatprep.subr.bf16.mxu0 %v2833
    %3949 = vmatpush1.bf16.msra.mxu0 %v2832
    %3950 = vmatprep.subr.bf16.mxu0 %v2826
    %3951 = vmatpush1.bf16.msra.mxu0 %v2825
    %3952 = vmatprep.subr.bf16.mxu0 %v2819
    %3953 = vmatpush1.bf16.msra.mxu0 %v2818
    %3954 = vmatprep.subr.bf16.mxu0 %v2812
    %3955 = vmatpush1.bf16.msra.mxu0 %v2811
    %3956 = vmatprep.subr.bf16.mxu0 %v2805
    %3957 = vmatpush1.bf16.msra.mxu0 %v2804
    %3958 = vmatprep.subr.bf16.mxu0 %v2798
    %3959 = vmatpush1.bf16.msra.mxu0 %v2797
    %3960 = vmatprep.subr.bf16.mxu0 %v2791
    %3961 = vmatpush1.bf16.msra.mxu0 %v2790
    %3962 = vmatprep.subr.bf16.mxu0 %v2896
    %3963 = vmatpush2.bf16.msra.mxu0 %v2895
    %3964 = vmatprep.subr.bf16.mxu0 %v2889
    %3965 = vmatpush2.bf16.msra.mxu0 %v2888
    %3966 = vmatprep.subr.bf16.mxu0 %v2882
    %3967 = vmatpush2.bf16.msra.mxu0 %v2881
    %3968 = vmatprep.subr.bf16.mxu0 %v2875
    %3969 = vmatpush2.bf16.msra.mxu0 %v2874
    %3970 = vmatprep.subr.bf16.mxu0 %v2868
    %3971 = vmatpush2.bf16.msra.mxu0 %v2867
    %3972 = vmatprep.subr.bf16.mxu0 %v2861
    %3973 = vmatpush2.bf16.msra.mxu0 %v2860
    %3974 = vmatprep.subr.bf16.mxu0 %v2854
    %3975 = vmatpush2.bf16.msra.mxu0 %v2853
    %3976 = vmatprep.subr.bf16.mxu0 %v2847
    %3977 = vmatpush2.bf16.msra.mxu0 %v2846
    %3978 = vmatprep.mubr.bf16.mxu0 %v2190
    %3979 = vmatmul.mubr.bf16.gmra.mxu0 %v2189
    %v3980 = vpop.f32.mrf.mxu0
    %v3981 = vadd.f32 %v3940, %v3980
    %v3982 = vpop.f32.mrf.mxu0
    %v3983 = vadd.f32 %v3942, %v3982
    %v3984 = vpop.f32.mrf.mxu0
    %v3985 = vpop.f32.mrf.mxu0
    %3986 = vdwg.mxu0
    %3987 = vmatprep.subr.bf16.mxu0 %v2952
    %3988 = vmatpush1.bf16.msra.mxu0 %v2951
    %3989 = vmatprep.subr.bf16.mxu0 %v2945
    %3990 = vmatpush1.bf16.msra.mxu0 %v2944
    %3991 = vmatprep.subr.bf16.mxu0 %v2938
    %3992 = vmatpush1.bf16.msra.mxu0 %v2937
    %3993 = vmatprep.subr.bf16.mxu0 %v2931
    %3994 = vmatpush1.bf16.msra.mxu0 %v2930
    %3995 = vmatprep.subr.bf16.mxu0 %v2924
    %3996 = vmatpush1.bf16.msra.mxu0 %v2923
    %3997 = vmatprep.subr.bf16.mxu0 %v2917
    %3998 = vmatpush1.bf16.msra.mxu0 %v2916
    %3999 = vmatprep.subr.bf16.mxu0 %v2910
    %4000 = vmatpush1.bf16.msra.mxu0 %v2909
    %4001 = vmatprep.subr.bf16.mxu0 %v2903
    %4002 = vmatpush1.bf16.msra.mxu0 %v2902
    %4003 = vmatprep.subr.bf16.mxu0 %v3008
    %4004 = vmatpush2.bf16.msra.mxu0 %v3007
    %4005 = vmatprep.subr.bf16.mxu0 %v3001
    %4006 = vmatpush2.bf16.msra.mxu0 %v3000
    %4007 = vmatprep.subr.bf16.mxu0 %v2994
    %4008 = vmatpush2.bf16.msra.mxu0 %v2993
    %4009 = vmatprep.subr.bf16.mxu0 %v2987
    %4010 = vmatpush2.bf16.msra.mxu0 %v2986
    %4011 = vmatprep.subr.bf16.mxu0 %v2980
    %4012 = vmatpush2.bf16.msra.mxu0 %v2979
    %4013 = vmatprep.subr.bf16.mxu0 %v2973
    %4014 = vmatpush2.bf16.msra.mxu0 %v2972
    %4015 = vmatprep.subr.bf16.mxu0 %v2966
    %4016 = vmatpush2.bf16.msra.mxu0 %v2965
    %4017 = vmatprep.subr.bf16.mxu0 %v2959
    %4018 = vmatpush2.bf16.msra.mxu0 %v2958
    %4019 = vmatprep.mubr.bf16.mxu0 %v2192
    %4020 = vmatmul.mubr.bf16.gmra.mxu0 %v2191
    %v4021 = vpop.f32.mrf.mxu0
    %v4022 = vadd.f32 %v3981, %v4021
    %v4023 = vpop.f32.mrf.mxu0
    %v4024 = vadd.f32 %v3983, %v4023
    %v4025 = vpop.f32.mrf.mxu0
    %v4026 = vpop.f32.mrf.mxu0
    %4027 = vdwg.mxu0
    %4028 = vmatprep.subr.bf16.mxu0 %v3064
    %4029 = vmatpush1.bf16.msra.mxu0 %v3063
    %4030 = vmatprep.subr.bf16.mxu0 %v3057
    %4031 = vmatpush1.bf16.msra.mxu0 %v3056
    %4032 = vmatprep.subr.bf16.mxu0 %v3050
    %4033 = vmatpush1.bf16.msra.mxu0 %v3049
    %4034 = vmatprep.subr.bf16.mxu0 %v3043
    %4035 = vmatpush1.bf16.msra.mxu0 %v3042
    %4036 = vmatprep.subr.bf16.mxu0 %v3036
    %4037 = vmatpush1.bf16.msra.mxu0 %v3035
    %4038 = vmatprep.subr.bf16.mxu0 %v3029
    %4039 = vmatpush1.bf16.msra.mxu0 %v3028
    %4040 = vmatprep.subr.bf16.mxu0 %v3022
    %4041 = vmatpush1.bf16.msra.mxu0 %v3021
    %4042 = vmatprep.subr.bf16.mxu0 %v3015
    %4043 = vmatpush1.bf16.msra.mxu0 %v3014
    %4044 = vmatprep.subr.bf16.mxu0 %v3120
    %4045 = vmatpush2.bf16.msra.mxu0 %v3119
    %4046 = vmatprep.subr.bf16.mxu0 %v3113
    %4047 = vmatpush2.bf16.msra.mxu0 %v3112
    %4048 = vmatprep.subr.bf16.mxu0 %v3106
    %4049 = vmatpush2.bf16.msra.mxu0 %v3105
    %4050 = vmatprep.subr.bf16.mxu0 %v3099
    %4051 = vmatpush2.bf16.msra.mxu0 %v3098
    %4052 = vmatprep.subr.bf16.mxu0 %v3092
    %4053 = vmatpush2.bf16.msra.mxu0 %v3091
    %4054 = vmatprep.subr.bf16.mxu0 %v3085
    %4055 = vmatpush2.bf16.msra.mxu0 %v3084
    %4056 = vmatprep.subr.bf16.mxu0 %v3078
    %4057 = vmatpush2.bf16.msra.mxu0 %v3077
    %4058 = vmatprep.subr.bf16.mxu0 %v3071
    %4059 = vmatpush2.bf16.msra.mxu0 %v3070
    %4060 = vmatprep.mubr.bf16.mxu0 %v2194
    %4061 = vmatmul.mubr.bf16.gmra.mxu0 %v2193
    %v4062 = vpop.f32.mrf.mxu0
    %v4063 = vadd.f32 %v4022, %v4062
    %v4064 = vpop.f32.mrf.mxu0
    %v4065 = vadd.f32 %v4024, %v4064
    %v4066 = vpop.f32.mrf.mxu0
    %v4067 = vpop.f32.mrf.mxu0
    %4068 = vdwg.mxu0
    %4069 = vmatprep.subr.bf16.mxu0 %v3176
    %4070 = vmatpush1.bf16.msra.mxu0 %v3175
    %4071 = vmatprep.subr.bf16.mxu0 %v3169
    %4072 = vmatpush1.bf16.msra.mxu0 %v3168
    %4073 = vmatprep.subr.bf16.mxu0 %v3162
    %4074 = vmatpush1.bf16.msra.mxu0 %v3161
    %4075 = vmatprep.subr.bf16.mxu0 %v3155
    %4076 = vmatpush1.bf16.msra.mxu0 %v3154
    %4077 = vmatprep.subr.bf16.mxu0 %v3148
    %4078 = vmatpush1.bf16.msra.mxu0 %v3147
    %4079 = vmatprep.subr.bf16.mxu0 %v3141
    %4080 = vmatpush1.bf16.msra.mxu0 %v3140
    %4081 = vmatprep.subr.bf16.mxu0 %v3134
    %4082 = vmatpush1.bf16.msra.mxu0 %v3133
    %4083 = vmatprep.subr.bf16.mxu0 %v3127
    %4084 = vmatpush1.bf16.msra.mxu0 %v3126
    %4085 = vmatprep.subr.bf16.mxu0 %v3232
    %4086 = vmatpush2.bf16.msra.mxu0 %v3231
    %4087 = vmatprep.subr.bf16.mxu0 %v3225
    %4088 = vmatpush2.bf16.msra.mxu0 %v3224
    %4089 = vmatprep.subr.bf16.mxu0 %v3218
    %4090 = vmatpush2.bf16.msra.mxu0 %v3217
    %4091 = vmatprep.subr.bf16.mxu0 %v3211
    %4092 = vmatpush2.bf16.msra.mxu0 %v3210
    %4093 = vmatprep.subr.bf16.mxu0 %v3204
    %4094 = vmatpush2.bf16.msra.mxu0 %v3203
    %4095 = vmatprep.subr.bf16.mxu0 %v3197
    %4096 = vmatpush2.bf16.msra.mxu0 %v3196
    %4097 = vmatprep.subr.bf16.mxu0 %v3190
    %4098 = vmatpush2.bf16.msra.mxu0 %v3189
    %4099 = vmatprep.subr.bf16.mxu0 %v3183
    %4100 = vmatpush2.bf16.msra.mxu0 %v3182
    %4101 = vmatprep.mubr.bf16.mxu0 %v2196
    %4102 = vmatmul.mubr.bf16.gmra.mxu0 %v2195
    %v4103 = vpop.f32.mrf.mxu0
    %v4104 = vadd.f32 %v4063, %v4103
    %v4105 = vpop.f32.mrf.mxu0
    %v4106 = vadd.f32 %v4065, %v4105
    %v4107 = vpop.f32.mrf.mxu0
    %v4108 = vpop.f32.mrf.mxu0
    %4109 = vdwg.mxu0
    %4110 = vmatprep.subr.bf16.mxu0 %v3288
    %4111 = vmatpush1.bf16.msra.mxu0 %v3287
    %4112 = vmatprep.subr.bf16.mxu0 %v3281
    %4113 = vmatpush1.bf16.msra.mxu0 %v3280
    %4114 = vmatprep.subr.bf16.mxu0 %v3274
    %4115 = vmatpush1.bf16.msra.mxu0 %v3273
    %4116 = vmatprep.subr.bf16.mxu0 %v3267
    %4117 = vmatpush1.bf16.msra.mxu0 %v3266
    %4118 = vmatprep.subr.bf16.mxu0 %v3260
    %4119 = vmatpush1.bf16.msra.mxu0 %v3259
    %4120 = vmatprep.subr.bf16.mxu0 %v3253
    %4121 = vmatpush1.bf16.msra.mxu0 %v3252
    %4122 = vmatprep.subr.bf16.mxu0 %v3246
    %4123 = vmatpush1.bf16.msra.mxu0 %v3245
    %4124 = vmatprep.subr.bf16.mxu0 %v3239
    %4125 = vmatpush1.bf16.msra.mxu0 %v3238
    %4126 = vmatprep.subr.bf16.mxu0 0
    %4127 = vmatpush2.bf16.msra.mxu0 0
    %4128 = vmatprep.subr.bf16.mxu0 0
    %4129 = vmatpush2.bf16.msra.mxu0 0
    %4130 = vmatprep.subr.bf16.mxu0 0
    %4131 = vmatpush2.bf16.msra.mxu0 0
    %4132 = vmatprep.subr.bf16.mxu0 0
    %4133 = vmatpush2.bf16.msra.mxu0 0
    %4134 = vmatprep.subr.bf16.mxu0 0
    %4135 = vmatpush2.bf16.msra.mxu0 0
    %4136 = vmatprep.subr.bf16.mxu0 0
    %4137 = vmatpush2.bf16.msra.mxu0 0
    %4138 = vmatprep.subr.bf16.mxu0 0
    %4139 = vmatpush2.bf16.msra.mxu0 0
    %4140 = vmatprep.subr.bf16.mxu0 0
    %4141 = vmatpush2.bf16.msra.mxu0 0
    %4142 = vmatprep.mubr.bf16.mxu0 0
    %4143 = vmatmul.mubr.bf16.gmra.mxu0 %v2197
    %v4144 = vpop.f32.mrf.mxu0
    %v4145 = vadd.f32 %v4104, %v4144
    %v4146 = vpop.f32.mrf.mxu0
    %v4147 = vadd.f32 %v4106, %v4146
    %v4148 = vpop.f32.mrf.mxu0
    %v4149 = vpop.f32.mrf.mxu0
    %4150 = vdwg.mxu0
    %4151 = vmatprep.subr.bf16.mxu0 0
    %4152 = vmatpush1.bf16.msra.mxu0 %v2617
    %4153 = vmatprep.subr.bf16.mxu0 0
    %4154 = vmatpush1.bf16.msra.mxu0 %v2610
    %4155 = vmatprep.subr.bf16.mxu0 0
    %4156 = vmatpush1.bf16.msra.mxu0 %v2603
    %4157 = vmatprep.subr.bf16.mxu0 0
    %4158 = vmatpush1.bf16.msra.mxu0 %v2596
    %4159 = vmatprep.subr.bf16.mxu0 0
    %4160 = vmatpush1.bf16.msra.mxu0 %v2589
    %4161 = vmatprep.subr.bf16.mxu0 0
    %4162 = vmatpush1.bf16.msra.mxu0 %v2582
    %4163 = vmatprep.subr.bf16.mxu0 0
    %4164 = vmatpush1.bf16.msra.mxu0 %v2575
    %4165 = vmatprep.subr.bf16.mxu0 0
    %4166 = vmatpush1.bf16.msra.mxu0 %v2568
    %4167 = vmatprep.subr.bf16.mxu0 0
    %4168 = vmatpush2.bf16.msra.mxu0 %v2673
    %4169 = vmatprep.subr.bf16.mxu0 0
    %4170 = vmatpush2.bf16.msra.mxu0 %v2666
    %4171 = vmatprep.subr.bf16.mxu0 0
    %4172 = vmatpush2.bf16.msra.mxu0 %v2659
    %4173 = vmatprep.subr.bf16.mxu0 0
    %4174 = vmatpush2.bf16.msra.mxu0 %v2652
    %4175 = vmatprep.subr.bf16.mxu0 0
    %4176 = vmatpush2.bf16.msra.mxu0 %v2645
    %4177 = vmatprep.subr.bf16.mxu0 0
    %4178 = vmatpush2.bf16.msra.mxu0 %v2638
    %4179 = vmatprep.subr.bf16.mxu0 0
    %4180 = vmatpush2.bf16.msra.mxu0 %v2631
    %4181 = vmatprep.subr.bf16.mxu0 0
    %4182 = vmatpush2.bf16.msra.mxu0 %v2624
    %4183 = vmatprep.mubr.bf16.mxu0 %v2186
    %4184 = vmatmul.mubr.bf16.gmra.mxu0 %v2185
    %v4185 = vpop.f32.mrf.mxu0
    %v4186 = vadd.f32 0.0, %v4185
    %v4187 = vpop.f32.mrf.mxu0
    %v4188 = vpop.f32.mrf.mxu0
    %v4189 = vpop.f32.mrf.mxu0
    %4190 = vdwg.mxu0
    %4191 = vmatprep.subr.bf16.mxu0 0
    %4192 = vmatpush1.bf16.msra.mxu0 %v2729
    %4193 = vmatprep.subr.bf16.mxu0 0
    %4194 = vmatpush1.bf16.msra.mxu0 %v2722
    %4195 = vmatprep.subr.bf16.mxu0 0
    %4196 = vmatpush1.bf16.msra.mxu0 %v2715
    %4197 = vmatprep.subr.bf16.mxu0 0
    %4198 = vmatpush1.bf16.msra.mxu0 %v2708
    %4199 = vmatprep.subr.bf16.mxu0 0
    %4200 = vmatpush1.bf16.msra.mxu0 %v2701
    %4201 = vmatprep.subr.bf16.mxu0 0
    %4202 = vmatpush1.bf16.msra.mxu0 %v2694
    %4203 = vmatprep.subr.bf16.mxu0 0
    %4204 = vmatpush1.bf16.msra.mxu0 %v2687
    %4205 = vmatprep.subr.bf16.mxu0 0
    %4206 = vmatpush1.bf16.msra.mxu0 %v2680
    %4207 = vmatprep.subr.bf16.mxu0 0
    %4208 = vmatpush2.bf16.msra.mxu0 %v2785
    %4209 = vmatprep.subr.bf16.mxu0 0
    %4210 = vmatpush2.bf16.msra.mxu0 %v2778
    %4211 = vmatprep.subr.bf16.mxu0 0
    %4212 = vmatpush2.bf16.msra.mxu0 %v2771
    %4213 = vmatprep.subr.bf16.mxu0 0
    %4214 = vmatpush2.bf16.msra.mxu0 %v2764
    %4215 = vmatprep.subr.bf16.mxu0 0
    %4216 = vmatpush2.bf16.msra.mxu0 %v2757
    %4217 = vmatprep.subr.bf16.mxu0 0
    %4218 = vmatpush2.bf16.msra.mxu0 %v2750
    %4219 = vmatprep.subr.bf16.mxu0 0
    %4220 = vmatpush2.bf16.msra.mxu0 %v2743
    %4221 = vmatprep.subr.bf16.mxu0 0
    %4222 = vmatpush2.bf16.msra.mxu0 %v2736
    %4223 = vmatprep.mubr.bf16.mxu0 %v2188
    %4224 = vmatmul.mubr.bf16.gmra.mxu0 %v2187
    %v4225 = vpop.f32.mrf.mxu0
    %v4226 = vadd.f32 %v4186, %v4225
    %v4227 = vpop.f32.mrf.mxu0
    %v4228 = vpop.f32.mrf.mxu0
    %v4229 = vpop.f32.mrf.mxu0
    %4230 = vdwg.mxu0
    %4231 = vmatprep.subr.bf16.mxu0 0
    %4232 = vmatpush1.bf16.msra.mxu0 %v2841
    %4233 = vmatprep.subr.bf16.mxu0 0
    %4234 = vmatpush1.bf16.msra.mxu0 %v2834
    %4235 = vmatprep.subr.bf16.mxu0 0
    %4236 = vmatpush1.bf16.msra.mxu0 %v2827
    %4237 = vmatprep.subr.bf16.mxu0 0
    %4238 = vmatpush1.bf16.msra.mxu0 %v2820
    %4239 = vmatprep.subr.bf16.mxu0 0
    %4240 = vmatpush1.bf16.msra.mxu0 %v2813
    %4241 = vmatprep.subr.bf16.mxu0 0
    %4242 = vmatpush1.bf16.msra.mxu0 %v2806
    %4243 = vmatprep.subr.bf16.mxu0 0
    %4244 = vmatpush1.bf16.msra.mxu0 %v2799
    %4245 = vmatprep.subr.bf16.mxu0 0
    %4246 = vmatpush1.bf16.msra.mxu0 %v2792
    %4247 = vmatprep.subr.bf16.mxu0 0
    %4248 = vmatpush2.bf16.msra.mxu0 %v2897
    %4249 = vmatprep.subr.bf16.mxu0 0
    %4250 = vmatpush2.bf16.msra.mxu0 %v2890
    %4251 = vmatprep.subr.bf16.mxu0 0
    %4252 = vmatpush2.bf16.msra.mxu0 %v2883
    %4253 = vmatprep.subr.bf16.mxu0 0
    %4254 = vmatpush2.bf16.msra.mxu0 %v2876
    %4255 = vmatprep.subr.bf16.mxu0 0
    %4256 = vmatpush2.bf16.msra.mxu0 %v2869
    %4257 = vmatprep.subr.bf16.mxu0 0
    %4258 = vmatpush2.bf16.msra.mxu0 %v2862
    %4259 = vmatprep.subr.bf16.mxu0 0
    %4260 = vmatpush2.bf16.msra.mxu0 %v2855
    %4261 = vmatprep.subr.bf16.mxu0 0
    %4262 = vmatpush2.bf16.msra.mxu0 %v2848
    %4263 = vmatprep.mubr.bf16.mxu0 %v2190
    %4264 = vmatmul.mubr.bf16.gmra.mxu0 %v2189
    %v4265 = vpop.f32.mrf.mxu0
    %v4266 = vadd.f32 %v4226, %v4265
    %v4267 = vpop.f32.mrf.mxu0
    %v4268 = vpop.f32.mrf.mxu0
    %v4269 = vpop.f32.mrf.mxu0
    %4270 = vdwg.mxu0
    %4271 = vmatprep.subr.bf16.mxu0 0
    %4272 = vmatpush1.bf16.msra.mxu0 %v2953
    %4273 = vmatprep.subr.bf16.mxu0 0
    %4274 = vmatpush1.bf16.msra.mxu0 %v2946
    %4275 = vmatprep.subr.bf16.mxu0 0
    %4276 = vmatpush1.bf16.msra.mxu0 %v2939
    %4277 = vmatprep.subr.bf16.mxu0 0
    %4278 = vmatpush1.bf16.msra.mxu0 %v2932
    %4279 = vmatprep.subr.bf16.mxu0 0
    %4280 = vmatpush1.bf16.msra.mxu0 %v2925
    %4281 = vmatprep.subr.bf16.mxu0 0
    %4282 = vmatpush1.bf16.msra.mxu0 %v2918
    %4283 = vmatprep.subr.bf16.mxu0 0
    %4284 = vmatpush1.bf16.msra.mxu0 %v2911
    %4285 = vmatprep.subr.bf16.mxu0 0
    %4286 = vmatpush1.bf16.msra.mxu0 %v2904
    %4287 = vmatprep.subr.bf16.mxu0 0
    %4288 = vmatpush2.bf16.msra.mxu0 %v3009
    %4289 = vmatprep.subr.bf16.mxu0 0
    %4290 = vmatpush2.bf16.msra.mxu0 %v3002
    %4291 = vmatprep.subr.bf16.mxu0 0
    %4292 = vmatpush2.bf16.msra.mxu0 %v2995
    %4293 = vmatprep.subr.bf16.mxu0 0
    %4294 = vmatpush2.bf16.msra.mxu0 %v2988
    %4295 = vmatprep.subr.bf16.mxu0 0
    %4296 = vmatpush2.bf16.msra.mxu0 %v2981
    %4297 = vmatprep.subr.bf16.mxu0 0
    %4298 = vmatpush2.bf16.msra.mxu0 %v2974
    %4299 = vmatprep.subr.bf16.mxu0 0
    %4300 = vmatpush2.bf16.msra.mxu0 %v2967
    %4301 = vmatprep.subr.bf16.mxu0 0
    %4302 = vmatpush2.bf16.msra.mxu0 %v2960
    %4303 = vmatprep.mubr.bf16.mxu0 %v2192
    %4304 = vmatmul.mubr.bf16.gmra.mxu0 %v2191
    %v4305 = vpop.f32.mrf.mxu0
    %v4306 = vadd.f32 %v4266, %v4305
    %v4307 = vpop.f32.mrf.mxu0
    %v4308 = vpop.f32.mrf.mxu0
    %v4309 = vpop.f32.mrf.mxu0
    %4310 = vdwg.mxu0
    %4311 = vmatprep.subr.bf16.mxu0 0
    %4312 = vmatpush1.bf16.msra.mxu0 %v3065
    %4313 = vmatprep.subr.bf16.mxu0 0
    %4314 = vmatpush1.bf16.msra.mxu0 %v3058
    %4315 = vmatprep.subr.bf16.mxu0 0
    %4316 = vmatpush1.bf16.msra.mxu0 %v3051
    %4317 = vmatprep.subr.bf16.mxu0 0
    %4318 = vmatpush1.bf16.msra.mxu0 %v3044
    %4319 = vmatprep.subr.bf16.mxu0 0
    %4320 = vmatpush1.bf16.msra.mxu0 %v3037
    %4321 = vmatprep.subr.bf16.mxu0 0
    %4322 = vmatpush1.bf16.msra.mxu0 %v3030
    %4323 = vmatprep.subr.bf16.mxu0 0
    %4324 = vmatpush1.bf16.msra.mxu0 %v3023
    %4325 = vmatprep.subr.bf16.mxu0 0
    %4326 = vmatpush1.bf16.msra.mxu0 %v3016
    %4327 = vmatprep.subr.bf16.mxu0 0
    %4328 = vmatpush2.bf16.msra.mxu0 %v3121
    %4329 = vmatprep.subr.bf16.mxu0 0
    %4330 = vmatpush2.bf16.msra.mxu0 %v3114
    %4331 = vmatprep.subr.bf16.mxu0 0
    %4332 = vmatpush2.bf16.msra.mxu0 %v3107
    %4333 = vmatprep.subr.bf16.mxu0 0
    %4334 = vmatpush2.bf16.msra.mxu0 %v3100
    %4335 = vmatprep.subr.bf16.mxu0 0
    %4336 = vmatpush2.bf16.msra.mxu0 %v3093
    %4337 = vmatprep.subr.bf16.mxu0 0
    %4338 = vmatpush2.bf16.msra.mxu0 %v3086
    %4339 = vmatprep.subr.bf16.mxu0 0
    %4340 = vmatpush2.bf16.msra.mxu0 %v3079
    %4341 = vmatprep.subr.bf16.mxu0 0
    %4342 = vmatpush2.bf16.msra.mxu0 %v3072
    %4343 = vmatprep.mubr.bf16.mxu0 %v2194
    %4344 = vmatmul.mubr.bf16.gmra.mxu0 %v2193
    %v4345 = vpop.f32.mrf.mxu0
    %v4346 = vadd.f32 %v4306, %v4345
    %v4347 = vpop.f32.mrf.mxu0
    %v4348 = vpop.f32.mrf.mxu0
    %v4349 = vpop.f32.mrf.mxu0
    %4350 = vdwg.mxu0
    %4351 = vmatprep.subr.bf16.mxu0 0
    %4352 = vmatpush1.bf16.msra.mxu0 %v3177
    %4353 = vmatprep.subr.bf16.mxu0 0
    %4354 = vmatpush1.bf16.msra.mxu0 %v3170
    %4355 = vmatprep.subr.bf16.mxu0 0
    %4356 = vmatpush1.bf16.msra.mxu0 %v3163
    %4357 = vmatprep.subr.bf16.mxu0 0
    %4358 = vmatpush1.bf16.msra.mxu0 %v3156
    %4359 = vmatprep.subr.bf16.mxu0 0
    %4360 = vmatpush1.bf16.msra.mxu0 %v3149
    %4361 = vmatprep.subr.bf16.mxu0 0
    %4362 = vmatpush1.bf16.msra.mxu0 %v3142
    %4363 = vmatprep.subr.bf16.mxu0 0
    %4364 = vmatpush1.bf16.msra.mxu0 %v3135
    %4365 = vmatprep.subr.bf16.mxu0 0
    %4366 = vmatpush1.bf16.msra.mxu0 %v3128
    %4367 = vmatprep.subr.bf16.mxu0 0
    %4368 = vmatpush2.bf16.msra.mxu0 %v3233
    %4369 = vmatprep.subr.bf16.mxu0 0
    %4370 = vmatpush2.bf16.msra.mxu0 %v3226
    %4371 = vmatprep.subr.bf16.mxu0 0
    %4372 = vmatpush2.bf16.msra.mxu0 %v3219
    %4373 = vmatprep.subr.bf16.mxu0 0
    %4374 = vmatpush2.bf16.msra.mxu0 %v3212
    %4375 = vmatprep.subr.bf16.mxu0 0
    %4376 = vmatpush2.bf16.msra.mxu0 %v3205
    %4377 = vmatprep.subr.bf16.mxu0 0
    %4378 = vmatpush2.bf16.msra.mxu0 %v3198
    %4379 = vmatprep.subr.bf16.mxu0 0
    %4380 = vmatpush2.bf16.msra.mxu0 %v3191
    %4381 = vmatprep.subr.bf16.mxu0 0
    %4382 = vmatpush2.bf16.msra.mxu0 %v3184
    %4383 = vmatprep.mubr.bf16.mxu0 %v2196
    %4384 = vmatmul.mubr.bf16.gmra.mxu0 %v2195
    %v4385 = vpop.f32.mrf.mxu0
    %v4386 = vadd.f32 %v4346, %v4385
    %v4387 = vpop.f32.mrf.mxu0
    %v4388 = vpop.f32.mrf.mxu0
    %v4389 = vpop.f32.mrf.mxu0
    %4390 = vdwg.mxu0
    %4391 = vmatprep.subr.bf16.mxu0 0
    %4392 = vmatpush1.bf16.msra.mxu0 %v3289
    %4393 = vmatprep.subr.bf16.mxu0 0
    %4394 = vmatpush1.bf16.msra.mxu0 %v3282
    %4395 = vmatprep.subr.bf16.mxu0 0
    %4396 = vmatpush1.bf16.msra.mxu0 %v3275
    %4397 = vmatprep.subr.bf16.mxu0 0
    %4398 = vmatpush1.bf16.msra.mxu0 %v3268
    %4399 = vmatprep.subr.bf16.mxu0 0
    %4400 = vmatpush1.bf16.msra.mxu0 %v3261
    %4401 = vmatprep.subr.bf16.mxu0 0
    %4402 = vmatpush1.bf16.msra.mxu0 %v3254
    %4403 = vmatprep.subr.bf16.mxu0 0
    %4404 = vmatpush1.bf16.msra.mxu0 %v3247
    %4405 = vmatprep.subr.bf16.mxu0 0
    %4406 = vmatpush1.bf16.msra.mxu0 %v3240
    %4407 = vmatprep.subr.bf16.mxu0 0
    %4408 = vmatpush2.bf16.msra.mxu0 0
    %4409 = vmatprep.subr.bf16.mxu0 0
    %4410 = vmatpush2.bf16.msra.mxu0 0
    %4411 = vmatprep.subr.bf16.mxu0 0
    %4412 = vmatpush2.bf16.msra.mxu0 0
    %4413 = vmatprep.subr.bf16.mxu0 0
    %4414 = vmatpush2.bf16.msra.mxu0 0
    %4415 = vmatprep.subr.bf16.mxu0 0
    %4416 = vmatpush2.bf16.msra.mxu0 0
    %4417 = vmatprep.subr.bf16.mxu0 0
    %4418 = vmatpush2.bf16.msra.mxu0 0
    %4419 = vmatprep.subr.bf16.mxu0 0
    %4420 = vmatpush2.bf16.msra.mxu0 0
    %4421 = vmatprep.subr.bf16.mxu0 0
    %4422 = vmatpush2.bf16.msra.mxu0 0
    %4423 = vmatprep.mubr.bf16.mxu0 0
    %4424 = vmatmul.mubr.bf16.gmra.mxu0 %v2197
    %v4425 = vpop.f32.mrf.mxu0
    %v4426 = vadd.f32 %v4386, %v4425
    %v4427 = vpop.f32.mrf.mxu0
    %v4428 = vpop.f32.mrf.mxu0
    %v4429 = vpop.f32.mrf.mxu0
    %4430 = vdwg.mxu0
    %v4431 = vld [vmem:[#allocation11] sm:$0xff]
    %v4433 = vlaneseq
    %v4434 = vshrl.u32 %v4433, 7
    %v4435 = vsub.s32 0, %v4434
    %v4436 = vrot.slane %v4431, %v4435
    %v4437 = vlaneseq
    %v4438 = vshrl.u32 %v4437, 7
    %v4439 = vsub.s32 1, %v4438
    %v4440 = vrot.slane %v4431, %v4439
    %v4441 = vlaneseq
    %v4442 = vshrl.u32 %v4441, 7
    %v4443 = vsub.s32 2, %v4442
    %v4444 = vrot.slane %v4431, %v4443
    %v4445 = vlaneseq
    %v4446 = vshrl.u32 %v4445, 7
    %v4447 = vsub.s32 3, %v4446
    %v4448 = vrot.slane %v4431, %v4447
    %v4449 = vlaneseq
    %v4450 = vshrl.u32 %v4449, 7
    %v4451 = vsub.s32 4, %v4450
    %v4452 = vrot.slane %v4431, %v4451
    %v4453 = vlaneseq
    %v4454 = vshrl.u32 %v4453, 7
    %v4455 = vsub.s32 5, %v4454
    %v4456 = vrot.slane %v4431, %v4455
    %v4457 = vlaneseq
    %v4458 = vshrl.u32 %v4457, 7
    %v4459 = vsub.s32 6, %v4458
    %v4460 = vrot.slane %v4431, %v4459
    %v4468 = vmul.f32 %v3571, %v4436
    %v4469 = vmul.f32 %v3573, %v4440
    %v4470 = vmul.f32 %v3858, %v4444
    %v4471 = vmul.f32 %v3860, %v4448
    %v4472 = vmul.f32 %v4145, %v4452
    %v4473 = vmul.f32 %v4147, %v4456
    %v4474 = vmul.f32 %v4426, %v4460
    %v4475 = vld [vmem:[#allocation13] sm:$0xff]
    %v4477 = vlaneseq
    %v4478 = vshrl.u32 %v4477, 7
    %v4479 = vsub.s32 0, %v4478
    %v4480 = vrot.slane %v4475, %v4479
    %v4481 = vlaneseq
    %v4482 = vshrl.u32 %v4481, 7
    %v4483 = vsub.s32 1, %v4482
    %v4484 = vrot.slane %v4475, %v4483
    %v4485 = vlaneseq
    %v4486 = vshrl.u32 %v4485, 7
    %v4487 = vsub.s32 2, %v4486
    %v4488 = vrot.slane %v4475, %v4487
    %v4489 = vlaneseq
    %v4490 = vshrl.u32 %v4489, 7
    %v4491 = vsub.s32 3, %v4490
    %v4492 = vrot.slane %v4475, %v4491
    %v4493 = vlaneseq
    %v4494 = vshrl.u32 %v4493, 7
    %v4495 = vsub.s32 4, %v4494
    %v4496 = vrot.slane %v4475, %v4495
    %v4497 = vlaneseq
    %v4498 = vshrl.u32 %v4497, 7
    %v4499 = vsub.s32 5, %v4498
    %v4500 = vrot.slane %v4475, %v4499
    %v4501 = vlaneseq
    %v4502 = vshrl.u32 %v4501, 7
    %v4503 = vsub.s32 6, %v4502
    %v4504 = vrot.slane %v4475, %v4503
    %v4512 = vadd.f32 %v4468, %v4480
    %v4513 = vadd.f32 %v4469, %v4484
    %v4514 = vadd.f32 %v4470, %v4488
    %v4515 = vadd.f32 %v4471, %v4492
    %v4516 = vadd.f32 %v4472, %v4496
    %v4517 = vadd.f32 %v4473, %v4500
    %v4518 = vadd.f32 %v4474, %v4504
    %v4519 = vmax.f32 %v4512, 0.0
    %v4520 = vmax.f32 %v4513, 0.0
    %v4521 = vmax.f32 %v4514, 0.0
    %v4522 = vmax.f32 %v4515, 0.0
    %v4523 = vmax.f32 %v4516, 0.0
    %v4524 = vmax.f32 %v4517, 0.0
    %v4525 = vmax.f32 %v4518, 0.0
    %v4526 = vpack.c.bf16 %v4519, %v4519
    %v4527 = vpack.c.bf16 %v4520, %v4520
    %v4528 = vpack.c.bf16 %v4521, %v4521
    %v4529 = vpack.c.bf16 %v4522, %v4522
    %v4530 = vpack.c.bf16 %v4523, %v4523
    %v4531 = vpack.c.bf16 %v4524, %v4524
    %v4532 = vpack.c.bf16 %v4525, %v4525
    %v4533 = vld [vmem:[#allocation14] sm:$0xff]
    %v4534 = vld [vmem:[#allocation14 + $0x8] sm:$0xff]
    %v4535 = vld [vmem:[#allocation14 + $0x10] sm:$0xff]
    %v4536 = vld [vmem:[#allocation14 + $0x18] sm:$0xff]
    %v4537 = vld [vmem:[#allocation14 + $0x20] sm:$0xff]
    %v4538 = vld [vmem:[#allocation14 + $0x28] sm:$0xff]
    %v4539 = vld [vmem:[#allocation14 + $0x30] sm:$0xff]
    %v4540 = vld [vmem:[#allocation14 + $0x38] sm:$0xff]
    %v4541 = vld [vmem:[#allocation14 + $0x40] sm:$0xff]
    %v4542 = vld [vmem:[#allocation14 + $0x48] sm:$0xff]
    %v4543 = vld [vmem:[#allocation14 + $0x50] sm:$0xff]
    %v4544 = vld [vmem:[#allocation14 + $0x58] sm:$0xff]
    %v4545 = vld [vmem:[#allocation14 + $0x60] sm:$0xff]
    %v4546 = vld [vmem:[#allocation14 + $0x68] sm:$0xff]
    %v4547 = vld [vmem:[#allocation14 + $0x70] sm:$0xff]
    %v4548 = vld [vmem:[#allocation14 + $0x78] sm:$0xff]
    %v4549 = vld [vmem:[#allocation14 + $0x80] sm:$0xff]
    %v4550 = vld [vmem:[#allocation14 + $0x88] sm:$0xff]
    %v4551 = vld [vmem:[#allocation14 + $0x90] sm:$0xff]
    %v4552 = vld [vmem:[#allocation14 + $0x98] sm:$0xff]
    %v4553 = vld [vmem:[#allocation14 + $0xa0] sm:$0xff]
    %v4554 = vld [vmem:[#allocation14 + $0xa8] sm:$0xff]
    %v4555 = vld [vmem:[#allocation14 + $0xb0] sm:$0xff]
    %v4556 = vld [vmem:[#allocation14 + $0xb8] sm:$0xff]
    %v4557 = vld [vmem:[#allocation14 + $0xc0] sm:$0xff]
    %v4558 = vld [vmem:[#allocation14 + $0xc8] sm:$0xff]
    %v4559 = vld [vmem:[#allocation14 + $0xd0] sm:$0xff]
    %v4560 = vld [vmem:[#allocation14 + $0xd8] sm:$0xff]
    %v4561 = vld [vmem:[#allocation14 + $0xe0] sm:$0xff]
    %v4562 = vld [vmem:[#allocation14 + $0xe8] sm:$0xff]
    %v4563 = vld [vmem:[#allocation14 + $0xf0] sm:$0xff]
    %v4564 = vld [vmem:[#allocation14 + $0xf8] sm:$0xff]
    %v4565 = vld [vmem:[#allocation14 + $0x100] sm:$0xff]
    %v4566 = vld [vmem:[#allocation14 + $0x108] sm:$0xff]
    %v4567 = vld [vmem:[#allocation14 + $0x110] sm:$0xff]
    %v4568 = vld [vmem:[#allocation14 + $0x118] sm:$0xff]
    %v4569 = vld [vmem:[#allocation14 + $0x120] sm:$0xff]
    %v4570 = vld [vmem:[#allocation14 + $0x128] sm:$0xff]
    %v4571 = vld [vmem:[#allocation14 + $0x130] sm:$0xff]
    %v4572 = vld [vmem:[#allocation14 + $0x138] sm:$0xff]
    %v4573 = vld [vmem:[#allocation14 + $0x140] sm:$0xff]
    %v4574 = vld [vmem:[#allocation14 + $0x148] sm:$0xff]
    %v4575 = vld [vmem:[#allocation14 + $0x150] sm:$0xff]
    %v4576 = vld [vmem:[#allocation14 + $0x158] sm:$0xff]
    %v4577 = vld [vmem:[#allocation14 + $0x160] sm:$0xff]
    %v4578 = vld [vmem:[#allocation14 + $0x168] sm:$0xff]
    %v4579 = vld [vmem:[#allocation14 + $0x170] sm:$0xff]
    %v4580 = vld [vmem:[#allocation14 + $0x178] sm:$0xff]
    %v4581 = vld [vmem:[#allocation14 + $0x180] sm:$0xff]
    %v4582 = vld [vmem:[#allocation14 + $0x188] sm:$0xff]
    %v4583 = vld [vmem:[#allocation14 + $0x190] sm:$0xff]
    %v4584 = vld [vmem:[#allocation14 + $0x198] sm:$0xff]
    %v4585 = vld [vmem:[#allocation14 + $0x1a0] sm:$0xff]
    %v4586 = vld [vmem:[#allocation14 + $0x1a8] sm:$0xff]
    %v4587 = vld [vmem:[#allocation14 + $0x1b0] sm:$0xff]
    %v4588 = vld [vmem:[#allocation14 + $0x1b8] sm:$0xff]
    %v4589 = vunpack.c.l.s8.bf16 %v4533
    %v4590 = vunpack.c.l.s8.bf16 %v4534
    %v4591 = vunpack.c.h.s8.bf16 %v4533
    %v4592 = vunpack.c.h.s8.bf16 %v4534
    %v4593 = vunpack.c.l.s8.bf16 %v4535
    %v4594 = vunpack.c.l.s8.bf16 %v4536
    %v4595 = vunpack.c.h.s8.bf16 %v4535
    %v4596 = vunpack.c.h.s8.bf16 %v4536
    %v4597 = vunpack.c.l.s8.bf16 %v4537
    %v4598 = vunpack.c.l.s8.bf16 %v4538
    %v4599 = vunpack.c.h.s8.bf16 %v4537
    %v4600 = vunpack.c.h.s8.bf16 %v4538
    %v4601 = vunpack.c.l.s8.bf16 %v4539
    %v4602 = vunpack.c.l.s8.bf16 %v4540
    %v4603 = vunpack.c.h.s8.bf16 %v4539
    %v4604 = vunpack.c.h.s8.bf16 %v4540
    %v4605 = vunpack.c.l.s8.bf16 %v4541
    %v4606 = vunpack.c.l.s8.bf16 %v4542
    %v4607 = vunpack.c.h.s8.bf16 %v4541
    %v4608 = vunpack.c.h.s8.bf16 %v4542
    %v4609 = vunpack.c.l.s8.bf16 %v4543
    %v4610 = vunpack.c.l.s8.bf16 %v4544
    %v4611 = vunpack.c.h.s8.bf16 %v4543
    %v4612 = vunpack.c.h.s8.bf16 %v4544
    %v4613 = vunpack.c.l.s8.bf16 %v4545
    %v4614 = vunpack.c.l.s8.bf16 %v4546
    %v4615 = vunpack.c.h.s8.bf16 %v4545
    %v4616 = vunpack.c.h.s8.bf16 %v4546
    %v4617 = vunpack.c.l.s8.bf16 %v4547
    %v4618 = vunpack.c.l.s8.bf16 %v4548
    %v4619 = vunpack.c.h.s8.bf16 %v4547
    %v4620 = vunpack.c.h.s8.bf16 %v4548
    %v4621 = vunpack.c.l.s8.bf16 %v4549
    %v4622 = vunpack.c.l.s8.bf16 %v4550
    %v4623 = vunpack.c.h.s8.bf16 %v4549
    %v4624 = vunpack.c.h.s8.bf16 %v4550
    %v4625 = vunpack.c.l.s8.bf16 %v4551
    %v4626 = vunpack.c.l.s8.bf16 %v4552
    %v4627 = vunpack.c.h.s8.bf16 %v4551
    %v4628 = vunpack.c.h.s8.bf16 %v4552
    %v4629 = vunpack.c.l.s8.bf16 %v4553
    %v4630 = vunpack.c.l.s8.bf16 %v4554
    %v4631 = vunpack.c.h.s8.bf16 %v4553
    %v4632 = vunpack.c.h.s8.bf16 %v4554
    %v4633 = vunpack.c.l.s8.bf16 %v4555
    %v4634 = vunpack.c.l.s8.bf16 %v4556
    %v4635 = vunpack.c.h.s8.bf16 %v4555
    %v4636 = vunpack.c.h.s8.bf16 %v4556
    %v4637 = vunpack.c.l.s8.bf16 %v4557
    %v4638 = vunpack.c.l.s8.bf16 %v4558
    %v4639 = vunpack.c.h.s8.bf16 %v4557
    %v4640 = vunpack.c.h.s8.bf16 %v4558
    %v4641 = vunpack.c.l.s8.bf16 %v4559
    %v4642 = vunpack.c.l.s8.bf16 %v4560
    %v4643 = vunpack.c.h.s8.bf16 %v4559
    %v4644 = vunpack.c.h.s8.bf16 %v4560
    %v4645 = vunpack.c.l.s8.bf16 %v4561
    %v4646 = vunpack.c.l.s8.bf16 %v4562
    %v4647 = vunpack.c.h.s8.bf16 %v4561
    %v4648 = vunpack.c.h.s8.bf16 %v4562
    %v4649 = vunpack.c.l.s8.bf16 %v4563
    %v4650 = vunpack.c.l.s8.bf16 %v4564
    %v4651 = vunpack.c.h.s8.bf16 %v4563
    %v4652 = vunpack.c.h.s8.bf16 %v4564
    %v4653 = vunpack.c.l.s8.bf16 %v4565
    %v4654 = vunpack.c.l.s8.bf16 %v4566
    %v4655 = vunpack.c.h.s8.bf16 %v4565
    %v4656 = vunpack.c.h.s8.bf16 %v4566
    %v4657 = vunpack.c.l.s8.bf16 %v4567
    %v4658 = vunpack.c.l.s8.bf16 %v4568
    %v4659 = vunpack.c.h.s8.bf16 %v4567
    %v4660 = vunpack.c.h.s8.bf16 %v4568
    %v4661 = vunpack.c.l.s8.bf16 %v4569
    %v4662 = vunpack.c.l.s8.bf16 %v4570
    %v4663 = vunpack.c.h.s8.bf16 %v4569
    %v4664 = vunpack.c.h.s8.bf16 %v4570
    %v4665 = vunpack.c.l.s8.bf16 %v4571
    %v4666 = vunpack.c.l.s8.bf16 %v4572
    %v4667 = vunpack.c.h.s8.bf16 %v4571
    %v4668 = vunpack.c.h.s8.bf16 %v4572
    %v4669 = vunpack.c.l.s8.bf16 %v4573
    %v4670 = vunpack.c.l.s8.bf16 %v4574
    %v4671 = vunpack.c.h.s8.bf16 %v4573
    %v4672 = vunpack.c.h.s8.bf16 %v4574
    %v4673 = vunpack.c.l.s8.bf16 %v4575
    %v4674 = vunpack.c.l.s8.bf16 %v4576
    %v4675 = vunpack.c.h.s8.bf16 %v4575
    %v4676 = vunpack.c.h.s8.bf16 %v4576
    %v4677 = vunpack.c.l.s8.bf16 %v4577
    %v4678 = vunpack.c.l.s8.bf16 %v4578
    %v4679 = vunpack.c.h.s8.bf16 %v4577
    %v4680 = vunpack.c.h.s8.bf16 %v4578
    %v4681 = vunpack.c.l.s8.bf16 %v4579
    %v4682 = vunpack.c.l.s8.bf16 %v4580
    %v4683 = vunpack.c.h.s8.bf16 %v4579
    %v4684 = vunpack.c.h.s8.bf16 %v4580
    %v4685 = vunpack.c.l.s8.bf16 %v4581
    %v4686 = vunpack.c.l.s8.bf16 %v4582
    %v4687 = vunpack.c.h.s8.bf16 %v4581
    %v4688 = vunpack.c.h.s8.bf16 %v4582
    %v4689 = vunpack.c.l.s8.bf16 %v4583
    %v4690 = vunpack.c.l.s8.bf16 %v4584
    %v4691 = vunpack.c.h.s8.bf16 %v4583
    %v4692 = vunpack.c.h.s8.bf16 %v4584
    %v4693 = vunpack.c.l.s8.bf16 %v4585
    %v4694 = vunpack.c.l.s8.bf16 %v4586
    %v4695 = vunpack.c.h.s8.bf16 %v4585
    %v4696 = vunpack.c.h.s8.bf16 %v4586
    %v4697 = vunpack.c.l.s8.bf16 %v4587
    %v4698 = vunpack.c.l.s8.bf16 %v4588
    %v4699 = vunpack.c.h.s8.bf16 %v4587
    %v4700 = vunpack.c.h.s8.bf16 %v4588
    %4701 = vmatprep.subr.bf16.mxu0 %v4604
    %4702 = vmatpush1.bf16.msra.mxu0 %v4603
    %4703 = vmatprep.subr.bf16.mxu0 %v4602
    %4704 = vmatpush1.bf16.msra.mxu0 %v4601
    %4705 = vmatprep.subr.bf16.mxu0 %v4600
    %4706 = vmatpush1.bf16.msra.mxu0 %v4599
    %4707 = vmatprep.subr.bf16.mxu0 %v4598
    %4708 = vmatpush1.bf16.msra.mxu0 %v4597
    %4709 = vmatprep.subr.bf16.mxu0 %v4596
    %4710 = vmatpush1.bf16.msra.mxu0 %v4595
    %4711 = vmatprep.subr.bf16.mxu0 %v4594
    %4712 = vmatpush1.bf16.msra.mxu0 %v4593
    %4713 = vmatprep.subr.bf16.mxu0 %v4592
    %4714 = vmatpush1.bf16.msra.mxu0 %v4591
    %4715 = vmatprep.subr.bf16.mxu0 %v4590
    %4716 = vmatpush1.bf16.msra.mxu0 %v4589
    %4717 = vmatprep.subr.bf16.mxu0 %v4620
    %4718 = vmatpush2.bf16.msra.mxu0 %v4619
    %4719 = vmatprep.subr.bf16.mxu0 %v4618
    %4720 = vmatpush2.bf16.msra.mxu0 %v4617
    %4721 = vmatprep.subr.bf16.mxu0 %v4616
    %4722 = vmatpush2.bf16.msra.mxu0 %v4615
    %4723 = vmatprep.subr.bf16.mxu0 %v4614
    %4724 = vmatpush2.bf16.msra.mxu0 %v4613
    %4725 = vmatprep.subr.bf16.mxu0 %v4612
    %4726 = vmatpush2.bf16.msra.mxu0 %v4611
    %4727 = vmatprep.subr.bf16.mxu0 %v4610
    %4728 = vmatpush2.bf16.msra.mxu0 %v4609
    %4729 = vmatprep.subr.bf16.mxu0 %v4608
    %4730 = vmatpush2.bf16.msra.mxu0 %v4607
    %4731 = vmatprep.subr.bf16.mxu0 %v4606
    %4732 = vmatpush2.bf16.msra.mxu0 %v4605
    %4733 = vmatprep.mubr.bf16.mxu0 %v4527
    %4734 = vmatmul.mubr.bf16.gmra.mxu0 %v4526
    %v4735 = vpop.f32.mrf.mxu0
    %v4736 = vadd.f32 0.0, %v4735
    %v4737 = vpop.f32.mrf.mxu0
    %v4738 = vadd.f32 0.0, %v4737
    %v4739 = vpop.f32.mrf.mxu0
    %v4740 = vpop.f32.mrf.mxu0
    %4741 = vdwg.mxu0
    %4742 = vmatprep.subr.bf16.mxu0 %v4636
    %4743 = vmatpush1.bf16.msra.mxu0 %v4635
    %4744 = vmatprep.subr.bf16.mxu0 %v4634
    %4745 = vmatpush1.bf16.msra.mxu0 %v4633
    %4746 = vmatprep.subr.bf16.mxu0 %v4632
    %4747 = vmatpush1.bf16.msra.mxu0 %v4631
    %4748 = vmatprep.subr.bf16.mxu0 %v4630
    %4749 = vmatpush1.bf16.msra.mxu0 %v4629
    %4750 = vmatprep.subr.bf16.mxu0 %v4628
    %4751 = vmatpush1.bf16.msra.mxu0 %v4627
    %4752 = vmatprep.subr.bf16.mxu0 %v4626
    %4753 = vmatpush1.bf16.msra.mxu0 %v4625
    %4754 = vmatprep.subr.bf16.mxu0 %v4624
    %4755 = vmatpush1.bf16.msra.mxu0 %v4623
    %4756 = vmatprep.subr.bf16.mxu0 %v4622
    %4757 = vmatpush1.bf16.msra.mxu0 %v4621
    %4758 = vmatprep.subr.bf16.mxu0 %v4652
    %4759 = vmatpush2.bf16.msra.mxu0 %v4651
    %4760 = vmatprep.subr.bf16.mxu0 %v4650
    %4761 = vmatpush2.bf16.msra.mxu0 %v4649
    %4762 = vmatprep.subr.bf16.mxu0 %v4648
    %4763 = vmatpush2.bf16.msra.mxu0 %v4647
    %4764 = vmatprep.subr.bf16.mxu0 %v4646
    %4765 = vmatpush2.bf16.msra.mxu0 %v4645
    %4766 = vmatprep.subr.bf16.mxu0 %v4644
    %4767 = vmatpush2.bf16.msra.mxu0 %v4643
    %4768 = vmatprep.subr.bf16.mxu0 %v4642
    %4769 = vmatpush2.bf16.msra.mxu0 %v4641
    %4770 = vmatprep.subr.bf16.mxu0 %v4640
    %4771 = vmatpush2.bf16.msra.mxu0 %v4639
    %4772 = vmatprep.subr.bf16.mxu0 %v4638
    %4773 = vmatpush2.bf16.msra.mxu0 %v4637
    %4774 = vmatprep.mubr.bf16.mxu0 %v4529
    %4775 = vmatmul.mubr.bf16.gmra.mxu0 %v4528
    %v4776 = vpop.f32.mrf.mxu0
    %v4777 = vadd.f32 %v4736, %v4776
    %v4778 = vpop.f32.mrf.mxu0
    %v4779 = vadd.f32 %v4738, %v4778
    %v4780 = vpop.f32.mrf.mxu0
    %v4781 = vpop.f32.mrf.mxu0
    %4782 = vdwg.mxu0
    %4783 = vmatprep.subr.bf16.mxu0 %v4668
    %4784 = vmatpush1.bf16.msra.mxu0 %v4667
    %4785 = vmatprep.subr.bf16.mxu0 %v4666
    %4786 = vmatpush1.bf16.msra.mxu0 %v4665
    %4787 = vmatprep.subr.bf16.mxu0 %v4664
    %4788 = vmatpush1.bf16.msra.mxu0 %v4663
    %4789 = vmatprep.subr.bf16.mxu0 %v4662
    %4790 = vmatpush1.bf16.msra.mxu0 %v4661
    %4791 = vmatprep.subr.bf16.mxu0 %v4660
    %4792 = vmatpush1.bf16.msra.mxu0 %v4659
    %4793 = vmatprep.subr.bf16.mxu0 %v4658
    %4794 = vmatpush1.bf16.msra.mxu0 %v4657
    %4795 = vmatprep.subr.bf16.mxu0 %v4656
    %4796 = vmatpush1.bf16.msra.mxu0 %v4655
    %4797 = vmatprep.subr.bf16.mxu0 %v4654
    %4798 = vmatpush1.bf16.msra.mxu0 %v4653
    %4799 = vmatprep.subr.bf16.mxu0 %v4684
    %4800 = vmatpush2.bf16.msra.mxu0 %v4683
    %4801 = vmatprep.subr.bf16.mxu0 %v4682
    %4802 = vmatpush2.bf16.msra.mxu0 %v4681
    %4803 = vmatprep.subr.bf16.mxu0 %v4680
    %4804 = vmatpush2.bf16.msra.mxu0 %v4679
    %4805 = vmatprep.subr.bf16.mxu0 %v4678
    %4806 = vmatpush2.bf16.msra.mxu0 %v4677
    %4807 = vmatprep.subr.bf16.mxu0 %v4676
    %4808 = vmatpush2.bf16.msra.mxu0 %v4675
    %4809 = vmatprep.subr.bf16.mxu0 %v4674
    %4810 = vmatpush2.bf16.msra.mxu0 %v4673
    %4811 = vmatprep.subr.bf16.mxu0 %v4672
    %4812 = vmatpush2.bf16.msra.mxu0 %v4671
    %4813 = vmatprep.subr.bf16.mxu0 %v4670
    %4814 = vmatpush2.bf16.msra.mxu0 %v4669
    %4815 = vmatprep.mubr.bf16.mxu0 %v4531
    %4816 = vmatmul.mubr.bf16.gmra.mxu0 %v4530
    %v4817 = vpop.f32.mrf.mxu0
    %v4818 = vadd.f32 %v4777, %v4817
    %v4819 = vpop.f32.mrf.mxu0
    %v4820 = vadd.f32 %v4779, %v4819
    %v4821 = vpop.f32.mrf.mxu0
    %v4822 = vpop.f32.mrf.mxu0
    %4823 = vdwg.mxu0
    %4824 = vmatprep.subr.bf16.mxu0 %v4700
    %4825 = vmatpush1.bf16.msra.mxu0 %v4699
    %4826 = vmatprep.subr.bf16.mxu0 %v4698
    %4827 = vmatpush1.bf16.msra.mxu0 %v4697
    %4828 = vmatprep.subr.bf16.mxu0 %v4696
    %4829 = vmatpush1.bf16.msra.mxu0 %v4695
    %4830 = vmatprep.subr.bf16.mxu0 %v4694
    %4831 = vmatpush1.bf16.msra.mxu0 %v4693
    %4832 = vmatprep.subr.bf16.mxu0 %v4692
    %4833 = vmatpush1.bf16.msra.mxu0 %v4691
    %4834 = vmatprep.subr.bf16.mxu0 %v4690
    %4835 = vmatpush1.bf16.msra.mxu0 %v4689
    %4836 = vmatprep.subr.bf16.mxu0 %v4688
    %4837 = vmatpush1.bf16.msra.mxu0 %v4687
    %4838 = vmatprep.subr.bf16.mxu0 %v4686
    %4839 = vmatpush1.bf16.msra.mxu0 %v4685
    %4840 = vmatprep.subr.bf16.mxu0 0
    %4841 = vmatpush2.bf16.msra.mxu0 0
    %4842 = vmatprep.subr.bf16.mxu0 0
    %4843 = vmatpush2.bf16.msra.mxu0 0
    %4844 = vmatprep.subr.bf16.mxu0 0
    %4845 = vmatpush2.bf16.msra.mxu0 0
    %4846 = vmatprep.subr.bf16.mxu0 0
    %4847 = vmatpush2.bf16.msra.mxu0 0
    %4848 = vmatprep.subr.bf16.mxu0 0
    %4849 = vmatpush2.bf16.msra.mxu0 0
    %4850 = vmatprep.subr.bf16.mxu0 0
    %4851 = vmatpush2.bf16.msra.mxu0 0
    %4852 = vmatprep.subr.bf16.mxu0 0
    %4853 = vmatpush2.bf16.msra.mxu0 0
    %4854 = vmatprep.subr.bf16.mxu0 0
    %4855 = vmatpush2.bf16.msra.mxu0 0
    %4856 = vmatprep.mubr.bf16.mxu0 0
    %4857 = vmatmul.mubr.bf16.gmra.mxu0 %v4532
    %v4858 = vpop.f32.mrf.mxu0
    %v4859 = vadd.f32 %v4818, %v4858
    %v4860 = vpop.f32.mrf.mxu0
    %v4861 = vadd.f32 %v4820, %v4860
    %v4862 = vpop.f32.mrf.mxu0
    %v4863 = vpop.f32.mrf.mxu0
    %4864 = vdwg.mxu0
    %v4865 = vld [vmem:[#allocation16] sm:$0x3]
    %v4867 = vlaneseq
    %v4868 = vshrl.u32 %v4867, 7
    %v4869 = vsub.s32 0, %v4868
    %v4870 = vrot.slane %v4865, %v4869
    %v4871 = vlaneseq
    %v4872 = vshrl.u32 %v4871, 7
    %v4873 = vsub.s32 1, %v4872
    %v4874 = vrot.slane %v4865, %v4873
    %v4877 = vmul.f32 %v4859, %v4870
    %v4878 = vmul.f32 %v4861, %v4874
    %v4879 = vld [vmem:[#allocation17] sm:$0x3]
    %v4881 = vlaneseq
    %v4882 = vshrl.u32 %v4881, 7
    %v4883 = vsub.s32 0, %v4882
    %v4884 = vrot.slane %v4879, %v4883
    %v4885 = vlaneseq
    %v4886 = vshrl.u32 %v4885, 7
    %v4887 = vsub.s32 1, %v4886
    %v4888 = vrot.slane %v4879, %v4887
    %v4891 = vadd.f32 %v4877, %v4884
    %v4892 = vadd.f32 %v4878, %v4888
    %v4893 = vmax.f32 %v4891, 0.0
    %v4894 = vmax.f32 %v4892, 0.0
    %v4895 = vpack.c.bf16 %v4893, %v4893
    %v4896 = vpack.c.bf16 %v4894, %v4894
    %v4897 = vld [vmem:[#allocation19] sm:$0xf]
    %v4898 = vld [vmem:[#allocation19 + $0x4] sm:$0xf]
    %v4899 = vld [vmem:[#allocation19 + $0x8] sm:$0xf]
    %v4900 = vld [vmem:[#allocation19 + $0xc] sm:$0xf]
    %v4901 = vld [vmem:[#allocation19 + $0x10] sm:$0xf]
    %v4902 = vld [vmem:[#allocation19 + $0x14] sm:$0xf]
    %v4903 = vld [vmem:[#allocation19 + $0x18] sm:$0xf]
    %v4904 = vld [vmem:[#allocation19 + $0x1c] sm:$0xf]
    %v4905 = vld [vmem:[#allocation19 + $0x20] sm:$0xf]
    %v4906 = vld [vmem:[#allocation19 + $0x24] sm:$0xf]
    %v4907 = vld [vmem:[#allocation19 + $0x28] sm:$0xf]
    %v4908 = vld [vmem:[#allocation19 + $0x2c] sm:$0xf]
    %v4909 = vld [vmem:[#allocation19 + $0x30] sm:$0xf]
    %v4910 = vld [vmem:[#allocation19 + $0x34] sm:$0xf]
    %v4911 = vld [vmem:[#allocation19 + $0x38] sm:$0xf]
    %v4912 = vld [vmem:[#allocation19 + $0x3c] sm:$0xf]
    %v4913 = vld [vmem:[#allocation19 + $0x40] sm:$0xf]
    %v4914 = vld [vmem:[#allocation19 + $0x44] sm:$0xf]
    %v4915 = vld [vmem:[#allocation19 + $0x48] sm:$0xf]
    %v4916 = vld [vmem:[#allocation19 + $0x4c] sm:$0xf]
    %v4917 = vld [vmem:[#allocation19 + $0x50] sm:$0xf]
    %v4918 = vld [vmem:[#allocation19 + $0x54] sm:$0xf]
    %v4919 = vld [vmem:[#allocation19 + $0x58] sm:$0xf]
    %v4920 = vld [vmem:[#allocation19 + $0x5c] sm:$0xf]
    %v4921 = vld [vmem:[#allocation19 + $0x60] sm:$0xf]
    %v4922 = vld [vmem:[#allocation19 + $0x64] sm:$0xf]
    %v4923 = vld [vmem:[#allocation19 + $0x68] sm:$0xf]
    %v4924 = vld [vmem:[#allocation19 + $0x6c] sm:$0xf]
    %v4925 = vld [vmem:[#allocation19 + $0x70] sm:$0xf]
    %v4926 = vld [vmem:[#allocation19 + $0x74] sm:$0xf]
    %v4927 = vld [vmem:[#allocation19 + $0x78] sm:$0xf]
    %v4928 = vld [vmem:[#allocation19 + $0x7c] sm:$0xf]
    %v4929 = vld [vmem:[#allocation20] sm:$0x1]
    %v4931 = vlaneseq
    %v4932 = vshrl.u32 %v4931, 7
    %v4933 = vsub.s32 0, %v4932
    %v4934 = vrot.slane %v4929, %v4933
    %v4968 = vunpack.c.l.b16 %v4897
    %v4969 = vunpack.c.l.b16 %v4898
    %v4970 = vunpack.c.l.b16 %v4899
    %v4971 = vunpack.c.l.b16 %v4900
    %v4972 = vunpack.c.l.b16 %v4901
    %v4973 = vunpack.c.l.b16 %v4902
    %v4974 = vunpack.c.l.b16 %v4903
    %v4975 = vunpack.c.l.b16 %v4904
    %v4976 = vunpack.c.l.b16 %v4905
    %v4977 = vunpack.c.l.b16 %v4906
    %v4978 = vunpack.c.l.b16 %v4907
    %v4979 = vunpack.c.l.b16 %v4908
    %v4980 = vunpack.c.l.b16 %v4909
    %v4981 = vunpack.c.l.b16 %v4910
    %v4982 = vunpack.c.l.b16 %v4911
    %v4983 = vunpack.c.l.b16 %v4912
    %v4984 = vunpack.c.l.b16 %v4913
    %v4985 = vunpack.c.l.b16 %v4914
    %v4986 = vunpack.c.l.b16 %v4915
    %v4987 = vunpack.c.l.b16 %v4916
    %v4988 = vunpack.c.l.b16 %v4917
    %v4989 = vunpack.c.l.b16 %v4918
    %v4990 = vunpack.c.l.b16 %v4919
    %v4991 = vunpack.c.l.b16 %v4920
    %v4992 = vunpack.c.l.b16 %v4921
    %v4993 = vunpack.c.l.b16 %v4922
    %v4994 = vunpack.c.l.b16 %v4923
    %v4995 = vunpack.c.l.b16 %v4924
    %v4996 = vunpack.c.l.b16 %v4925
    %v4997 = vunpack.c.l.b16 %v4926
    %v4998 = vunpack.c.l.b16 %v4927
    %v4999 = vunpack.c.l.b16 %v4928
    %v5000 = vpack.c.b16 %v4969, %v4968
    %v5001 = vpack.c.b16 %v4971, %v4970
    %v5002 = vpack.c.b16 %v4973, %v4972
    %v5003 = vpack.c.b16 %v4975, %v4974
    %v5004 = vpack.c.b16 %v4977, %v4976
    %v5005 = vpack.c.b16 %v4979, %v4978
    %v5006 = vpack.c.b16 %v4981, %v4980
    %v5007 = vpack.c.b16 %v4983, %v4982
    %v5008 = vpack.c.b16 %v4985, %v4984
    %v5009 = vpack.c.b16 %v4987, %v4986
    %v5010 = vpack.c.b16 %v4989, %v4988
    %v5011 = vpack.c.b16 %v4991, %v4990
    %v5012 = vpack.c.b16 %v4993, %v4992
    %v5013 = vpack.c.b16 %v4995, %v4994
    %v5014 = vpack.c.b16 %v4997, %v4996
    %v5015 = vpack.c.b16 %v4999, %v4998
    %5032 = vmatprep.subr.bf16.mxu0 0
    %5033 = vmatpush1.bf16.msra.mxu0 %v5007
    %5034 = vmatprep.subr.bf16.mxu0 0
    %5035 = vmatpush1.bf16.msra.mxu0 %v5006
    %5036 = vmatprep.subr.bf16.mxu0 0
    %5037 = vmatpush1.bf16.msra.mxu0 %v5005
    %5038 = vmatprep.subr.bf16.mxu0 0
    %5039 = vmatpush1.bf16.msra.mxu0 %v5004
    %5040 = vmatprep.subr.bf16.mxu0 0
    %5041 = vmatpush1.bf16.msra.mxu0 %v5003
    %5042 = vmatprep.subr.bf16.mxu0 0
    %5043 = vmatpush1.bf16.msra.mxu0 %v5002
    %5044 = vmatprep.subr.bf16.mxu0 0
    %5045 = vmatpush1.bf16.msra.mxu0 %v5001
    %5046 = vmatprep.subr.bf16.mxu0 0
    %5047 = vmatpush1.bf16.msra.mxu0 %v5000
    %5048 = vmatprep.subr.bf16.mxu0 0
    %5049 = vmatpush2.bf16.msra.mxu0 %v5015
    %5050 = vmatprep.subr.bf16.mxu0 0
    %5051 = vmatpush2.bf16.msra.mxu0 %v5014
    %5052 = vmatprep.subr.bf16.mxu0 0
    %5053 = vmatpush2.bf16.msra.mxu0 %v5013
    %5054 = vmatprep.subr.bf16.mxu0 0
    %5055 = vmatpush2.bf16.msra.mxu0 %v5012
    %5056 = vmatprep.subr.bf16.mxu0 0
    %5057 = vmatpush2.bf16.msra.mxu0 %v5011
    %5058 = vmatprep.subr.bf16.mxu0 0
    %5059 = vmatpush2.bf16.msra.mxu0 %v5010
    %5060 = vmatprep.subr.bf16.mxu0 0
    %5061 = vmatpush2.bf16.msra.mxu0 %v5009
    %5062 = vmatprep.subr.bf16.mxu0 0
    %5063 = vmatpush2.bf16.msra.mxu0 %v5008
    %5064 = vmatprep.mubr.bf16.mxu0 %v4896
    %5065 = vmatmul.mubr.bf16.gmra.mxu0 %v4895
    %v5066 = vpop.f32.mrf.mxu0
    %v5067 = vadd.f32 %v4934, %v5066
    %v5068 = vpop.f32.mrf.mxu0
    %v5069 = vpop.f32.mrf.mxu0
    %v5070 = vpop.f32.mrf.mxu0
    %5071 = vdwg.mxu0
    %5072 = vmax.xlane.f32.xlu0 %v5067
    %v5073 = vpop.xlane.xlu0 %5072
    %v5074 = vsub.f32 %v5067, %v5073
    %v5075 = vmul.f32 %v5074, 1.442695
    %v5076 = vpow.pop %v5075
    %5077 = vadd.xlane.f32.xlu0 %v5076
    %v5078 = vpop.xlane.xlu0 %5077
    %v5079 = vrcp.pop %v5078
    %v5080 = vmul.f32 %v5076, %v5079
    %5081 = vst [vmem:[#allocation22] sm:$0xff] %v5080
    // Predicated region
    $region98: #{tpu_custom_call.1} parent=1 // pred_check
      _
    $region99: #{tpu_custom_call.1} parent=1 // pred_check_branch
      %5083 = sbr.rel (0) target = $region101
    $region100: #{tpu_custom_call.1} parent=1 // pred_region
      %s5085 = ssub.s32 128, 128
      %5086 = vsyncadd [#allocation4], %s5085
      %s5088 = sshll.u32 [#allocation22], 4
      %s5089 = int_to_ptr.vmem [resolvable:$true] %s5088
      %5091 = dma.vmem_to_hbm [thread:$0]  %s5089, 128, %s12, [#allocation4]
    $region101: #{tpu_custom_call.1} parent=1 // pred_fallthru
      _
    // Predicated region
    $region102: #{tpu_custom_call.1} parent=1 // pred_check
      _
    $region103: #{tpu_custom_call.1} parent=1 // pred_check_branch
      %5093 = sbr.rel (0) target = $region105
    $region104: #{tpu_custom_call.1} parent=1 // pred_region
      %5094 = dma.done [#allocation4], 128
    $region105: #{tpu_custom_call.1} parent=1 // pred_fallthru
      _
    %5095 = vsyncpa [#allocation3], 1
    %5096 = vsyncpa [#allocation6], 1
    %5097 = vsyncpa [#allocation9], 1
    %5098 = vsyncpa [#allocation12], 1
    %5099 = vsyncpa [#allocation15], 1
    %5100 = vsyncpa [#allocation18], 1
    %5101 = vsyncpa [#allocation21], 1
    %5102 = vsyncpa [#allocation4], 1

</llo_original>
